<compile_context>
chip_gen: v7x
topology: tpu7x:2x2x1
jax: 0.10.0
libtpu: 0.0.40
codegen_flags: <defaults>
</compile_context>

<pallas_src>
import math
import jax
import jax.numpy as jnp
from jax.experimental import pallas as pl
from jax.experimental.pallas import tpu as pltpu

# --- scaled-down config (same structure as the reference Namespace) ---
HIDDEN = 256          # config.hidden_size (scaled from 800, keeps 8 heads)
NUM_HEADS = 8         # config.num_attention_heads
HEAD_DIM = HIDDEN // NUM_HEADS
INTERMEDIATE = 128    # config.intermediate_size
NUM_DEC_LAYERS = 2    # config.num_decoder_hidden_layers
LN_EPS = 1e-5         # nn.LayerNorm default

WEIGHT_ORDER = ("ln", "wqkv1", "bqkv1", "wo1", "bo1",
                "wq2", "bq2", "wkv2", "bkv2", "wo2", "bo2",
                "wf1", "bf1", "wf2", "bf2")


# ----------------------------- in-kernel math ------------------------------
def _erf_f32(z):
    # Abramowitz & Stegun 7.1.26, |error| < 1.5e-7.
    a1, a2, a3, a4, a5 = (0.254829592, -0.284496736, 1.421413741,
                          -1.453152027, 1.061405429)
    p = 0.3275911
    az = jnp.abs(z)
    t = pl.reciprocal(1.0 + p * az, approx=True)      # EUP slot
    poly = ((((a5 * t + a4) * t + a3) * t + a2) * t + a1) * t
    y = 1.0 - poly * jnp.exp(-az * az)
    return jnp.where(z >= 0.0, y, -y)


def _gelu_exact(x):
    # matches torch.nn.GELU() (erf form, not tanh approximation)
    return 0.5 * x * (1.0 + _erf_f32(x * 0.7071067811865476))


# ------------------------------ Pallas kernel ------------------------------
def decoder_kernel(x_ref, enc_ref, bself_ref, bcross_ref, ln_ref,
                   wqkv1_ref, bqkv1_ref, wo1_ref, bo1_ref,
                   wq2_ref, bq2_ref, wkv2_ref, bkv2_ref, wo2_ref, bo2_ref,
                   wf1_ref, bf1_ref, wf2_ref, bf2_ref,
                   out_ref, x_carry):
    B, S, H = x_ref.shape
    Se = enc_ref.shape[1]
    R, Rk = B * S, B * Se
    NH, HD = NUM_HEADS, HEAD_DIM
    layer = pl.program_id(0)
    n_layers = pl.num_programs(0)

    # initialize the carried activations from the kernel input on layer 0
    @pl.when(layer == 0)
    def _():
        x_carry[...] = x_ref[...].reshape(R, H)

    x = x_carry[...]                                   # (B*S, H) f32
    enc_b = enc_ref[...].reshape(Rk, H).astype(jnp.bfloat16)
    ln = ln_ref[...]                                   # (6, H)

    def layernorm(v, row):
        g = ln[row:row + 1, :]
        b = ln[row + 1:row + 2, :]
        mu = jnp.mean(v, axis=-1, keepdims=True)
        d = v - mu
        var = jnp.mean(d * d, axis=-1, keepdims=True)
        return d * jax.lax.rsqrt(var + LN_EPS) * g + b

    def stack_heads(m):
        # (rows, H) -> (NH*rows, HD): sublane-block h holds head h's columns.
        return jnp.concatenate(
            [m[:, h * HD:(h + 1) * HD] for h in range(NH)], axis=0)

    def unstack_heads(m, rows):
        # (NH*rows, HD) -> (rows, H): torch-style per-head concat along lanes.
        return jnp.concatenate(
            [m[h * rows:(h + 1) * rows, :] for h in range(NH)], axis=-1)

    def mha(q, k, v, wo_bf, bo, bias):
        # q already carries the 1/sqrt(HEAD_DIM) scale (folded into W_q/b_q).
        rows = q.shape[0]
        qs = stack_heads(q).astype(jnp.bfloat16)       # (NH*rows, HD)
        ks = stack_heads(k).astype(jnp.bfloat16)       # (NH*krows, HD)
        vs = stack_heads(v).astype(jnp.bfloat16)
        # one big score matmul over all heads; bias kills cross-head /
        # cross-batch (and non-causal, for cross-attn) entries.
        s = jax.lax.dot_general(qs, ks, (((1,), (1,)), ((), ())),
                                preferred_element_type=jnp.float32) + bias
        m = jnp.max(s, axis=-1, keepdims=True)
        e = jnp.exp(s - m)
        p = e * pl.reciprocal(jnp.sum(e, axis=-1, keepdims=True), approx=True)
        ctx = jnp.dot(p.astype(jnp.bfloat16), vs,
                      preferred_element_type=jnp.float32)   # (NH*rows, HD)
        ctx = unstack_heads(ctx, rows).astype(jnp.bfloat16)  # (rows, H)
        return jnp.dot(ctx, wo_bf, preferred_element_type=jnp.float32) + bo

    # --- "masked" self-attention block (mask is actually None, see header) ---
    h1 = layernorm(x, 0).astype(jnp.bfloat16)
    qkv = jnp.dot(h1, wqkv1_ref[...],
                  preferred_element_type=jnp.float32) + bqkv1_ref[...]
    x = x + mha(qkv[:, 0:H], qkv[:, H:2 * H], qkv[:, 2 * H:3 * H],
                wo1_ref[...], bo1_ref[...], bself_ref[...])

    # --- encoder-decoder cross attention (causal mask applied) ---
    h2 = layernorm(x, 2).astype(jnp.bfloat16)
    q2 = jnp.dot(h2, wq2_ref[...],
                 preferred_element_type=jnp.float32) + bq2_ref[...]
    kv2 = jnp.dot(enc_b, wkv2_ref[...],
                  preferred_element_type=jnp.float32) + bkv2_ref[...]
    x = x + mha(q2, kv2[:, 0:H], kv2[:, H:2 * H],
                wo2_ref[...], bo2_ref[...], bcross_ref[...])

    # --- feed-forward ---
    h3 = layernorm(x, 4).astype(jnp.bfloat16)
    t = jnp.dot(h3, wf1_ref[...],
                preferred_element_type=jnp.float32) + bf1_ref[...]
    t = _gelu_exact(t).astype(jnp.bfloat16)
    t = jnp.dot(t, wf2_ref[...],
                preferred_element_type=jnp.float32) + bf2_ref[...]
    x = x + t

    x_carry[...] = x

    @pl.when(layer == n_layers - 1)
    def _():
        out_ref[...] = x.reshape(B, S, H)


# ------------------------------ host wrapper -------------------------------
def pack_layer_params(layer_params_list):
    """Stack per-layer params into [L, ...]; fuse QKV/KV; fold 1/sqrt(d_k)
    into the Q projections; weights -> bf16 for the MXU."""
    scale = 1.0 / math.sqrt(HEAD_DIM)

    def stack(fn):
        return jnp.stack([fn(p) for p in layer_params_list], axis=0)

    packed = {
        "ln": stack(lambda p: jnp.concatenate(
            [p["ln1_g"], p["ln1_b"], p["ln2_g"], p["ln2_b"],
             p["ln3_g"], p["ln3_b"]], axis=0)),
        "wqkv1": stack(lambda p: jnp.concatenate(
            [p["wq1"] * scale, p["wk1"], p["wv1"]], axis=1)).astype(jnp.bfloat16),
        "bqkv1": stack(lambda p: jnp.concatenate(
            [p["bq1"] * scale, p["bk1"], p["bv1"]], axis=1)),
        "wo1": stack(lambda p: p["wo1"]).astype(jnp.bfloat16),
        "bo1": stack(lambda p: p["bo1"]),
        "wq2": stack(lambda p: p["wq2"] * scale).astype(jnp.bfloat16),
        "bq2": stack(lambda p: p["bq2"] * scale),
        "wkv2": stack(lambda p: jnp.concatenate(
            [p["wk2"], p["wv2"]], axis=1)).astype(jnp.bfloat16),
        "bkv2": stack(lambda p: jnp.concatenate([p["bk2"], p["bv2"]], axis=1)),
        "wo2": stack(lambda p: p["wo2"]).astype(jnp.bfloat16),
        "bo2": stack(lambda p: p["bo2"]),
        "wf1": stack(lambda p: p["wf1"]).astype(jnp.bfloat16),
        "bf1": stack(lambda p: p["bf1"]),
        "wf2": stack(lambda p: p["wf2"]).astype(jnp.bfloat16),
        "bf2": stack(lambda p: p["bf2"]),
    }
    return [packed[name] for name in WEIGHT_ORDER]


def build_bias(B, Sq, Sk, causal):
    """Additive bias over head-stacked rows/cols: 0 where (same head AND same
    batch AND (not causal OR key_pos <= query_pos)), else -1e30."""
    Rq, Rk = B * Sq, B * Sk
    qi = jnp.arange(NUM_HEADS * Rq)
    kj = jnp.arange(NUM_HEADS * Rk)
    hq, rq = qi // Rq, qi % Rq
    bq, sq = rq // Sq, rq % Sq
    hk, rk = kj // Rk, kj % Rk
    bk, sk = rk // Sk, rk % Sk
    ok = (hq[:, None] == hk[None, :]) & (bq[:, None] == bk[None, :])
    if causal:
        ok = ok & (sk[None, :] <= sq[:, None])
    return jnp.where(ok, 0.0, -1e30).astype(jnp.float32)


def transformer_decoder(x, enc_out, layer_params_list):
    # config.decode_embed_flag == False -> no embedding, just stacked layers.
    B, S, H = x.shape
    Se = enc_out.shape[1]          # reference causal-mask broadcast needs Se == S
    L = len(layer_params_list)
    weights = pack_layer_params(layer_params_list)
    bias_self = build_bias(B, S, S, causal=False)    # self-attn: no causal mask
    bias_cross = build_bias(B, S, Se, causal=True)   # cross-attn: causal

    def wspec(arr):
        nd = arr.ndim - 1
        return pl.BlockSpec((None,) + arr.shape[1:],
                            lambda l, _nd=nd: (l,) + (0,) * _nd)

    in_specs = ([pl.BlockSpec((B, S, H), lambda l: (0, 0, 0)),
                 pl.BlockSpec((B, Se, H), lambda l: (0, 0, 0)),
                 pl.BlockSpec(bias_self.shape, lambda l: (0, 0)),
                 pl.BlockSpec(bias_cross.shape, lambda l: (0, 0))]
                + [wspec(w) for w in weights])

    return pl.pallas_call(
        decoder_kernel,
        out_shape=jax.ShapeDtypeStruct((B, S, H), jnp.float32),
        grid=(L,),
        in_specs=in_specs,
        out_specs=pl.BlockSpec((B, S, H), lambda l: (0, 0, 0)),
        scratch_shapes=[pltpu.VMEM((B * S, H), jnp.float32)],
        compiler_params=pltpu.CompilerParams(
            dimension_semantics=("arbitrary",)),
    )(x, enc_out, bias_self, bias_cross, *weights)


# ----------------------- deterministic parameter init -----------------------
def init_layer_params(key):
    def linear(k, fan_in, fan_out):
        bound = 1.0 / math.sqrt(fan_in)
        kw, kb = jax.random.split(k)
        w = jax.random.uniform(kw, (fan_in, fan_out), jnp.float32, -bound, bound)
        b = jax.random.uniform(kb, (1, fan_out), jnp.float32, -bound, bound)
        return w, b

    ks = jax.random.split(key, 10)
    p = {}
    p["ln1_g"] = jnp.ones((1, HIDDEN), jnp.float32)
    p["ln1_b"] = jnp.zeros((1, HIDDEN), jnp.float32)
    p["wq1"], p["bq1"] = linear(ks[0], HIDDEN, HIDDEN)
    p["wk1"], p["bk1"] = linear(ks[1], HIDDEN, HIDDEN)
    p["wv1"], p["bv1"] = linear(ks[2], HIDDEN, HIDDEN)
    p["wo1"], p["bo1"] = linear(ks[3], HIDDEN, HIDDEN)
    p["ln2_g"] = jnp.ones((1, HIDDEN), jnp.float32)
    p["ln2_b"] = jnp.zeros((1, HIDDEN), jnp.float32)
    p["wq2"], p["bq2"] = linear(ks[4], HIDDEN, HIDDEN)
    p["wk2"], p["bk2"] = linear(ks[5], HIDDEN, HIDDEN)
    p["wv2"], p["bv2"] = linear(ks[6], HIDDEN, HIDDEN)
    p["wo2"], p["bo2"] = linear(ks[7], HIDDEN, HIDDEN)
    p["ln3_g"] = jnp.ones((1, HIDDEN), jnp.float32)
    p["ln3_b"] = jnp.zeros((1, HIDDEN), jnp.float32)
    p["wf1"], p["bf1"] = linear(ks[8], HIDDEN, INTERMEDIATE)
    p["wf2"], p["bf2"] = linear(ks[9], INTERMEDIATE, HIDDEN)
    return p


# --------------------------- pure-JAX reference -----------------------------
def reference_layer(x, enc, p):
    def ln(v, g, b):
        mu = v.mean(-1, keepdims=True)
        var = ((v - mu) ** 2).mean(-1, keepdims=True)
        return (v - mu) / jnp.sqrt(var + LN_EPS) * g + b

    def mha(q, k, v, masked):
        sq, sk = q.shape[1], k.shape[1]
        outs = []
        for h in range(NUM_HEADS):
            sl = slice(h * HEAD_DIM, (h + 1) * HEAD_DIM)
            s = jnp.einsum("bqd,bkd->bqk", q[..., sl], k[..., sl]) / math.sqrt(HEAD_DIM)
            if masked:
                m = jnp.tril(jnp.ones((sq, sk)))
                s = jnp.where(m == 0, -jnp.inf, s)
            a = jax.nn.softmax(s, axis=-1)
            outs.append(jnp.einsum("bqk,bkd->bqd", a, v[..., sl]))
        return jnp.concatenate(outs, axis=-1)

    h = ln(x, p["ln1_g"], p["ln1_b"])
    q = h @ p["wq1"] + p["bq1"]
    k = h @ p["wk1"] + p["bk1"]
    v = h @ p["wv1"] + p["bv1"]
    x = x + mha(q, k, v, masked=False) @ p["wo1"] + p["bo1"]

    h = ln(x, p["ln2_g"], p["ln2_b"])
    q = h @ p["wq2"] + p["bq2"]
    k = enc @ p["wk2"] + p["bk2"]
    v = enc @ p["wv2"] + p["bv2"]
    x = x + mha(q, k, v, masked=True) @ p["wo2"] + p["bo2"]

    h = ln(x, p["ln3_g"], p["ln3_b"])
    t = jax.nn.gelu(h @ p["wf1"] + p["bf1"], approximate=False)
    x = x + t @ p["wf2"] + p["bf2"]
    return x


def transformer_decoder_ref(x, enc, layer_params_list):
    for p in layer_params_list:
        x = reference_layer(x, enc, p)
    return x


# ---------------------------------- main ------------------------------------
if __name__ == "__main__":
    B, S = 2, 8          # decoder seq; encoder seq must equal S (see header)
    key = jax.random.PRNGKey(0)
    kx, ke, kp = jax.random.split(key, 3)
    x = jax.random.normal(kx, (B, S, HIDDEN), jnp.float32)
    enc_out = jax.random.normal(ke, (B, S, HIDDEN), jnp.float32)
    layer_params = [init_layer_params(k)
                    for k in jax.random.split(kp, NUM_DEC_LAYERS)]

    out = transformer_decoder(x, enc_out, layer_params)
    out = jax.block_until_ready(out)

    ref = transformer_decoder_ref(x, enc_out, layer_params)
    assert out.shape == (B, S, HIDDEN) and out.dtype == jnp.float32
    max_diff = float(jnp.max(jnp.abs(out - ref)))
    assert bool(jnp.allclose(out, ref, atol=5e-2, rtol=5e-2)), (
        "max abs diff = %f" % max_diff)
    print("KERNEL_OK")
</pallas_src>

<mosaic_0001>
module attributes {stable_mosaic.version = 11 : i64} {
  func.func @decoder_kernel(%arg0: i32, %arg1: memref<2x8x256xf32, #tpu.memory_space<vmem>>, %arg2: memref<2x8x256xf32, #tpu.memory_space<vmem>>, %arg3: memref<128x128xf32, #tpu.memory_space<vmem>>, %arg4: memref<128x128xf32, #tpu.memory_space<vmem>>, %arg5: memref<1x6x256xf32, #tpu.memory_space<vmem>>, %arg6: memref<1x256x768xbf16, #tpu.memory_space<vmem>>, %arg7: memref<1x1x768xf32, #tpu.memory_space<vmem>>, %arg8: memref<1x256x256xbf16, #tpu.memory_space<vmem>>, %arg9: memref<1x1x256xf32, #tpu.memory_space<vmem>>, %arg10: memref<1x256x256xbf16, #tpu.memory_space<vmem>>, %arg11: memref<1x1x256xf32, #tpu.memory_space<vmem>>, %arg12: memref<1x256x512xbf16, #tpu.memory_space<vmem>>, %arg13: memref<1x1x512xf32, #tpu.memory_space<vmem>>, %arg14: memref<1x256x256xbf16, #tpu.memory_space<vmem>>, %arg15: memref<1x1x256xf32, #tpu.memory_space<vmem>>, %arg16: memref<1x256x128xbf16, #tpu.memory_space<vmem>>, %arg17: memref<1x1x128xf32, #tpu.memory_space<vmem>>, %arg18: memref<1x128x256xbf16, #tpu.memory_space<vmem>>, %arg19: memref<1x1x256xf32, #tpu.memory_space<vmem>>, %arg20: memref<2x8x256xf32, #tpu.memory_space<vmem>>, %arg21: memref<16x256xf32, #tpu.memory_space<vmem>>) attributes {dimension_semantics = [#tpu.dimension_semantics<arbitrary>], iteration_bounds = array<i64: 2>, scalar_prefetch = 0 : i64, scratch_operands = 1 : i64, tpu.core_type = #tpu.core_type<tc>, window_params = [{pipeline_mode = #tpu.pipeline_mode<synchronous>, transform_indices = @transform_0, window_bounds = array<i64: 2, 8, 256>}, {pipeline_mode = #tpu.pipeline_mode<synchronous>, transform_indices = @transform_1, window_bounds = array<i64: 2, 8, 256>}, {pipeline_mode = #tpu.pipeline_mode<synchronous>, transform_indices = @transform_2, window_bounds = array<i64: 128, 128>}, {pipeline_mode = #tpu.pipeline_mode<synchronous>, transform_indices = @transform_3, window_bounds = array<i64: 128, 128>}, {transform_indices = @transform_4, window_bounds = array<i64: 1, 6, 256>}, {transform_indices = @transform_5, window_bounds = array<i64: 1, 256, 768>}, {transform_indices = @transform_6, window_bounds = array<i64: 1, 1, 768>}, {transform_indices = @transform_7, window_bounds = array<i64: 1, 256, 256>}, {transform_indices = @transform_8, window_bounds = array<i64: 1, 1, 256>}, {transform_indices = @transform_9, window_bounds = array<i64: 1, 256, 256>}, {transform_indices = @transform_10, window_bounds = array<i64: 1, 1, 256>}, {transform_indices = @transform_11, window_bounds = array<i64: 1, 256, 512>}, {transform_indices = @transform_12, window_bounds = array<i64: 1, 1, 512>}, {transform_indices = @transform_13, window_bounds = array<i64: 1, 256, 256>}, {transform_indices = @transform_14, window_bounds = array<i64: 1, 1, 256>}, {transform_indices = @transform_15, window_bounds = array<i64: 1, 256, 128>}, {transform_indices = @transform_16, window_bounds = array<i64: 1, 1, 128>}, {transform_indices = @transform_17, window_bounds = array<i64: 1, 128, 256>}, {transform_indices = @transform_18, window_bounds = array<i64: 1, 1, 256>}, {pipeline_mode = #tpu.pipeline_mode<synchronous>, transform_indices = @transform_19, window_bounds = array<i64: 2, 8, 256>}]} {
    %c0_i32 = arith.constant 0 : i32
    %0 = arith.cmpi eq, %arg0, %c0_i32 : i32
    %1 = arith.extui %0 : i1 to i32
    %c0_i32_0 = arith.constant 0 : i32
    %2 = arith.cmpi ne, %1, %c0_i32_0 : i32
    scf.if %2 {
      %c0_100 = arith.constant 0 : index
      %c0_101 = arith.constant 0 : index
      %c0_102 = arith.constant 0 : index
      %289 = vector.load %arg1[%c0_100, %c0_101, %c0_102] : memref<2x8x256xf32, #tpu.memory_space<vmem>>, vector<2x8x256xf32>
      %290 = vector.shape_cast %289 : vector<2x8x256xf32> to vector<16x256xf32>
      %c0_103 = arith.constant 0 : index
      %c0_104 = arith.constant 0 : index
      %291 = vector.load %arg21[%c0_103, %c0_104] : memref<16x256xf32, #tpu.memory_space<vmem>>, vector<16x256xf32>
      tpu.vector_store %arg21[%c0_103, %c0_104], %290 {strides = array<i32>} : memref<16x256xf32, #tpu.memory_space<vmem>>, vector<16x256xf32>,
    } else {
    }
    %c0 = arith.constant 0 : index
    %c0_1 = arith.constant 0 : index
    %3 = vector.load %arg21[%c0, %c0_1] : memref<16x256xf32, #tpu.memory_space<vmem>>, vector<16x256xf32>
    %c0_2 = arith.constant 0 : index
    %c0_3 = arith.constant 0 : index
    %c0_4 = arith.constant 0 : index
    %4 = vector.load %arg2[%c0_2, %c0_3, %c0_4] : memref<2x8x256xf32, #tpu.memory_space<vmem>>, vector<2x8x256xf32>
    %5 = vector.shape_cast %4 : vector<2x8x256xf32> to vector<16x256xf32>
    %6 = arith.truncf %5 : vector<16x256xf32> to vector<16x256xbf16>
    %c0_5 = arith.constant 0 : index
    %c0_6 = arith.constant 0 : index
    %c0_7 = arith.constant 0 : index
    %7 = vector.load %arg5[%c0_5, %c0_6, %c0_7] : memref<1x6x256xf32, #tpu.memory_space<vmem>>, vector<1x6x256xf32>
    %8 = vector.shape_cast %7 : vector<1x6x256xf32> to vector<6x256xf32>
    %9 = vector.extract_strided_slice %8 {offsets = [0, 0], sizes = [1, 256], strides = [1, 1]} : vector<6x256xf32> to vector<1x256xf32>
    %10 = vector.extract_strided_slice %8 {offsets = [1, 0], sizes = [1, 256], strides = [1, 1]} : vector<6x256xf32> to vector<1x256xf32>
    %cst = arith.constant dense<0.000000e+00> : vector<16xf32>
    %11 = vector.multi_reduction <add>, %3, %cst [1] : vector<16x256xf32> to vector<16xf32>
    %12 = vector.shape_cast %11 : vector<16xf32> to vector<16x1xf32>
    %cst_8 = arith.constant 2.560000e+02 : f32
    %13 = vector.broadcast %cst_8 : f32 to vector<16x1xf32>
    %14 = arith.divf %12, %13 : vector<16x1xf32>
    %15 = vector.broadcast %14 : vector<16x1xf32> to vector<16x256xf32>
    %16 = arith.subf %3, %15 : vector<16x256xf32>
    %17 = arith.mulf %16, %16 : vector<16x256xf32>
    %cst_9 = arith.constant dense<0.000000e+00> : vector<16xf32>
    %18 = vector.multi_reduction <add>, %17, %cst_9 [1] : vector<16x256xf32> to vector<16xf32>
    %19 = vector.shape_cast %18 : vector<16xf32> to vector<16x1xf32>
    %cst_10 = arith.constant 2.560000e+02 : f32
    %20 = vector.broadcast %cst_10 : f32 to vector<16x1xf32>
    %21 = arith.divf %19, %20 : vector<16x1xf32>
    %cst_11 = arith.constant 9.99999974E-6 : f32
    %22 = vector.broadcast %cst_11 : f32 to vector<16x1xf32>
    %23 = arith.addf %21, %22 : vector<16x1xf32>
    %24 = math.rsqrt %23 : vector<16x1xf32>
    %25 = vector.broadcast %24 : vector<16x1xf32> to vector<16x256xf32>
    %26 = arith.mulf %16, %25 : vector<16x256xf32>
    %27 = vector.broadcast %9 : vector<1x256xf32> to vector<16x256xf32>
    %28 = arith.mulf %26, %27 : vector<16x256xf32>
    %29 = vector.broadcast %10 : vector<1x256xf32> to vector<16x256xf32>
    %30 = arith.addf %28, %29 : vector<16x256xf32>
    %31 = arith.truncf %30 : vector<16x256xf32> to vector<16x256xbf16>
    %c0_12 = arith.constant 0 : index
    %c0_13 = arith.constant 0 : index
    %c0_14 = arith.constant 0 : index
    %32 = vector.load %arg6[%c0_12, %c0_13, %c0_14] : memref<1x256x768xbf16, #tpu.memory_space<vmem>>, vector<1x256x768xbf16>
    %33 = vector.shape_cast %32 : vector<1x256x768xbf16> to vector<256x768xbf16>
    %cst_15 = arith.constant dense<0.000000e+00> : vector<16x768xf32>
    %34 = tpu.matmul %31, %33, %cst_15 {dimension_numbers = #tpu.dot_dimension_numbers<[1], [0], [0], [1], [0, 0, 1, 1], [], []>} : vector<16x256xbf16>, vector<256x768xbf16>, vector<16x768xf32> -> vector<16x768xf32>
    %c0_16 = arith.constant 0 : index
    %c0_17 = arith.constant 0 : index
    %c0_18 = arith.constant 0 : index
    %35 = vector.load %arg7[%c0_16, %c0_17, %c0_18] : memref<1x1x768xf32, #tpu.memory_space<vmem>>, vector<1x1x768xf32>
    %36 = vector.shape_cast %35 : vector<1x1x768xf32> to vector<1x768xf32>
    %37 = vector.broadcast %36 : vector<1x768xf32> to vector<16x768xf32>
    %38 = arith.addf %34, %37 : vector<16x768xf32>
    %39 = vector.extract_strided_slice %38 {offsets = [0, 0], sizes = [16, 256], strides = [1, 1]} : vector<16x768xf32> to vector<16x256xf32>
    %40 = vector.extract_strided_slice %38 {offsets = [0, 256], sizes = [16, 256], strides = [1, 1]} : vector<16x768xf32> to vector<16x256xf32>
    %41 = vector.extract_strided_slice %38 {offsets = [0, 512], sizes = [16, 256], strides = [1, 1]} : vector<16x768xf32> to vector<16x256xf32>
    %c0_19 = arith.constant 0 : index
    %c0_20 = arith.constant 0 : index
    %c0_21 = arith.constant 0 : index
    %42 = vector.load %arg8[%c0_19, %c0_20, %c0_21] : memref<1x256x256xbf16, #tpu.memory_space<vmem>>, vector<1x256x256xbf16>
    %43 = vector.shape_cast %42 : vector<1x256x256xbf16> to vector<256x256xbf16>
    %c0_22 = arith.constant 0 : index
    %c0_23 = arith.constant 0 : index
    %c0_24 = arith.constant 0 : index
    %44 = vector.load %arg9[%c0_22, %c0_23, %c0_24] : memref<1x1x256xf32, #tpu.memory_space<vmem>>, vector<1x1x256xf32>
    %45 = vector.shape_cast %44 : vector<1x1x256xf32> to vector<1x256xf32>
    %c0_25 = arith.constant 0 : index
    %c0_26 = arith.constant 0 : index
    %46 = vector.load %arg3[%c0_25, %c0_26] : memref<128x128xf32, #tpu.memory_space<vmem>>, vector<128x128xf32>
    %47 = vector.extract_strided_slice %39 {offsets = [0, 0], sizes = [16, 32], strides = [1, 1]} : vector<16x256xf32> to vector<16x32xf32>
    %48 = vector.extract_strided_slice %39 {offsets = [0, 32], sizes = [16, 32], strides = [1, 1]} : vector<16x256xf32> to vector<16x32xf32>
    %49 = vector.extract_strided_slice %39 {offsets = [0, 64], sizes = [16, 32], strides = [1, 1]} : vector<16x256xf32> to vector<16x32xf32>
    %50 = vector.extract_strided_slice %39 {offsets = [0, 96], sizes = [16, 32], strides = [1, 1]} : vector<16x256xf32> to vector<16x32xf32>
    %51 = vector.extract_strided_slice %39 {offsets = [0, 128], sizes = [16, 32], strides = [1, 1]} : vector<16x256xf32> to vector<16x32xf32>
    %52 = vector.extract_strided_slice %39 {offsets = [0, 160], sizes = [16, 32], strides = [1, 1]} : vector<16x256xf32> to vector<16x32xf32>
    %53 = vector.extract_strided_slice %39 {offsets = [0, 192], sizes = [16, 32], strides = [1, 1]} : vector<16x256xf32> to vector<16x32xf32>
    %54 = vector.extract_strided_slice %39 {offsets = [0, 224], sizes = [16, 32], strides = [1, 1]} : vector<16x256xf32> to vector<16x32xf32>
    %55 = tpu.concatenate %47, %48, %49, %50, %51, %52, %53, %54 in 0 : vector<16x32xf32>, vector<16x32xf32>, vector<16x32xf32>, vector<16x32xf32>, vector<16x32xf32>, vector<16x32xf32>, vector<16x32xf32>, vector<16x32xf32> -> vector<128x32xf32>
    %56 = arith.truncf %55 : vector<128x32xf32> to vector<128x32xbf16>
    %57 = vector.extract_strided_slice %40 {offsets = [0, 0], sizes = [16, 32], strides = [1, 1]} : vector<16x256xf32> to vector<16x32xf32>
    %58 = vector.extract_strided_slice %40 {offsets = [0, 32], sizes = [16, 32], strides = [1, 1]} : vector<16x256xf32> to vector<16x32xf32>
    %59 = vector.extract_strided_slice %40 {offsets = [0, 64], sizes = [16, 32], strides = [1, 1]} : vector<16x256xf32> to vector<16x32xf32>
    %60 = vector.extract_strided_slice %40 {offsets = [0, 96], sizes = [16, 32], strides = [1, 1]} : vector<16x256xf32> to vector<16x32xf32>
    %61 = vector.extract_strided_slice %40 {offsets = [0, 128], sizes = [16, 32], strides = [1, 1]} : vector<16x256xf32> to vector<16x32xf32>
    %62 = vector.extract_strided_slice %40 {offsets = [0, 160], sizes = [16, 32], strides = [1, 1]} : vector<16x256xf32> to vector<16x32xf32>
    %63 = vector.extract_strided_slice %40 {offsets = [0, 192], sizes = [16, 32], strides = [1, 1]} : vector<16x256xf32> to vector<16x32xf32>
    %64 = vector.extract_strided_slice %40 {offsets = [0, 224], sizes = [16, 32], strides = [1, 1]} : vector<16x256xf32> to vector<16x32xf32>
    %65 = tpu.concatenate %57, %58, %59, %60, %61, %62, %63, %64 in 0 : vector<16x32xf32>, vector<16x32xf32>, vector<16x32xf32>, vector<16x32xf32>, vector<16x32xf32>, vector<16x32xf32>, vector<16x32xf32>, vector<16x32xf32> -> vector<128x32xf32>
    %66 = arith.truncf %65 : vector<128x32xf32> to vector<128x32xbf16>
    %67 = vector.extract_strided_slice %41 {offsets = [0, 0], sizes = [16, 32], strides = [1, 1]} : vector<16x256xf32> to vector<16x32xf32>
    %68 = vector.extract_strided_slice %41 {offsets = [0, 32], sizes = [16, 32], strides = [1, 1]} : vector<16x256xf32> to vector<16x32xf32>
    %69 = vector.extract_strided_slice %41 {offsets = [0, 64], sizes = [16, 32], strides = [1, 1]} : vector<16x256xf32> to vector<16x32xf32>
    %70 = vector.extract_strided_slice %41 {offsets = [0, 96], sizes = [16, 32], strides = [1, 1]} : vector<16x256xf32> to vector<16x32xf32>
    %71 = vector.extract_strided_slice %41 {offsets = [0, 128], sizes = [16, 32], strides = [1, 1]} : vector<16x256xf32> to vector<16x32xf32>
    %72 = vector.extract_strided_slice %41 {offsets = [0, 160], sizes = [16, 32], strides = [1, 1]} : vector<16x256xf32> to vector<16x32xf32>
    %73 = vector.extract_strided_slice %41 {offsets = [0, 192], sizes = [16, 32], strides = [1, 1]} : vector<16x256xf32> to vector<16x32xf32>
    %74 = vector.extract_strided_slice %41 {offsets = [0, 224], sizes = [16, 32], strides = [1, 1]} : vector<16x256xf32> to vector<16x32xf32>
    %75 = tpu.concatenate %67, %68, %69, %70, %71, %72, %73, %74 in 0 : vector<16x32xf32>, vector<16x32xf32>, vector<16x32xf32>, vector<16x32xf32>, vector<16x32xf32>, vector<16x32xf32>, vector<16x32xf32>, vector<16x32xf32> -> vector<128x32xf32>
    %76 = arith.truncf %75 : vector<128x32xf32> to vector<128x32xbf16>
    %cst_27 = arith.constant dense<0.000000e+00> : vector<128x128xf32>
    %77 = tpu.matmul %56, %66, %cst_27 {dimension_numbers = #tpu.dot_dimension_numbers<[1], [1], [0], [0], [0, 0, 1, 0], [], []>} : vector<128x32xbf16>, vector<128x32xbf16>, vector<128x128xf32> -> vector<128x128xf32>
    %78 = arith.addf %77, %46 : vector<128x128xf32>
    %cst_28 = arith.constant dense<0xFF800000> : vector<128xf32>
    %79 = vector.multi_reduction <maximumf>, %78, %cst_28 [1] : vector<128x128xf32> to vector<128xf32>
    %80 = vector.shape_cast %79 : vector<128xf32> to vector<128x1xf32>
    %81 = vector.broadcast %80 : vector<128x1xf32> to vector<128x128xf32>
    %82 = arith.subf %78, %81 : vector<128x128xf32>
    %83 = math.exp %82 : vector<128x128xf32>
    %cst_29 = arith.constant dense<0.000000e+00> : vector<128xf32>
    %84 = vector.multi_reduction <add>, %83, %cst_29 [1] : vector<128x128xf32> to vector<128xf32>
    %85 = vector.shape_cast %84 : vector<128xf32> to vector<128x1xf32>
    %86 = tpu.reciprocal %85 {approx = true} : vector<128x1xf32> -> vector<128x1xf32>
    %87 = vector.broadcast %86 : vector<128x1xf32> to vector<128x128xf32>
    %88 = arith.mulf %83, %87 : vector<128x128xf32>
    %89 = arith.truncf %88 : vector<128x128xf32> to vector<128x128xbf16>
    %cst_30 = arith.constant dense<0.000000e+00> : vector<128x32xf32>
    %90 = tpu.matmul %89, %76, %cst_30 {dimension_numbers = #tpu.dot_dimension_numbers<[1], [0], [0], [1], [0, 0, 1, 1], [], []>} : vector<128x128xbf16>, vector<128x32xbf16>, vector<128x32xf32> -> vector<128x32xf32>
    %91 = vector.extract_strided_slice %90 {offsets = [0, 0], sizes = [16, 32], strides = [1, 1]} : vector<128x32xf32> to vector<16x32xf32>
    %92 = vector.extract_strided_slice %90 {offsets = [16, 0], sizes = [16, 32], strides = [1, 1]} : vector<128x32xf32> to vector<16x32xf32>
    %93 = vector.extract_strided_slice %90 {offsets = [32, 0], sizes = [16, 32], strides = [1, 1]} : vector<128x32xf32> to vector<16x32xf32>
    %94 = vector.extract_strided_slice %90 {offsets = [48, 0], sizes = [16, 32], strides = [1, 1]} : vector<128x32xf32> to vector<16x32xf32>
    %95 = vector.extract_strided_slice %90 {offsets = [64, 0], sizes = [16, 32], strides = [1, 1]} : vector<128x32xf32> to vector<16x32xf32>
    %96 = vector.extract_strided_slice %90 {offsets = [80, 0], sizes = [16, 32], strides = [1, 1]} : vector<128x32xf32> to vector<16x32xf32>
    %97 = vector.extract_strided_slice %90 {offsets = [96, 0], sizes = [16, 32], strides = [1, 1]} : vector<128x32xf32> to vector<16x32xf32>
    %98 = vector.extract_strided_slice %90 {offsets = [112, 0], sizes = [16, 32], strides = [1, 1]} : vector<128x32xf32> to vector<16x32xf32>
    %99 = tpu.concatenate %91, %92, %93, %94, %95, %96, %97, %98 in 1 : vector<16x32xf32>, vector<16x32xf32>, vector<16x32xf32>, vector<16x32xf32>, vector<16x32xf32>, vector<16x32xf32>, vector<16x32xf32>, vector<16x32xf32> -> vector<16x256xf32>
    %100 = arith.truncf %99 : vector<16x256xf32> to vector<16x256xbf16>
    %cst_31 = arith.constant dense<0.000000e+00> : vector<16x256xf32>
    %101 = tpu.matmul %100, %43, %cst_31 {dimension_numbers = #tpu.dot_dimension_numbers<[1], [0], [0], [1], [0, 0, 1, 1], [], []>} : vector<16x256xbf16>, vector<256x256xbf16>, vector<16x256xf32> -> vector<16x256xf32>
    %102 = vector.broadcast %45 : vector<1x256xf32> to vector<16x256xf32>
    %103 = arith.addf %101, %102 : vector<16x256xf32>
    %104 = arith.addf %3, %103 : vector<16x256xf32>
    %105 = vector.extract_strided_slice %8 {offsets = [2, 0], sizes = [1, 256], strides = [1, 1]} : vector<6x256xf32> to vector<1x256xf32>
    %106 = vector.extract_strided_slice %8 {offsets = [3, 0], sizes = [1, 256], strides = [1, 1]} : vector<6x256xf32> to vector<1x256xf32>
    %cst_32 = arith.constant dense<0.000000e+00> : vector<16xf32>
    %107 = vector.multi_reduction <add>, %104, %cst_32 [1] : vector<16x256xf32> to vector<16xf32>
    %108 = vector.shape_cast %107 : vector<16xf32> to vector<16x1xf32>
    %cst_33 = arith.constant 2.560000e+02 : f32
    %109 = vector.broadcast %cst_33 : f32 to vector<16x1xf32>
    %110 = arith.divf %108, %109 : vector<16x1xf32>
    %111 = vector.broadcast %110 : vector<16x1xf32> to vector<16x256xf32>
    %112 = arith.subf %104, %111 : vector<16x256xf32>
    %113 = arith.mulf %112, %112 : vector<16x256xf32>
    %cst_34 = arith.constant dense<0.000000e+00> : vector<16xf32>
    %114 = vector.multi_reduction <add>, %113, %cst_34 [1] : vector<16x256xf32> to vector<16xf32>
    %115 = vector.shape_cast %114 : vector<16xf32> to vector<16x1xf32>
    %cst_35 = arith.constant 2.560000e+02 : f32
    %116 = vector.broadcast %cst_35 : f32 to vector<16x1xf32>
    %117 = arith.divf %115, %116 : vector<16x1xf32>
    %cst_36 = arith.constant 9.99999974E-6 : f32
    %118 = vector.broadcast %cst_36 : f32 to vector<16x1xf32>
    %119 = arith.addf %117, %118 : vector<16x1xf32>
    %120 = math.rsqrt %119 : vector<16x1xf32>
    %121 = vector.broadcast %120 : vector<16x1xf32> to vector<16x256xf32>
    %122 = arith.mulf %112, %121 : vector<16x256xf32>
    %123 = vector.broadcast %105 : vector<1x256xf32> to vector<16x256xf32>
    %124 = arith.mulf %122, %123 : vector<16x256xf32>
    %125 = vector.broadcast %106 : vector<1x256xf32> to vector<16x256xf32>
    %126 = arith.addf %124, %125 : vector<16x256xf32>
    %127 = arith.truncf %126 : vector<16x256xf32> to vector<16x256xbf16>
    %c0_37 = arith.constant 0 : index
    %c0_38 = arith.constant 0 : index
    %c0_39 = arith.constant 0 : index
    %128 = vector.load %arg10[%c0_37, %c0_38, %c0_39] : memref<1x256x256xbf16, #tpu.memory_space<vmem>>, vector<1x256x256xbf16>
    %129 = vector.shape_cast %128 : vector<1x256x256xbf16> to vector<256x256xbf16>
    %cst_40 = arith.constant dense<0.000000e+00> : vector<16x256xf32>
    %130 = tpu.matmul %127, %129, %cst_40 {dimension_numbers = #tpu.dot_dimension_numbers<[1], [0], [0], [1], [0, 0, 1, 1], [], []>} : vector<16x256xbf16>, vector<256x256xbf16>, vector<16x256xf32> -> vector<16x256xf32>
    %c0_41 = arith.constant 0 : index
    %c0_42 = arith.constant 0 : index
    %c0_43 = arith.constant 0 : index
    %131 = vector.load %arg11[%c0_41, %c0_42, %c0_43] : memref<1x1x256xf32, #tpu.memory_space<vmem>>, vector<1x1x256xf32>
    %132 = vector.shape_cast %131 : vector<1x1x256xf32> to vector<1x256xf32>
    %133 = vector.broadcast %132 : vector<1x256xf32> to vector<16x256xf32>
    %134 = arith.addf %130, %133 : vector<16x256xf32>
    %c0_44 = arith.constant 0 : index
    %c0_45 = arith.constant 0 : index
    %c0_46 = arith.constant 0 : index
    %135 = vector.load %arg12[%c0_44, %c0_45, %c0_46] : memref<1x256x512xbf16, #tpu.memory_space<vmem>>, vector<1x256x512xbf16>
    %136 = vector.shape_cast %135 : vector<1x256x512xbf16> to vector<256x512xbf16>
    %cst_47 = arith.constant dense<0.000000e+00> : vector<16x512xf32>
    %137 = tpu.matmul %6, %136, %cst_47 {dimension_numbers = #tpu.dot_dimension_numbers<[1], [0], [0], [1], [0, 0, 1, 1], [], []>} : vector<16x256xbf16>, vector<256x512xbf16>, vector<16x512xf32> -> vector<16x512xf32>
    %c0_48 = arith.constant 0 : index
    %c0_49 = arith.constant 0 : index
    %c0_50 = arith.constant 0 : index
    %138 = vector.load %arg13[%c0_48, %c0_49, %c0_50] : memref<1x1x512xf32, #tpu.memory_space<vmem>>, vector<1x1x512xf32>
    %139 = vector.shape_cast %138 : vector<1x1x512xf32> to vector<1x512xf32>
    %140 = vector.broadcast %139 : vector<1x512xf32> to vector<16x512xf32>
    %141 = arith.addf %137, %140 : vector<16x512xf32>
    %142 = vector.extract_strided_slice %141 {offsets = [0, 0], sizes = [16, 256], strides = [1, 1]} : vector<16x512xf32> to vector<16x256xf32>
    %143 = vector.extract_strided_slice %141 {offsets = [0, 256], sizes = [16, 256], strides = [1, 1]} : vector<16x512xf32> to vector<16x256xf32>
    %c0_51 = arith.constant 0 : index
    %c0_52 = arith.constant 0 : index
    %c0_53 = arith.constant 0 : index
    %144 = vector.load %arg14[%c0_51, %c0_52, %c0_53] : memref<1x256x256xbf16, #tpu.memory_space<vmem>>, vector<1x256x256xbf16>
    %145 = vector.shape_cast %144 : vector<1x256x256xbf16> to vector<256x256xbf16>
    %c0_54 = arith.constant 0 : index
    %c0_55 = arith.constant 0 : index
    %c0_56 = arith.constant 0 : index
    %146 = vector.load %arg15[%c0_54, %c0_55, %c0_56] : memref<1x1x256xf32, #tpu.memory_space<vmem>>, vector<1x1x256xf32>
    %147 = vector.shape_cast %146 : vector<1x1x256xf32> to vector<1x256xf32>
    %c0_57 = arith.constant 0 : index
    %c0_58 = arith.constant 0 : index
    %148 = vector.load %arg4[%c0_57, %c0_58] : memref<128x128xf32, #tpu.memory_space<vmem>>, vector<128x128xf32>
    %149 = vector.extract_strided_slice %134 {offsets = [0, 0], sizes = [16, 32], strides = [1, 1]} : vector<16x256xf32> to vector<16x32xf32>
    %150 = vector.extract_strided_slice %134 {offsets = [0, 32], sizes = [16, 32], strides = [1, 1]} : vector<16x256xf32> to vector<16x32xf32>
    %151 = vector.extract_strided_slice %134 {offsets = [0, 64], sizes = [16, 32], strides = [1, 1]} : vector<16x256xf32> to vector<16x32xf32>
    %152 = vector.extract_strided_slice %134 {offsets = [0, 96], sizes = [16, 32], strides = [1, 1]} : vector<16x256xf32> to vector<16x32xf32>
    %153 = vector.extract_strided_slice %134 {offsets = [0, 128], sizes = [16, 32], strides = [1, 1]} : vector<16x256xf32> to vector<16x32xf32>
    %154 = vector.extract_strided_slice %134 {offsets = [0, 160], sizes = [16, 32], strides = [1, 1]} : vector<16x256xf32> to vector<16x32xf32>
    %155 = vector.extract_strided_slice %134 {offsets = [0, 192], sizes = [16, 32], strides = [1, 1]} : vector<16x256xf32> to vector<16x32xf32>
    %156 = vector.extract_strided_slice %134 {offsets = [0, 224], sizes = [16, 32], strides = [1, 1]} : vector<16x256xf32> to vector<16x32xf32>
    %157 = tpu.concatenate %149, %150, %151, %152, %153, %154, %155, %156 in 0 : vector<16x32xf32>, vector<16x32xf32>, vector<16x32xf32>, vector<16x32xf32>, vector<16x32xf32>, vector<16x32xf32>, vector<16x32xf32>, vector<16x32xf32> -> vector<128x32xf32>
    %158 = arith.truncf %157 : vector<128x32xf32> to vector<128x32xbf16>
    %159 = vector.extract_strided_slice %142 {offsets = [0, 0], sizes = [16, 32], strides = [1, 1]} : vector<16x256xf32> to vector<16x32xf32>
    %160 = vector.extract_strided_slice %142 {offsets = [0, 32], sizes = [16, 32], strides = [1, 1]} : vector<16x256xf32> to vector<16x32xf32>
    %161 = vector.extract_strided_slice %142 {offsets = [0, 64], sizes = [16, 32], strides = [1, 1]} : vector<16x256xf32> to vector<16x32xf32>
    %162 = vector.extract_strided_slice %142 {offsets = [0, 96], sizes = [16, 32], strides = [1, 1]} : vector<16x256xf32> to vector<16x32xf32>
    %163 = vector.extract_strided_slice %142 {offsets = [0, 128], sizes = [16, 32], strides = [1, 1]} : vector<16x256xf32> to vector<16x32xf32>
    %164 = vector.extract_strided_slice %142 {offsets = [0, 160], sizes = [16, 32], strides = [1, 1]} : vector<16x256xf32> to vector<16x32xf32>
    %165 = vector.extract_strided_slice %142 {offsets = [0, 192], sizes = [16, 32], strides = [1, 1]} : vector<16x256xf32> to vector<16x32xf32>
    %166 = vector.extract_strided_slice %142 {offsets = [0, 224], sizes = [16, 32], strides = [1, 1]} : vector<16x256xf32> to vector<16x32xf32>
    %167 = tpu.concatenate %159, %160, %161, %162, %163, %164, %165, %166 in 0 : vector<16x32xf32>, vector<16x32xf32>, vector<16x32xf32>, vector<16x32xf32>, vector<16x32xf32>, vector<16x32xf32>, vector<16x32xf32>, vector<16x32xf32> -> vector<128x32xf32>
    %168 = arith.truncf %167 : vector<128x32xf32> to vector<128x32xbf16>
    %169 = vector.extract_strided_slice %143 {offsets = [0, 0], sizes = [16, 32], strides = [1, 1]} : vector<16x256xf32> to vector<16x32xf32>
    %170 = vector.extract_strided_slice %143 {offsets = [0, 32], sizes = [16, 32], strides = [1, 1]} : vector<16x256xf32> to vector<16x32xf32>
    %171 = vector.extract_strided_slice %143 {offsets = [0, 64], sizes = [16, 32], strides = [1, 1]} : vector<16x256xf32> to vector<16x32xf32>
    %172 = vector.extract_strided_slice %143 {offsets = [0, 96], sizes = [16, 32], strides = [1, 1]} : vector<16x256xf32> to vector<16x32xf32>
    %173 = vector.extract_strided_slice %143 {offsets = [0, 128], sizes = [16, 32], strides = [1, 1]} : vector<16x256xf32> to vector<16x32xf32>
    %174 = vector.extract_strided_slice %143 {offsets = [0, 160], sizes = [16, 32], strides = [1, 1]} : vector<16x256xf32> to vector<16x32xf32>
    %175 = vector.extract_strided_slice %143 {offsets = [0, 192], sizes = [16, 32], strides = [1, 1]} : vector<16x256xf32> to vector<16x32xf32>
    %176 = vector.extract_strided_slice %143 {offsets = [0, 224], sizes = [16, 32], strides = [1, 1]} : vector<16x256xf32> to vector<16x32xf32>
    %177 = tpu.concatenate %169, %170, %171, %172, %173, %174, %175, %176 in 0 : vector<16x32xf32>, vector<16x32xf32>, vector<16x32xf32>, vector<16x32xf32>, vector<16x32xf32>, vector<16x32xf32>, vector<16x32xf32>, vector<16x32xf32> -> vector<128x32xf32>
    %178 = arith.truncf %177 : vector<128x32xf32> to vector<128x32xbf16>
    %cst_59 = arith.constant dense<0.000000e+00> : vector<128x128xf32>
    %179 = tpu.matmul %158, %168, %cst_59 {dimension_numbers = #tpu.dot_dimension_numbers<[1], [1], [0], [0], [0, 0, 1, 0], [], []>} : vector<128x32xbf16>, vector<128x32xbf16>, vector<128x128xf32> -> vector<128x128xf32>
    %180 = arith.addf %179, %148 : vector<128x128xf32>
    %cst_60 = arith.constant dense<0xFF800000> : vector<128xf32>
    %181 = vector.multi_reduction <maximumf>, %180, %cst_60 [1] : vector<128x128xf32> to vector<128xf32>
    %182 = vector.shape_cast %181 : vector<128xf32> to vector<128x1xf32>
    %183 = vector.broadcast %182 : vector<128x1xf32> to vector<128x128xf32>
    %184 = arith.subf %180, %183 : vector<128x128xf32>
    %185 = math.exp %184 : vector<128x128xf32>
    %cst_61 = arith.constant dense<0.000000e+00> : vector<128xf32>
    %186 = vector.multi_reduction <add>, %185, %cst_61 [1] : vector<128x128xf32> to vector<128xf32>
    %187 = vector.shape_cast %186 : vector<128xf32> to vector<128x1xf32>
    %188 = tpu.reciprocal %187 {approx = true} : vector<128x1xf32> -> vector<128x1xf32>
    %189 = vector.broadcast %188 : vector<128x1xf32> to vector<128x128xf32>
    %190 = arith.mulf %185, %189 : vector<128x128xf32>
    %191 = arith.truncf %190 : vector<128x128xf32> to vector<128x128xbf16>
    %cst_62 = arith.constant dense<0.000000e+00> : vector<128x32xf32>
    %192 = tpu.matmul %191, %178, %cst_62 {dimension_numbers = #tpu.dot_dimension_numbers<[1], [0], [0], [1], [0, 0, 1, 1], [], []>} : vector<128x128xbf16>, vector<128x32xbf16>, vector<128x32xf32> -> vector<128x32xf32>
    %193 = vector.extract_strided_slice %192 {offsets = [0, 0], sizes = [16, 32], strides = [1, 1]} : vector<128x32xf32> to vector<16x32xf32>
    %194 = vector.extract_strided_slice %192 {offsets = [16, 0], sizes = [16, 32], strides = [1, 1]} : vector<128x32xf32> to vector<16x32xf32>
    %195 = vector.extract_strided_slice %192 {offsets = [32, 0], sizes = [16, 32], strides = [1, 1]} : vector<128x32xf32> to vector<16x32xf32>
    %196 = vector.extract_strided_slice %192 {offsets = [48, 0], sizes = [16, 32], strides = [1, 1]} : vector<128x32xf32> to vector<16x32xf32>
    %197 = vector.extract_strided_slice %192 {offsets = [64, 0], sizes = [16, 32], strides = [1, 1]} : vector<128x32xf32> to vector<16x32xf32>
    %198 = vector.extract_strided_slice %192 {offsets = [80, 0], sizes = [16, 32], strides = [1, 1]} : vector<128x32xf32> to vector<16x32xf32>
    %199 = vector.extract_strided_slice %192 {offsets = [96, 0], sizes = [16, 32], strides = [1, 1]} : vector<128x32xf32> to vector<16x32xf32>
    %200 = vector.extract_strided_slice %192 {offsets = [112, 0], sizes = [16, 32], strides = [1, 1]} : vector<128x32xf32> to vector<16x32xf32>
    %201 = tpu.concatenate %193, %194, %195, %196, %197, %198, %199, %200 in 1 : vector<16x32xf32>, vector<16x32xf32>, vector<16x32xf32>, vector<16x32xf32>, vector<16x32xf32>, vector<16x32xf32>, vector<16x32xf32>, vector<16x32xf32> -> vector<16x256xf32>
    %202 = arith.truncf %201 : vector<16x256xf32> to vector<16x256xbf16>
    %cst_63 = arith.constant dense<0.000000e+00> : vector<16x256xf32>
    %203 = tpu.matmul %202, %145, %cst_63 {dimension_numbers = #tpu.dot_dimension_numbers<[1], [0], [0], [1], [0, 0, 1, 1], [], []>} : vector<16x256xbf16>, vector<256x256xbf16>, vector<16x256xf32> -> vector<16x256xf32>
    %204 = vector.broadcast %147 : vector<1x256xf32> to vector<16x256xf32>
    %205 = arith.addf %203, %204 : vector<16x256xf32>
    %206 = arith.addf %104, %205 : vector<16x256xf32>
    %207 = vector.extract_strided_slice %8 {offsets = [4, 0], sizes = [1, 256], strides = [1, 1]} : vector<6x256xf32> to vector<1x256xf32>
    %208 = vector.extract_strided_slice %8 {offsets = [5, 0], sizes = [1, 256], strides = [1, 1]} : vector<6x256xf32> to vector<1x256xf32>
    %cst_64 = arith.constant dense<0.000000e+00> : vector<16xf32>
    %209 = vector.multi_reduction <add>, %206, %cst_64 [1] : vector<16x256xf32> to vector<16xf32>
    %210 = vector.shape_cast %209 : vector<16xf32> to vector<16x1xf32>
    %cst_65 = arith.constant 2.560000e+02 : f32
    %211 = vector.broadcast %cst_65 : f32 to vector<16x1xf32>
    %212 = arith.divf %210, %211 : vector<16x1xf32>
    %213 = vector.broadcast %212 : vector<16x1xf32> to vector<16x256xf32>
    %214 = arith.subf %206, %213 : vector<16x256xf32>
    %215 = arith.mulf %214, %214 : vector<16x256xf32>
    %cst_66 = arith.constant dense<0.000000e+00> : vector<16xf32>
    %216 = vector.multi_reduction <add>, %215, %cst_66 [1] : vector<16x256xf32> to vector<16xf32>
    %217 = vector.shape_cast %216 : vector<16xf32> to vector<16x1xf32>
    %cst_67 = arith.constant 2.560000e+02 : f32
    %218 = vector.broadcast %cst_67 : f32 to vector<16x1xf32>
    %219 = arith.divf %217, %218 : vector<16x1xf32>
    %cst_68 = arith.constant 9.99999974E-6 : f32
    %220 = vector.broadcast %cst_68 : f32 to vector<16x1xf32>
    %221 = arith.addf %219, %220 : vector<16x1xf32>
    %222 = math.rsqrt %221 : vector<16x1xf32>
    %223 = vector.broadcast %222 : vector<16x1xf32> to vector<16x256xf32>
    %224 = arith.mulf %214, %223 : vector<16x256xf32>
    %225 = vector.broadcast %207 : vector<1x256xf32> to vector<16x256xf32>
    %226 = arith.mulf %224, %225 : vector<16x256xf32>
    %227 = vector.broadcast %208 : vector<1x256xf32> to vector<16x256xf32>
    %228 = arith.addf %226, %227 : vector<16x256xf32>
    %229 = arith.truncf %228 : vector<16x256xf32> to vector<16x256xbf16>
    %c0_69 = arith.constant 0 : index
    %c0_70 = arith.constant 0 : index
    %c0_71 = arith.constant 0 : index
    %230 = vector.load %arg16[%c0_69, %c0_70, %c0_71] : memref<1x256x128xbf16, #tpu.memory_space<vmem>>, vector<1x256x128xbf16>
    %231 = vector.shape_cast %230 : vector<1x256x128xbf16> to vector<256x128xbf16>
    %cst_72 = arith.constant dense<0.000000e+00> : vector<16x128xf32>
    %232 = tpu.matmul %229, %231, %cst_72 {dimension_numbers = #tpu.dot_dimension_numbers<[1], [0], [0], [1], [0, 0, 1, 1], [], []>} : vector<16x256xbf16>, vector<256x128xbf16>, vector<16x128xf32> -> vector<16x128xf32>
    %c0_73 = arith.constant 0 : index
    %c0_74 = arith.constant 0 : index
    %c0_75 = arith.constant 0 : index
    %233 = vector.load %arg17[%c0_73, %c0_74, %c0_75] : memref<1x1x128xf32, #tpu.memory_space<vmem>>, vector<1x1x128xf32>
    %234 = vector.shape_cast %233 : vector<1x1x128xf32> to vector<1x128xf32>
    %235 = vector.broadcast %234 : vector<1x128xf32> to vector<16x128xf32>
    %236 = arith.addf %232, %235 : vector<16x128xf32>
    %cst_76 = arith.constant 5.000000e-01 : f32
    %237 = vector.broadcast %cst_76 : f32 to vector<16x128xf32>
    %238 = arith.mulf %237, %236 : vector<16x128xf32>
    %cst_77 = arith.constant 0.707106769 : f32
    %239 = vector.broadcast %cst_77 : f32 to vector<16x128xf32>
    %240 = arith.mulf %236, %239 : vector<16x128xf32>
    %241 = math.absf %240 : vector<16x128xf32>
    %cst_78 = arith.constant 0.327591091 : f32
    %242 = vector.broadcast %cst_78 : f32 to vector<16x128xf32>
    %243 = arith.mulf %242, %241 : vector<16x128xf32>
    %cst_79 = arith.constant 1.000000e+00 : f32
    %244 = vector.broadcast %cst_79 : f32 to vector<16x128xf32>
    %245 = arith.addf %244, %243 : vector<16x128xf32>
    %246 = tpu.reciprocal %245 {approx = true} : vector<16x128xf32> -> vector<16x128xf32>
    %cst_80 = arith.constant 1.06140542 : f32
    %247 = vector.broadcast %cst_80 : f32 to vector<16x128xf32>
    %248 = arith.mulf %247, %246 : vector<16x128xf32>
    %cst_81 = arith.constant -1.45315206 : f32
    %249 = vector.broadcast %cst_81 : f32 to vector<16x128xf32>
    %250 = arith.addf %248, %249 : vector<16x128xf32>
    %251 = arith.mulf %250, %246 : vector<16x128xf32>
    %cst_82 = arith.constant 1.42141378 : f32
    %252 = vector.broadcast %cst_82 : f32 to vector<16x128xf32>
    %253 = arith.addf %251, %252 : vector<16x128xf32>
    %254 = arith.mulf %253, %246 : vector<16x128xf32>
    %cst_83 = arith.constant -0.284496725 : f32
    %255 = vector.broadcast %cst_83 : f32 to vector<16x128xf32>
    %256 = arith.addf %254, %255 : vector<16x128xf32>
    %257 = arith.mulf %256, %246 : vector<16x128xf32>
    %cst_84 = arith.constant 0.254829586 : f32
    %258 = vector.broadcast %cst_84 : f32 to vector<16x128xf32>
    %259 = arith.addf %257, %258 : vector<16x128xf32>
    %260 = arith.mulf %259, %246 : vector<16x128xf32>
    %cst_85 = arith.constant 0.000000e+00 : f32
    %261 = vector.broadcast %cst_85 : f32 to vector<16x128xf32>
    %262 = arith.subf %261, %241 : vector<16x128xf32>
    %263 = arith.mulf %262, %241 : vector<16x128xf32>
    %264 = math.exp %263 : vector<16x128xf32>
    %265 = arith.mulf %260, %264 : vector<16x128xf32>
    %cst_86 = arith.constant 1.000000e+00 : f32
    %266 = vector.broadcast %cst_86 : f32 to vector<16x128xf32>
    %267 = arith.subf %266, %265 : vector<16x128xf32>
    %cst_87 = arith.constant 0.000000e+00 : f32
    %268 = vector.broadcast %cst_87 : f32 to vector<16x128xf32>
    %269 = arith.cmpf oge, %240, %268 : vector<16x128xf32>
    %cst_88 = arith.constant 0.000000e+00 : f32
    %270 = vector.broadcast %cst_88 : f32 to vector<16x128xf32>
    %271 = arith.subf %270, %267 : vector<16x128xf32>
    %272 = arith.select %269, %267, %271 : vector<16x128xi1>, vector<16x128xf32>
    %cst_89 = arith.constant 1.000000e+00 : f32
    %273 = vector.broadcast %cst_89 : f32 to vector<16x128xf32>
    %274 = arith.addf %273, %272 : vector<16x128xf32>
    %275 = arith.mulf %238, %274 : vector<16x128xf32>
    %276 = arith.truncf %275 : vector<16x128xf32> to vector<16x128xbf16>
    %c0_90 = arith.constant 0 : index
    %c0_91 = arith.constant 0 : index
    %c0_92 = arith.constant 0 : index
    %277 = vector.load %arg18[%c0_90, %c0_91, %c0_92] : memref<1x128x256xbf16, #tpu.memory_space<vmem>>, vector<1x128x256xbf16>
    %278 = vector.shape_cast %277 : vector<1x128x256xbf16> to vector<128x256xbf16>
    %cst_93 = arith.constant dense<0.000000e+00> : vector<16x256xf32>
    %279 = tpu.matmul %276, %278, %cst_93 {dimension_numbers = #tpu.dot_dimension_numbers<[1], [0], [0], [1], [0, 0, 1, 1], [], []>} : vector<16x128xbf16>, vector<128x256xbf16>, vector<16x256xf32> -> vector<16x256xf32>
    %c0_94 = arith.constant 0 : index
    %c0_95 = arith.constant 0 : index
    %c0_96 = arith.constant 0 : index
    %280 = vector.load %arg19[%c0_94, %c0_95, %c0_96] : memref<1x1x256xf32, #tpu.memory_space<vmem>>, vector<1x1x256xf32>
    %281 = vector.shape_cast %280 : vector<1x1x256xf32> to vector<1x256xf32>
    %282 = vector.broadcast %281 : vector<1x256xf32> to vector<16x256xf32>
    %283 = arith.addf %279, %282 : vector<16x256xf32>
    %284 = arith.addf %206, %283 : vector<16x256xf32>
    %c0_97 = arith.constant 0 : index
    %c0_98 = arith.constant 0 : index
    %285 = vector.load %arg21[%c0_97, %c0_98] : memref<16x256xf32, #tpu.memory_space<vmem>>, vector<16x256xf32>
    tpu.vector_store %arg21[%c0_97, %c0_98], %284 {strides = array<i32>} : memref<16x256xf32, #tpu.memory_space<vmem>>, vector<16x256xf32>,
    %c1_i32 = arith.constant 1 : i32
    %286 = arith.cmpi eq, %arg0, %c1_i32 : i32
    %287 = arith.extui %286 : i1 to i32
    %c0_i32_99 = arith.constant 0 : i32
    %288 = arith.cmpi ne, %287, %c0_i32_99 : i32
    scf.if %288 {
      %289 = vector.shape_cast %284 : vector<16x256xf32> to vector<2x8x256xf32>
      %c0_100 = arith.constant 0 : index
      %c0_101 = arith.constant 0 : index
      %c0_102 = arith.constant 0 : index
      %290 = vector.load %arg20[%c0_100, %c0_101, %c0_102] : memref<2x8x256xf32, #tpu.memory_space<vmem>>, vector<2x8x256xf32>
      tpu.vector_store %arg20[%c0_100, %c0_101, %c0_102], %289 {strides = array<i32>} : memref<2x8x256xf32, #tpu.memory_space<vmem>>, vector<2x8x256xf32>,
    } else {
    }
    return
  }
  func.func @transform_0(%arg0: i32) -> (i32, i32, i32) {
    %c0_i32 = arith.constant 0 : i32
    %c0_i32_0 = arith.constant 0 : i32
    %c0_i32_1 = arith.constant 0 : i32
    %c0_i32_2 = arith.constant 0 : i32
    return %c0_i32, %c0_i32_0, %c0_i32_1 : i32, i32, i32
  }
  func.func @transform_1(%arg0: i32) -> (i32, i32, i32) {
    %c0_i32 = arith.constant 0 : i32
    %c0_i32_0 = arith.constant 0 : i32
    %c0_i32_1 = arith.constant 0 : i32
    %c0_i32_2 = arith.constant 0 : i32
    return %c0_i32, %c0_i32_0, %c0_i32_1 : i32, i32, i32
  }
  func.func @transform_2(%arg0: i32) -> (i32, i32) {
    %c0_i32 = arith.constant 0 : i32
    %c0_i32_0 = arith.constant 0 : i32
    %c0_i32_1 = arith.constant 0 : i32
    return %c0_i32, %c0_i32_0 : i32, i32
  }
  func.func @transform_3(%arg0: i32) -> (i32, i32) {
    %c0_i32 = arith.constant 0 : i32
    %c0_i32_0 = arith.constant 0 : i32
    %c0_i32_1 = arith.constant 0 : i32
    return %c0_i32, %c0_i32_0 : i32, i32
  }
  func.func @transform_4(%arg0: i32) -> (i32, i32, i32) {
    %c0_i32 = arith.constant 0 : i32
    %c0_i32_0 = arith.constant 0 : i32
    %c0_i32_1 = arith.constant 0 : i32
    return %arg0, %c0_i32, %c0_i32_0 : i32, i32, i32
  }
  func.func @transform_5(%arg0: i32) -> (i32, i32, i32) {
    %c0_i32 = arith.constant 0 : i32
    %c0_i32_0 = arith.constant 0 : i32
    %c0_i32_1 = arith.constant 0 : i32
    return %arg0, %c0_i32, %c0_i32_0 : i32, i32, i32
  }
  func.func @transform_6(%arg0: i32) -> (i32, i32, i32) {
    %c0_i32 = arith.constant 0 : i32
    %c0_i32_0 = arith.constant 0 : i32
    %c0_i32_1 = arith.constant 0 : i32
    return %arg0, %c0_i32, %c0_i32_0 : i32, i32, i32
  }
  func.func @transform_7(%arg0: i32) -> (i32, i32, i32) {
    %c0_i32 = arith.constant 0 : i32
    %c0_i32_0 = arith.constant 0 : i32
    %c0_i32_1 = arith.constant 0 : i32
    return %arg0, %c0_i32, %c0_i32_0 : i32, i32, i32
  }
  func.func @transform_8(%arg0: i32) -> (i32, i32, i32) {
    %c0_i32 = arith.constant 0 : i32
    %c0_i32_0 = arith.constant 0 : i32
    %c0_i32_1 = arith.constant 0 : i32
    return %arg0, %c0_i32, %c0_i32_0 : i32, i32, i32
  }
  func.func @transform_9(%arg0: i32) -> (i32, i32, i32) {
    %c0_i32 = arith.constant 0 : i32
    %c0_i32_0 = arith.constant 0 : i32
    %c0_i32_1 = arith.constant 0 : i32
    return %arg0, %c0_i32, %c0_i32_0 : i32, i32, i32
  }
  func.func @transform_10(%arg0: i32) -> (i32, i32, i32) {
    %c0_i32 = arith.constant 0 : i32
    %c0_i32_0 = arith.constant 0 : i32
    %c0_i32_1 = arith.constant 0 : i32
    return %arg0, %c0_i32, %c0_i32_0 : i32, i32, i32
  }
  func.func @transform_11(%arg0: i32) -> (i32, i32, i32) {
    %c0_i32 = arith.constant 0 : i32
    %c0_i32_0 = arith.constant 0 : i32
    %c0_i32_1 = arith.constant 0 : i32
    return %arg0, %c0_i32, %c0_i32_0 : i32, i32, i32
  }
  func.func @transform_12(%arg0: i32) -> (i32, i32, i32) {
    %c0_i32 = arith.constant 0 : i32
    %c0_i32_0 = arith.constant 0 : i32
    %c0_i32_1 = arith.constant 0 : i32
    return %arg0, %c0_i32, %c0_i32_0 : i32, i32, i32
  }
  func.func @transform_13(%arg0: i32) -> (i32, i32, i32) {
    %c0_i32 = arith.constant 0 : i32
    %c0_i32_0 = arith.constant 0 : i32
    %c0_i32_1 = arith.constant 0 : i32
    return %arg0, %c0_i32, %c0_i32_0 : i32, i32, i32
  }
  func.func @transform_14(%arg0: i32) -> (i32, i32, i32) {
    %c0_i32 = arith.constant 0 : i32
    %c0_i32_0 = arith.constant 0 : i32
    %c0_i32_1 = arith.constant 0 : i32
    return %arg0, %c0_i32, %c0_i32_0 : i32, i32, i32
  }
  func.func @transform_15(%arg0: i32) -> (i32, i32, i32) {
    %c0_i32 = arith.constant 0 : i32
    %c0_i32_0 = arith.constant 0 : i32
    %c0_i32_1 = arith.constant 0 : i32
    return %arg0, %c0_i32, %c0_i32_0 : i32, i32, i32
  }
  func.func @transform_16(%arg0: i32) -> (i32, i32, i32) {
    %c0_i32 = arith.constant 0 : i32
    %c0_i32_0 = arith.constant 0 : i32
    %c0_i32_1 = arith.constant 0 : i32
    return %arg0, %c0_i32, %c0_i32_0 : i32, i32, i32
  }
  func.func @transform_17(%arg0: i32) -> (i32, i32, i32) {
    %c0_i32 = arith.constant 0 : i32
    %c0_i32_0 = arith.constant 0 : i32
    %c0_i32_1 = arith.constant 0 : i32
    return %arg0, %c0_i32, %c0_i32_0 : i32, i32, i32
  }
  func.func @transform_18(%arg0: i32) -> (i32, i32, i32) {
    %c0_i32 = arith.constant 0 : i32
    %c0_i32_0 = arith.constant 0 : i32
    %c0_i32_1 = arith.constant 0 : i32
    return %arg0, %c0_i32, %c0_i32_0 : i32, i32, i32
  }
  func.func @transform_19(%arg0: i32) -> (i32, i32, i32) {
    %c0_i32 = arith.constant 0 : i32
    %c0_i32_0 = arith.constant 0 : i32
    %c0_i32_1 = arith.constant 0 : i32
    %c0_i32_2 = arith.constant 0 : i32
    return %c0_i32, %c0_i32_0, %c0_i32_1 : i32, i32, i32
  }
}

</mosaic_0001>

<llo_original>
// kernel: tpu_custom_call.1
$region0: #{tpu_custom_call.1}
  #allocation0 [shape = 'u32[]', space=smem, size = 0x4, offset = 0x4, fixed_abs, tag = 'smem constant byte address 0x4 - core index']
  #allocation1 [shape = 'u32[144,128]{1,0:T(1,128)}', space=vmem, size = 0x12000, scoped, tag = 'internal scratch']
  #allocation2 [shape = 'f32[16,256]{1,0:T(8,128)}', space=vmem, size = 0x4000, scoped, tag = 'scratch operand']
  %s0 = inlined_call_operand.vmem [shape: f32[2,8,256], index: 0, kind: input, shape index: {}]
  %s1 = inlined_call_operand.hbm [shape: f32[2,8,256], index: 1, kind: input, shape index: {}]
  %s2 = inlined_call_operand.hbm [shape: f32[128,128], index: 2, kind: input, shape index: {}]
  %s3 = inlined_call_operand.hbm [shape: f32[128,128], index: 3, kind: input, shape index: {}]
  %s4 = inlined_call_operand.vmem [shape: f32[2,6,256], index: 4, kind: input, shape index: {}]
  %s5 = inlined_call_operand.hbm [shape: bf16[2,256,768], index: 5, kind: input, shape index: {}]
  %s6 = inlined_call_operand.vmem [shape: f32[2,1,768], index: 6, kind: input, shape index: {}]
  %s7 = inlined_call_operand.hbm [shape: bf16[2,256,256], index: 7, kind: input, shape index: {}]
  %s8 = inlined_call_operand.vmem [shape: f32[2,1,256], index: 8, kind: input, shape index: {}]
  %s9 = inlined_call_operand.hbm [shape: bf16[2,256,256], index: 9, kind: input, shape index: {}]
  %s10 = inlined_call_operand.vmem [shape: f32[2,1,256], index: 10, kind: input, shape index: {}]
  %s11 = inlined_call_operand.hbm [shape: bf16[2,256,512], index: 11, kind: input, shape index: {}]
  %s12 = inlined_call_operand.vmem [shape: f32[2,1,512], index: 12, kind: input, shape index: {}]
  %s13 = inlined_call_operand.hbm [shape: bf16[2,256,256], index: 13, kind: input, shape index: {}]
  %s14 = inlined_call_operand.vmem [shape: f32[2,1,256], index: 14, kind: input, shape index: {}]
  %s15 = inlined_call_operand.hbm [shape: bf16[2,256,128], index: 15, kind: input, shape index: {}]
  %s16 = inlined_call_operand.vmem [shape: f32[2,1,128], index: 16, kind: input, shape index: {}]
  %s17 = inlined_call_operand.hbm [shape: bf16[2,128,256], index: 17, kind: input, shape index: {}]
  %s18 = inlined_call_operand.vmem [shape: f32[2,1,256], index: 18, kind: input, shape index: {}]
  %s19 = inlined_call_operand.hbm [shape: f32[2,8,256], index: 19, kind: output, shape index: {}]
  %s20 = sld [smem:[#allocation0]]
  $region157: #{tpu_custom_call.1} parent=0
    _
  %s22 = ssub.s32 1, %s20
  %s23 = scalar_select 0, %s22, %s20
  $region1: #{tpu_custom_call.1} parent=0
    #allocation3 [shape = 'u8[16384]{0}', space=vmem, size = 0x4000, scoped, tag = 'input window, operand 1, single buffered']
    #allocation4 [shape = 's32[2]{0}', space=sflag, size = 0x8, scoped, tag = 'scoped memory for tpu_custom_call.1']
    #allocation5 [shape = 's32[2]{0}', space=sflag, size = 0x8, scoped, tag = 'scoped memory for tpu_custom_call.1']
    #allocation6 [shape = 'u8[65536]{0}', space=vmem, size = 0x10000, scoped, tag = 'input window, operand 2, single buffered']
    #allocation7 [shape = 's32[1]{0}', space=sflag, size = 0x4, scoped, tag = 'scoped memory for tpu_custom_call.1']
    #allocation8 [shape = 'u8[65536]{0}', space=vmem, size = 0x10000, scoped, tag = 'input window, operand 3, single buffered']
    #allocation9 [shape = 'u8[786432]{0}', space=vmem, size = 0xc0000, scoped, tag = 'input window, operand 5']
    #allocation10 [shape = 's32[2]{0}', space=sflag, size = 0x8, scoped, tag = 'scoped memory for tpu_custom_call.1']
    #allocation11 [shape = 'u8[262144]{0}', space=vmem, size = 0x40000, scoped, tag = 'input window, operand 7']
    #allocation12 [shape = 'u8[262144]{0}', space=vmem, size = 0x40000, scoped, tag = 'input window, operand 9']
    #allocation13 [shape = 's32[2]{0}', space=sflag, size = 0x8, scoped, tag = 'scoped memory for tpu_custom_call.1']
    #allocation14 [shape = 'u8[524288]{0}', space=vmem, size = 0x80000, scoped, tag = 'input window, operand 11']
    #allocation15 [shape = 'u8[262144]{0}', space=vmem, size = 0x40000, scoped, tag = 'input window, operand 13']
    #allocation16 [shape = 's32[2]{0}', space=sflag, size = 0x8, scoped, tag = 'scoped memory for tpu_custom_call.1']
    #allocation17 [shape = 'u8[131072]{0}', space=vmem, size = 0x20000, scoped, tag = 'input window, operand 15']
    #allocation18 [shape = 'u8[131072]{0}', space=vmem, size = 0x20000, scoped, tag = 'input window, operand 17']
    #allocation19 [shape = 's32[2]{0}', space=sflag, size = 0x8, scoped, tag = 'scoped memory for tpu_custom_call.1']
    #allocation20 [shape = 'u8[16384]{0}', space=vmem, size = 0x4000, scoped, tag = 'output window, operand 0, single buffered']
    %24 = vsyncpa [#allocation4], 0
    %25 = vsyncpa [#allocation7], 0
    %26 = vsyncpa [#allocation10], 0
    %s27 = scalar_lea.sflag [#allocation10], 1
    %28 = vsyncpa %s27, 0
    %29 = vsyncpa [#allocation13], 0
    %s30 = scalar_lea.sflag [#allocation13], 1
    %31 = vsyncpa %s30, 0
    %32 = vsyncpa [#allocation16], 0
    %s33 = scalar_lea.sflag [#allocation16], 1
    %34 = vsyncpa %s33, 0
    %35 = vsyncpa [#allocation19], 0
    %s36 = scalar_lea.sflag [#allocation19], 1
    %37 = vsyncpa %s36, 0
    %38 = vsyncpa [#allocation5], 0
    loop: start=0, step=1, limit=4
    $region2: #{tpu_custom_call.1} parent=1 // loop_pre_header
      _
    $region3: #{tpu_custom_call.1} parent=1 // loop_header
      %s40 = sphi 0, %s44
      %p41 = scmp.ge.s32.totalorder %s40, 4
      %s48 = sphi 0, %s48
      %s50 = sphi 0, %s48
      %s51 = sphi 0, %s50
      %s65 = sphi 0, %s51
      %s69 = sphi 0, %s69
      %s71 = sphi 0, %s69
      %s72 = sphi 0, %s71
      %s86 = sphi 0, %s72
      %s90 = sphi 0, %s90
      %s92 = sphi 0, %s90
      %s93 = sphi 0, %s92
      %s107 = sphi 0, %s93
      %s111 = sphi 0, %s111
      %s113 = sphi 0, %s111
      %s114 = sphi 0, %s113
      %s128 = sphi 0, %s114
      %s134 = sphi 0, %s136
      %s137 = sphi 0, %s134
      %s138 = sphi 0, %s137
      %s154 = sphi 0, %s138
      %s160 = sphi 0, %s162
      %s163 = sphi 0, %s160
      %s164 = sphi 0, %s163
      %s180 = sphi 0, %s164
      %s186 = sphi 0, %s188
      %s189 = sphi 0, %s186
      %s190 = sphi 0, %s189
      %s206 = sphi 0, %s190
      %s212 = sphi 0, %s214
      %s215 = sphi 0, %s212
      %s216 = sphi 0, %s215
      %s232 = sphi 0, %s216
      %s238 = sphi 0, %s240
      %s241 = sphi 0, %s238
      %s242 = sphi 0, %s241
      %s258 = sphi 0, %s242
      %s264 = sphi 0, %s266
      %s267 = sphi 0, %s264
      %s268 = sphi 0, %s267
      %s284 = sphi 0, %s268
      %s290 = sphi 0, %s292
      %s293 = sphi 0, %s290
      %s294 = sphi 0, %s293
      %s310 = sphi 0, %s294
      %s316 = sphi 0, %s318
      %s319 = sphi 0, %s316
      %s320 = sphi 0, %s319
      %s336 = sphi 0, %s320
      %s342 = sphi 0, %s344
      %s345 = sphi 0, %s342
      %s346 = sphi 0, %s345
      %s362 = sphi 0, %s346
      %s368 = sphi 0, %s370
      %s371 = sphi 0, %s368
      %s372 = sphi 0, %s371
      %s388 = sphi 0, %s372
      %s394 = sphi 0, %s396
      %s397 = sphi 0, %s394
      %s398 = sphi 0, %s397
      %s414 = sphi 0, %s398
      %s420 = sphi 0, %s422
      %s423 = sphi 0, %s420
      %s424 = sphi 0, %s423
      %s440 = sphi 0, %s424
      %s446 = sphi 0, %s448
      %s449 = sphi 0, %s446
      %s450 = sphi 0, %s449
      %s466 = sphi 0, %s450
      %s472 = sphi 0, %s474
      %s475 = sphi 0, %s472
      %s476 = sphi 0, %s475
      %s492 = sphi 0, %s476
      %s498 = sphi 0, %s500
      %s501 = sphi 0, %s498
      %s502 = sphi 0, %s501
      %s518 = sphi 0, %s502
      %s522 = sphi 0, %s522
      %s524 = sphi 0, %s522
      %s525 = sphi 0, %s524
      %s539 = sphi 0, %s525
    $region4: #{tpu_custom_call.1} parent=1 // loop_header_branch
      %43 = sbr.rel (%p41) target = $region8
    $region5: #{tpu_custom_call.1} parent=1 // loop_body
      %s45 = ssub.s32 %s40, 1
      %s46 = ssub.s32 %s40, 2
      %s47 = sadd.s32 %s40, 1
      %s49 = sadd.s32 %s48, 1
      %p52 = scmp.eq.s32.totalorder %s40, 1
      %p53 = scmp.ne.s32.totalorder %s48, %s50
      %p54 = scmp.eq.s32.totalorder %s40, 0
      %p55 = por %p53, %p54
      %p56 = scmp.ne.s32.totalorder %s48, %s50
      %p57 = scmp.eq.s32.totalorder %s45, 1
      %p58 = por %p56, %p57
      %p59 = scmp.ne.s32.totalorder %s50, %s51
      %p60 = scmp.eq.s32.totalorder %s45, 0
      %p61 = por %p59, %p60
      %p62 = scmp.ne.s32.totalorder %s50, %s51
      %p63 = scmp.eq.s32.totalorder %s46, 1
      %p64 = por %p62, %p63
      %p66 = scmp.ne.s32.totalorder %s51, %s65
      %p67 = scmp.eq.s32.totalorder %s46, 0
      %p68 = por %p66, %p67
      %s70 = sadd.s32 %s69, 1
      %p73 = scmp.eq.s32.totalorder %s40, 1
      %p74 = scmp.ne.s32.totalorder %s69, %s71
      %p75 = scmp.eq.s32.totalorder %s40, 0
      %p76 = por %p74, %p75
      %p77 = scmp.ne.s32.totalorder %s69, %s71
      %p78 = scmp.eq.s32.totalorder %s45, 1
      %p79 = por %p77, %p78
      %p80 = scmp.ne.s32.totalorder %s71, %s72
      %p81 = scmp.eq.s32.totalorder %s45, 0
      %p82 = por %p80, %p81
      %p83 = scmp.ne.s32.totalorder %s71, %s72
      %p84 = scmp.eq.s32.totalorder %s46, 1
      %p85 = por %p83, %p84
      %p87 = scmp.ne.s32.totalorder %s72, %s86
      %p88 = scmp.eq.s32.totalorder %s46, 0
      %p89 = por %p87, %p88
      %s91 = sadd.s32 %s90, 1
      %p94 = scmp.eq.s32.totalorder %s40, 1
      %p95 = scmp.ne.s32.totalorder %s90, %s92
      %p96 = scmp.eq.s32.totalorder %s40, 0
      %p97 = por %p95, %p96
      %p98 = scmp.ne.s32.totalorder %s90, %s92
      %p99 = scmp.eq.s32.totalorder %s45, 1
      %p100 = por %p98, %p99
      %p101 = scmp.ne.s32.totalorder %s92, %s93
      %p102 = scmp.eq.s32.totalorder %s45, 0
      %p103 = por %p101, %p102
      %p104 = scmp.ne.s32.totalorder %s92, %s93
      %p105 = scmp.eq.s32.totalorder %s46, 1
      %p106 = por %p104, %p105
      %p108 = scmp.ne.s32.totalorder %s93, %s107
      %p109 = scmp.eq.s32.totalorder %s46, 0
      %p110 = por %p108, %p109
      %s112 = sadd.s32 %s111, 1
      %p115 = scmp.eq.s32.totalorder %s40, 1
      %p116 = scmp.ne.s32.totalorder %s111, %s113
      %p117 = scmp.eq.s32.totalorder %s40, 0
      %p118 = por %p116, %p117
      %p119 = scmp.ne.s32.totalorder %s111, %s113
      %p120 = scmp.eq.s32.totalorder %s45, 1
      %p121 = por %p119, %p120
      %p122 = scmp.ne.s32.totalorder %s113, %s114
      %p123 = scmp.eq.s32.totalorder %s45, 0
      %p124 = por %p122, %p123
      %p125 = scmp.ne.s32.totalorder %s113, %s114
      %p126 = scmp.eq.s32.totalorder %s46, 1
      %p127 = por %p125, %p126
      %p129 = scmp.ne.s32.totalorder %s114, %s128
      %p130 = scmp.eq.s32.totalorder %s46, 0
      %p131 = por %p129, %p130
      %s132 = ssub.s32 %s40, %s47
      %p133 = scmp.eq.s32.totalorder %s132, 0
      %s135 = sadd.s32 %s134, 1
      %s136 = scalar_select %p133, %s134, %s135
      %p139 = pneg %p133
      %p140 = scmp.eq.s32.totalorder %s40, 1
      %p141 = por %p139, %p140
      %p142 = scmp.ne.s32.totalorder %s134, %s137
      %p143 = scmp.eq.s32.totalorder %s40, 0
      %p144 = por %p142, %p143
      %p145 = scmp.ne.s32.totalorder %s134, %s137
      %p146 = scmp.eq.s32.totalorder %s45, 1
      %p147 = por %p145, %p146
      %p148 = scmp.ne.s32.totalorder %s137, %s138
      %p149 = scmp.eq.s32.totalorder %s45, 0
      %p150 = por %p148, %p149
      %p151 = scmp.ne.s32.totalorder %s137, %s138
      %p152 = scmp.eq.s32.totalorder %s46, 1
      %p153 = por %p151, %p152
      %p155 = scmp.ne.s32.totalorder %s138, %s154
      %p156 = scmp.eq.s32.totalorder %s46, 0
      %p157 = por %p155, %p156
      %s158 = ssub.s32 %s40, %s47
      %p159 = scmp.eq.s32.totalorder %s158, 0
      %s161 = sadd.s32 %s160, 1
      %s162 = scalar_select %p159, %s160, %s161
      %p165 = pneg %p159
      %p166 = scmp.eq.s32.totalorder %s40, 1
      %p167 = por %p165, %p166
      %p168 = scmp.ne.s32.totalorder %s160, %s163
      %p169 = scmp.eq.s32.totalorder %s40, 0
      %p170 = por %p168, %p169
      %p171 = scmp.ne.s32.totalorder %s160, %s163
      %p172 = scmp.eq.s32.totalorder %s45, 1
      %p173 = por %p171, %p172
      %p174 = scmp.ne.s32.totalorder %s163, %s164
      %p175 = scmp.eq.s32.totalorder %s45, 0
      %p176 = por %p174, %p175
      %p177 = scmp.ne.s32.totalorder %s163, %s164
      %p178 = scmp.eq.s32.totalorder %s46, 1
      %p179 = por %p177, %p178
      %p181 = scmp.ne.s32.totalorder %s164, %s180
      %p182 = scmp.eq.s32.totalorder %s46, 0
      %p183 = por %p181, %p182
      %s184 = ssub.s32 %s40, %s47
      %p185 = scmp.eq.s32.totalorder %s184, 0
      %s187 = sadd.s32 %s186, 1
      %s188 = scalar_select %p185, %s186, %s187
      %p191 = pneg %p185
      %p192 = scmp.eq.s32.totalorder %s40, 1
      %p193 = por %p191, %p192
      %p194 = scmp.ne.s32.totalorder %s186, %s189
      %p195 = scmp.eq.s32.totalorder %s40, 0
      %p196 = por %p194, %p195
      %p197 = scmp.ne.s32.totalorder %s186, %s189
      %p198 = scmp.eq.s32.totalorder %s45, 1
      %p199 = por %p197, %p198
      %p200 = scmp.ne.s32.totalorder %s189, %s190
      %p201 = scmp.eq.s32.totalorder %s45, 0
      %p202 = por %p200, %p201
      %p203 = scmp.ne.s32.totalorder %s189, %s190
      %p204 = scmp.eq.s32.totalorder %s46, 1
      %p205 = por %p203, %p204
      %p207 = scmp.ne.s32.totalorder %s190, %s206
      %p208 = scmp.eq.s32.totalorder %s46, 0
      %p209 = por %p207, %p208
      %s210 = ssub.s32 %s40, %s47
      %p211 = scmp.eq.s32.totalorder %s210, 0
      %s213 = sadd.s32 %s212, 1
      %s214 = scalar_select %p211, %s212, %s213
      %p217 = pneg %p211
      %p218 = scmp.eq.s32.totalorder %s40, 1
      %p219 = por %p217, %p218
      %p220 = scmp.ne.s32.totalorder %s212, %s215
      %p221 = scmp.eq.s32.totalorder %s40, 0
      %p222 = por %p220, %p221
      %p223 = scmp.ne.s32.totalorder %s212, %s215
      %p224 = scmp.eq.s32.totalorder %s45, 1
      %p225 = por %p223, %p224
      %p226 = scmp.ne.s32.totalorder %s215, %s216
      %p227 = scmp.eq.s32.totalorder %s45, 0
      %p228 = por %p226, %p227
      %p229 = scmp.ne.s32.totalorder %s215, %s216
      %p230 = scmp.eq.s32.totalorder %s46, 1
      %p231 = por %p229, %p230
      %p233 = scmp.ne.s32.totalorder %s216, %s232
      %p234 = scmp.eq.s32.totalorder %s46, 0
      %p235 = por %p233, %p234
      %s236 = ssub.s32 %s40, %s47
      %p237 = scmp.eq.s32.totalorder %s236, 0
      %s239 = sadd.s32 %s238, 1
      %s240 = scalar_select %p237, %s238, %s239
      %p243 = pneg %p237
      %p244 = scmp.eq.s32.totalorder %s40, 1
      %p245 = por %p243, %p244
      %p246 = scmp.ne.s32.totalorder %s238, %s241
      %p247 = scmp.eq.s32.totalorder %s40, 0
      %p248 = por %p246, %p247
      %p249 = scmp.ne.s32.totalorder %s238, %s241
      %p250 = scmp.eq.s32.totalorder %s45, 1
      %p251 = por %p249, %p250
      %p252 = scmp.ne.s32.totalorder %s241, %s242
      %p253 = scmp.eq.s32.totalorder %s45, 0
      %p254 = por %p252, %p253
      %p255 = scmp.ne.s32.totalorder %s241, %s242
      %p256 = scmp.eq.s32.totalorder %s46, 1
      %p257 = por %p255, %p256
      %p259 = scmp.ne.s32.totalorder %s242, %s258
      %p260 = scmp.eq.s32.totalorder %s46, 0
      %p261 = por %p259, %p260
      %s262 = ssub.s32 %s40, %s47
      %p263 = scmp.eq.s32.totalorder %s262, 0
      %s265 = sadd.s32 %s264, 1
      %s266 = scalar_select %p263, %s264, %s265
      %p269 = pneg %p263
      %p270 = scmp.eq.s32.totalorder %s40, 1
      %p271 = por %p269, %p270
      %p272 = scmp.ne.s32.totalorder %s264, %s267
      %p273 = scmp.eq.s32.totalorder %s40, 0
      %p274 = por %p272, %p273
      %p275 = scmp.ne.s32.totalorder %s264, %s267
      %p276 = scmp.eq.s32.totalorder %s45, 1
      %p277 = por %p275, %p276
      %p278 = scmp.ne.s32.totalorder %s267, %s268
      %p279 = scmp.eq.s32.totalorder %s45, 0
      %p280 = por %p278, %p279
      %p281 = scmp.ne.s32.totalorder %s267, %s268
      %p282 = scmp.eq.s32.totalorder %s46, 1
      %p283 = por %p281, %p282
      %p285 = scmp.ne.s32.totalorder %s268, %s284
      %p286 = scmp.eq.s32.totalorder %s46, 0
      %p287 = por %p285, %p286
      %s288 = ssub.s32 %s40, %s47
      %p289 = scmp.eq.s32.totalorder %s288, 0
      %s291 = sadd.s32 %s290, 1
      %s292 = scalar_select %p289, %s290, %s291
      %p295 = pneg %p289
      %p296 = scmp.eq.s32.totalorder %s40, 1
      %p297 = por %p295, %p296
      %p298 = scmp.ne.s32.totalorder %s290, %s293
      %p299 = scmp.eq.s32.totalorder %s40, 0
      %p300 = por %p298, %p299
      %p301 = scmp.ne.s32.totalorder %s290, %s293
      %p302 = scmp.eq.s32.totalorder %s45, 1
      %p303 = por %p301, %p302
      %p304 = scmp.ne.s32.totalorder %s293, %s294
      %p305 = scmp.eq.s32.totalorder %s45, 0
      %p306 = por %p304, %p305
      %p307 = scmp.ne.s32.totalorder %s293, %s294
      %p308 = scmp.eq.s32.totalorder %s46, 1
      %p309 = por %p307, %p308
      %p311 = scmp.ne.s32.totalorder %s294, %s310
      %p312 = scmp.eq.s32.totalorder %s46, 0
      %p313 = por %p311, %p312
      %s314 = ssub.s32 %s40, %s47
      %p315 = scmp.eq.s32.totalorder %s314, 0
      %s317 = sadd.s32 %s316, 1
      %s318 = scalar_select %p315, %s316, %s317
      %p321 = pneg %p315
      %p322 = scmp.eq.s32.totalorder %s40, 1
      %p323 = por %p321, %p322
      %p324 = scmp.ne.s32.totalorder %s316, %s319
      %p325 = scmp.eq.s32.totalorder %s40, 0
      %p326 = por %p324, %p325
      %p327 = scmp.ne.s32.totalorder %s316, %s319
      %p328 = scmp.eq.s32.totalorder %s45, 1
      %p329 = por %p327, %p328
      %p330 = scmp.ne.s32.totalorder %s319, %s320
      %p331 = scmp.eq.s32.totalorder %s45, 0
      %p332 = por %p330, %p331
      %p333 = scmp.ne.s32.totalorder %s319, %s320
      %p334 = scmp.eq.s32.totalorder %s46, 1
      %p335 = por %p333, %p334
      %p337 = scmp.ne.s32.totalorder %s320, %s336
      %p338 = scmp.eq.s32.totalorder %s46, 0
      %p339 = por %p337, %p338
      %s340 = ssub.s32 %s40, %s47
      %p341 = scmp.eq.s32.totalorder %s340, 0
      %s343 = sadd.s32 %s342, 1
      %s344 = scalar_select %p341, %s342, %s343
      %p347 = pneg %p341
      %p348 = scmp.eq.s32.totalorder %s40, 1
      %p349 = por %p347, %p348
      %p350 = scmp.ne.s32.totalorder %s342, %s345
      %p351 = scmp.eq.s32.totalorder %s40, 0
      %p352 = por %p350, %p351
      %p353 = scmp.ne.s32.totalorder %s342, %s345
      %p354 = scmp.eq.s32.totalorder %s45, 1
      %p355 = por %p353, %p354
      %p356 = scmp.ne.s32.totalorder %s345, %s346
      %p357 = scmp.eq.s32.totalorder %s45, 0
      %p358 = por %p356, %p357
      %p359 = scmp.ne.s32.totalorder %s345, %s346
      %p360 = scmp.eq.s32.totalorder %s46, 1
      %p361 = por %p359, %p360
      %p363 = scmp.ne.s32.totalorder %s346, %s362
      %p364 = scmp.eq.s32.totalorder %s46, 0
      %p365 = por %p363, %p364
      %s366 = ssub.s32 %s40, %s47
      %p367 = scmp.eq.s32.totalorder %s366, 0
      %s369 = sadd.s32 %s368, 1
      %s370 = scalar_select %p367, %s368, %s369
      %p373 = pneg %p367
      %p374 = scmp.eq.s32.totalorder %s40, 1
      %p375 = por %p373, %p374
      %p376 = scmp.ne.s32.totalorder %s368, %s371
      %p377 = scmp.eq.s32.totalorder %s40, 0
      %p378 = por %p376, %p377
      %p379 = scmp.ne.s32.totalorder %s368, %s371
      %p380 = scmp.eq.s32.totalorder %s45, 1
      %p381 = por %p379, %p380
      %p382 = scmp.ne.s32.totalorder %s371, %s372
      %p383 = scmp.eq.s32.totalorder %s45, 0
      %p384 = por %p382, %p383
      %p385 = scmp.ne.s32.totalorder %s371, %s372
      %p386 = scmp.eq.s32.totalorder %s46, 1
      %p387 = por %p385, %p386
      %p389 = scmp.ne.s32.totalorder %s372, %s388
      %p390 = scmp.eq.s32.totalorder %s46, 0
      %p391 = por %p389, %p390
      %s392 = ssub.s32 %s40, %s47
      %p393 = scmp.eq.s32.totalorder %s392, 0
      %s395 = sadd.s32 %s394, 1
      %s396 = scalar_select %p393, %s394, %s395
      %p399 = pneg %p393
      %p400 = scmp.eq.s32.totalorder %s40, 1
      %p401 = por %p399, %p400
      %p402 = scmp.ne.s32.totalorder %s394, %s397
      %p403 = scmp.eq.s32.totalorder %s40, 0
      %p404 = por %p402, %p403
      %p405 = scmp.ne.s32.totalorder %s394, %s397
      %p406 = scmp.eq.s32.totalorder %s45, 1
      %p407 = por %p405, %p406
      %p408 = scmp.ne.s32.totalorder %s397, %s398
      %p409 = scmp.eq.s32.totalorder %s45, 0
      %p410 = por %p408, %p409
      %p411 = scmp.ne.s32.totalorder %s397, %s398
      %p412 = scmp.eq.s32.totalorder %s46, 1
      %p413 = por %p411, %p412
      %p415 = scmp.ne.s32.totalorder %s398, %s414
      %p416 = scmp.eq.s32.totalorder %s46, 0
      %p417 = por %p415, %p416
      %s418 = ssub.s32 %s40, %s47
      %p419 = scmp.eq.s32.totalorder %s418, 0
      %s421 = sadd.s32 %s420, 1
      %s422 = scalar_select %p419, %s420, %s421
      %p425 = pneg %p419
      %p426 = scmp.eq.s32.totalorder %s40, 1
      %p427 = por %p425, %p426
      %p428 = scmp.ne.s32.totalorder %s420, %s423
      %p429 = scmp.eq.s32.totalorder %s40, 0
      %p430 = por %p428, %p429
      %p431 = scmp.ne.s32.totalorder %s420, %s423
      %p432 = scmp.eq.s32.totalorder %s45, 1
      %p433 = por %p431, %p432
      %p434 = scmp.ne.s32.totalorder %s423, %s424
      %p435 = scmp.eq.s32.totalorder %s45, 0
      %p436 = por %p434, %p435
      %p437 = scmp.ne.s32.totalorder %s423, %s424
      %p438 = scmp.eq.s32.totalorder %s46, 1
      %p439 = por %p437, %p438
      %p441 = scmp.ne.s32.totalorder %s424, %s440
      %p442 = scmp.eq.s32.totalorder %s46, 0
      %p443 = por %p441, %p442
      %s444 = ssub.s32 %s40, %s47
      %p445 = scmp.eq.s32.totalorder %s444, 0
      %s447 = sadd.s32 %s446, 1
      %s448 = scalar_select %p445, %s446, %s447
      %p451 = pneg %p445
      %p452 = scmp.eq.s32.totalorder %s40, 1
      %p453 = por %p451, %p452
      %p454 = scmp.ne.s32.totalorder %s446, %s449
      %p455 = scmp.eq.s32.totalorder %s40, 0
      %p456 = por %p454, %p455
      %p457 = scmp.ne.s32.totalorder %s446, %s449
      %p458 = scmp.eq.s32.totalorder %s45, 1
      %p459 = por %p457, %p458
      %p460 = scmp.ne.s32.totalorder %s449, %s450
      %p461 = scmp.eq.s32.totalorder %s45, 0
      %p462 = por %p460, %p461
      %p463 = scmp.ne.s32.totalorder %s449, %s450
      %p464 = scmp.eq.s32.totalorder %s46, 1
      %p465 = por %p463, %p464
      %p467 = scmp.ne.s32.totalorder %s450, %s466
      %p468 = scmp.eq.s32.totalorder %s46, 0
      %p469 = por %p467, %p468
      %s470 = ssub.s32 %s40, %s47
      %p471 = scmp.eq.s32.totalorder %s470, 0
      %s473 = sadd.s32 %s472, 1
      %s474 = scalar_select %p471, %s472, %s473
      %p477 = pneg %p471
      %p478 = scmp.eq.s32.totalorder %s40, 1
      %p479 = por %p477, %p478
      %p480 = scmp.ne.s32.totalorder %s472, %s475
      %p481 = scmp.eq.s32.totalorder %s40, 0
      %p482 = por %p480, %p481
      %p483 = scmp.ne.s32.totalorder %s472, %s475
      %p484 = scmp.eq.s32.totalorder %s45, 1
      %p485 = por %p483, %p484
      %p486 = scmp.ne.s32.totalorder %s475, %s476
      %p487 = scmp.eq.s32.totalorder %s45, 0
      %p488 = por %p486, %p487
      %p489 = scmp.ne.s32.totalorder %s475, %s476
      %p490 = scmp.eq.s32.totalorder %s46, 1
      %p491 = por %p489, %p490
      %p493 = scmp.ne.s32.totalorder %s476, %s492
      %p494 = scmp.eq.s32.totalorder %s46, 0
      %p495 = por %p493, %p494
      %s496 = ssub.s32 %s40, %s47
      %p497 = scmp.eq.s32.totalorder %s496, 0
      %s499 = sadd.s32 %s498, 1
      %s500 = scalar_select %p497, %s498, %s499
      %p503 = pneg %p497
      %p504 = scmp.eq.s32.totalorder %s40, 1
      %p505 = por %p503, %p504
      %p506 = scmp.ne.s32.totalorder %s498, %s501
      %p507 = scmp.eq.s32.totalorder %s40, 0
      %p508 = por %p506, %p507
      %p509 = scmp.ne.s32.totalorder %s498, %s501
      %p510 = scmp.eq.s32.totalorder %s45, 1
      %p511 = por %p509, %p510
      %p512 = scmp.ne.s32.totalorder %s501, %s502
      %p513 = scmp.eq.s32.totalorder %s45, 0
      %p514 = por %p512, %p513
      %p515 = scmp.ne.s32.totalorder %s501, %s502
      %p516 = scmp.eq.s32.totalorder %s46, 1
      %p517 = por %p515, %p516
      %p519 = scmp.ne.s32.totalorder %s502, %s518
      %p520 = scmp.eq.s32.totalorder %s46, 0
      %p521 = por %p519, %p520
      %s523 = sadd.s32 %s522, 1
      %p526 = scmp.eq.s32.totalorder %s40, 1
      %p527 = scmp.ne.s32.totalorder %s522, %s524
      %p528 = scmp.eq.s32.totalorder %s40, 0
      %p529 = por %p527, %p528
      %p530 = scmp.ne.s32.totalorder %s522, %s524
      %p531 = scmp.eq.s32.totalorder %s45, 1
      %p532 = por %p530, %p531
      %p533 = scmp.ne.s32.totalorder %s524, %s525
      %p534 = scmp.eq.s32.totalorder %s45, 0
      %p535 = por %p533, %p534
      %p536 = scmp.ne.s32.totalorder %s524, %s525
      %p537 = scmp.eq.s32.totalorder %s46, 1
      %p538 = por %p536, %p537
      %p540 = scmp.ne.s32.totalorder %s525, %s539
      %p541 = scmp.eq.s32.totalorder %s46, 0
      %p542 = por %p540, %p541
      %p543 = scmp.le.s32.totalorder 1, %s40
      %p544 = scmp.lt.s32.totalorder %s40, 3
      %p545 = pnand %p543, %p544
      %p546 = pneg %p545
      // Predicated region
      $region9: #{tpu_custom_call.1} parent=5 // pred_check
        _
      $region10: #{tpu_custom_call.1} parent=5 // pred_check_branch
        %548 = sbr.rel (%p545) target = $region12
      $region11: #{tpu_custom_call.1} parent=5 // pred_region
        %s549 = ssub.s32 %s40, 1
        // Predicated region
        $region13: #{tpu_custom_call.1} parent=11 // pred_check
          %p550 = pneg %p61
        $region14: #{tpu_custom_call.1} parent=11 // pred_check_branch
          %552 = sbr.rel (%p550) target = $region16
        $region15: #{tpu_custom_call.1} parent=11 // pred_region
          _
        $region16: #{tpu_custom_call.1} parent=11 // pred_fallthru
          _
        // Predicated region
        $region17: #{tpu_custom_call.1} parent=11 // pred_check
          %p553 = pneg %p82
        $region18: #{tpu_custom_call.1} parent=11 // pred_check_branch
          %555 = sbr.rel (%p553) target = $region20
        $region19: #{tpu_custom_call.1} parent=11 // pred_region
          %s557 = ssub.s32 512, 512
          %558 = vsyncadd [#allocation4], %s557
          %s559 = sshll.u32 [#allocation3], 4
          %s560 = int_to_ptr.vmem [resolvable:$true] %s559
          %565 = dma.hbm_to_vmem [thread:$0]  %s1, 512, %s560, [#allocation4], 256, 256, 16
        $region20: #{tpu_custom_call.1} parent=11 // pred_fallthru
          _
        // Predicated region
        $region21: #{tpu_custom_call.1} parent=11 // pred_check
          %p566 = pneg %p103
        $region22: #{tpu_custom_call.1} parent=11 // pred_check_branch
          %568 = sbr.rel (%p566) target = $region24
        $region23: #{tpu_custom_call.1} parent=11 // pred_region
          %s570 = ssub.s32 2048, 2048
          %571 = vsyncadd [#allocation7], %s570
          %s572 = sshll.u32 [#allocation6], 4
          %s573 = int_to_ptr.vmem [resolvable:$true] %s572
          %578 = dma.hbm_to_vmem [thread:$0]  %s2, 2048, %s573, [#allocation7], 128, 128, 8
        $region24: #{tpu_custom_call.1} parent=11 // pred_fallthru
          _
        // Predicated region
        $region25: #{tpu_custom_call.1} parent=11 // pred_check
          %p579 = pneg %p124
        $region26: #{tpu_custom_call.1} parent=11 // pred_check_branch
          %581 = sbr.rel (%p579) target = $region28
        $region27: #{tpu_custom_call.1} parent=11 // pred_region
          %s583 = ssub.s32 2048, 2048
          %584 = vsyncadd [#allocation7], %s583
          %s585 = sshll.u32 [#allocation8], 4
          %s586 = int_to_ptr.vmem [resolvable:$true] %s585
          %591 = dma.hbm_to_vmem [thread:$0]  %s3, 2048, %s586, [#allocation7], 128, 128, 8
        $region28: #{tpu_custom_call.1} parent=11 // pred_fallthru
          _
      $region12: #{tpu_custom_call.1} parent=5 // pred_fallthru
        _
      %p592 = scmp.lt.s32.totalorder %s40, 2
      // Predicated region
      $region29: #{tpu_custom_call.1} parent=5 // pred_check
        %p593 = pneg %p592
      $region30: #{tpu_custom_call.1} parent=5 // pred_check_branch
        %595 = sbr.rel (%p593) target = $region32
      $region31: #{tpu_custom_call.1} parent=5 // pred_region
        // Predicated region
        $region33: #{tpu_custom_call.1} parent=31 // pred_check
          %p596 = pneg %p144
        $region34: #{tpu_custom_call.1} parent=31 // pred_check_branch
          %598 = sbr.rel (%p596) target = $region36
        $region35: #{tpu_custom_call.1} parent=31 // pred_region
          %p599 = scmp.lt.s32.totalorder %s40, 1
          %s600 = scalar_select %p599, %s40, 1
          %s601 = smul.addr %s600, 2
          %s602 = smul.addr %s601, 8
          %s603 = scalar_lea.vmem %s4, %s602
        $region36: #{tpu_custom_call.1} parent=31 // pred_fallthru
          _
        // Predicated region
        $region37: #{tpu_custom_call.1} parent=31 // pred_check
          %p604 = pneg %p170
        $region38: #{tpu_custom_call.1} parent=31 // pred_check_branch
          %606 = sbr.rel (%p604) target = $region40
        $region39: #{tpu_custom_call.1} parent=31 // pred_region
          %s607 = sand.u32 %s40, 1
          %s608 = scalar_lea.sflag [#allocation10], %s607
          %s609 = sand.u32 %s160, 1
          %s610 = smul.addr %s609, 768
          %s611 = scalar_lea.vmem [#allocation9], %s610
          %s613 = ssub.s32 12288, 12288
          %614 = vsyncadd %s608, %s613
          %s615 = smul.addr %s40, 192
          %s616 = smul.addr %s615, 64
          %s617 = scalar_lea.hbm %s5, %s616
          %s618 = sshll.u32 %s611, 4
          %s619 = int_to_ptr.vmem [resolvable:$true] %s618
          %624 = dma.hbm_to_vmem [thread:$0]  %s617, 12288, %s619, %s608, 384, 384, 24
        $region40: #{tpu_custom_call.1} parent=31 // pred_fallthru
          _
        // Predicated region
        $region41: #{tpu_custom_call.1} parent=31 // pred_check
          %p625 = pneg %p196
        $region42: #{tpu_custom_call.1} parent=31 // pred_check_branch
          %627 = sbr.rel (%p625) target = $region44
        $region43: #{tpu_custom_call.1} parent=31 // pred_region
          %p628 = scmp.lt.s32.totalorder %s40, 1
          %s629 = scalar_select %p628, %s40, 1
          %s630 = smul.addr %s629, 6
          %s631 = scalar_lea.vmem %s6, %s630
        $region44: #{tpu_custom_call.1} parent=31 // pred_fallthru
          _
        // Predicated region
        $region45: #{tpu_custom_call.1} parent=31 // pred_check
          %p632 = pneg %p222
        $region46: #{tpu_custom_call.1} parent=31 // pred_check_branch
          %634 = sbr.rel (%p632) target = $region48
        $region47: #{tpu_custom_call.1} parent=31 // pred_region
          %s635 = sand.u32 %s40, 1
          %s636 = scalar_lea.sflag [#allocation10], %s635
          %s637 = sand.u32 %s212, 1
          %s638 = smul.addr %s637, 256
          %s639 = scalar_lea.vmem [#allocation11], %s638
          %s641 = ssub.s32 4096, 4096
          %642 = vsyncadd %s636, %s641
          %s643 = smul.addr %s40, 64
          %s644 = smul.addr %s643, 64
          %s645 = scalar_lea.hbm %s7, %s644
          %s646 = sshll.u32 %s639, 4
          %s647 = int_to_ptr.vmem [resolvable:$true] %s646
          %652 = dma.hbm_to_vmem [thread:$0]  %s645, 4096, %s647, %s636, 128, 128, 8
        $region48: #{tpu_custom_call.1} parent=31 // pred_fallthru
          _
        // Predicated region
        $region49: #{tpu_custom_call.1} parent=31 // pred_check
          %p653 = pneg %p248
        $region50: #{tpu_custom_call.1} parent=31 // pred_check_branch
          %655 = sbr.rel (%p653) target = $region52
        $region51: #{tpu_custom_call.1} parent=31 // pred_region
          %p656 = scmp.lt.s32.totalorder %s40, 1
          %s657 = scalar_select %p656, %s40, 1
          %s658 = smul.addr %s657, 2
          %s659 = scalar_lea.vmem %s8, %s658
        $region52: #{tpu_custom_call.1} parent=31 // pred_fallthru
          _
        // Predicated region
        $region53: #{tpu_custom_call.1} parent=31 // pred_check
          %p660 = pneg %p274
        $region54: #{tpu_custom_call.1} parent=31 // pred_check_branch
          %662 = sbr.rel (%p660) target = $region56
        $region55: #{tpu_custom_call.1} parent=31 // pred_region
          %s663 = sand.u32 %s40, 1
          %s664 = scalar_lea.sflag [#allocation13], %s663
          %s665 = sand.u32 %s264, 1
          %s666 = smul.addr %s665, 256
          %s667 = scalar_lea.vmem [#allocation12], %s666
          %s669 = ssub.s32 4096, 4096
          %670 = vsyncadd %s664, %s669
          %s671 = smul.addr %s40, 64
          %s672 = smul.addr %s671, 64
          %s673 = scalar_lea.hbm %s9, %s672
          %s674 = sshll.u32 %s667, 4
          %s675 = int_to_ptr.vmem [resolvable:$true] %s674
          %680 = dma.hbm_to_vmem [thread:$0]  %s673, 4096, %s675, %s664, 128, 128, 8
        $region56: #{tpu_custom_call.1} parent=31 // pred_fallthru
          _
        // Predicated region
        $region57: #{tpu_custom_call.1} parent=31 // pred_check
          %p681 = pneg %p300
        $region58: #{tpu_custom_call.1} parent=31 // pred_check_branch
          %683 = sbr.rel (%p681) target = $region60
        $region59: #{tpu_custom_call.1} parent=31 // pred_region
          %p684 = scmp.lt.s32.totalorder %s40, 1
          %s685 = scalar_select %p684, %s40, 1
          %s686 = smul.addr %s685, 2
          %s687 = scalar_lea.vmem %s10, %s686
        $region60: #{tpu_custom_call.1} parent=31 // pred_fallthru
          _
        // Predicated region
        $region61: #{tpu_custom_call.1} parent=31 // pred_check
          %p688 = pneg %p326
        $region62: #{tpu_custom_call.1} parent=31 // pred_check_branch
          %690 = sbr.rel (%p688) target = $region64
        $region63: #{tpu_custom_call.1} parent=31 // pred_region
          %s691 = sand.u32 %s40, 1
          %s692 = scalar_lea.sflag [#allocation13], %s691
          %s693 = sand.u32 %s316, 1
          %s694 = smul.addr %s693, 512
          %s695 = scalar_lea.vmem [#allocation14], %s694
          %s697 = ssub.s32 8192, 8192
          %698 = vsyncadd %s692, %s697
          %s699 = smul.addr %s40, 128
          %s700 = smul.addr %s699, 64
          %s701 = scalar_lea.hbm %s11, %s700
          %s702 = sshll.u32 %s695, 4
          %s703 = int_to_ptr.vmem [resolvable:$true] %s702
          %708 = dma.hbm_to_vmem [thread:$0]  %s701, 8192, %s703, %s692, 256, 256, 16
        $region64: #{tpu_custom_call.1} parent=31 // pred_fallthru
          _
        // Predicated region
        $region65: #{tpu_custom_call.1} parent=31 // pred_check
          %p709 = pneg %p352
        $region66: #{tpu_custom_call.1} parent=31 // pred_check_branch
          %711 = sbr.rel (%p709) target = $region68
        $region67: #{tpu_custom_call.1} parent=31 // pred_region
          %p712 = scmp.lt.s32.totalorder %s40, 1
          %s713 = scalar_select %p712, %s40, 1
          %s714 = smul.addr %s713, 4
          %s715 = scalar_lea.vmem %s12, %s714
        $region68: #{tpu_custom_call.1} parent=31 // pred_fallthru
          _
        // Predicated region
        $region69: #{tpu_custom_call.1} parent=31 // pred_check
          %p716 = pneg %p378
        $region70: #{tpu_custom_call.1} parent=31 // pred_check_branch
          %718 = sbr.rel (%p716) target = $region72
        $region71: #{tpu_custom_call.1} parent=31 // pred_region
          %s719 = sand.u32 %s40, 1
          %s720 = scalar_lea.sflag [#allocation16], %s719
          %s721 = sand.u32 %s368, 1
          %s722 = smul.addr %s721, 256
          %s723 = scalar_lea.vmem [#allocation15], %s722
          %s725 = ssub.s32 4096, 4096
          %726 = vsyncadd %s720, %s725
          %s727 = smul.addr %s40, 64
          %s728 = smul.addr %s727, 64
          %s729 = scalar_lea.hbm %s13, %s728
          %s730 = sshll.u32 %s723, 4
          %s731 = int_to_ptr.vmem [resolvable:$true] %s730
          %736 = dma.hbm_to_vmem [thread:$0]  %s729, 4096, %s731, %s720, 128, 128, 8
        $region72: #{tpu_custom_call.1} parent=31 // pred_fallthru
          _
        // Predicated region
        $region73: #{tpu_custom_call.1} parent=31 // pred_check
          %p737 = pneg %p404
        $region74: #{tpu_custom_call.1} parent=31 // pred_check_branch
          %739 = sbr.rel (%p737) target = $region76
        $region75: #{tpu_custom_call.1} parent=31 // pred_region
          %p740 = scmp.lt.s32.totalorder %s40, 1
          %s741 = scalar_select %p740, %s40, 1
          %s742 = smul.addr %s741, 2
          %s743 = scalar_lea.vmem %s14, %s742
        $region76: #{tpu_custom_call.1} parent=31 // pred_fallthru
          _
        // Predicated region
        $region77: #{tpu_custom_call.1} parent=31 // pred_check
          %p744 = pneg %p430
        $region78: #{tpu_custom_call.1} parent=31 // pred_check_branch
          %746 = sbr.rel (%p744) target = $region80
        $region79: #{tpu_custom_call.1} parent=31 // pred_region
          %s747 = sand.u32 %s40, 1
          %s748 = scalar_lea.sflag [#allocation16], %s747
          %s749 = sand.u32 %s420, 1
          %s750 = smul.addr %s749, 128
          %s751 = scalar_lea.vmem [#allocation17], %s750
          %s753 = ssub.s32 2048, 2048
          %754 = vsyncadd %s748, %s753
          %s755 = smul.addr %s40, 32
          %s756 = smul.addr %s755, 64
          %s757 = scalar_lea.hbm %s15, %s756
          %s758 = sshll.u32 %s751, 4
          %s759 = int_to_ptr.vmem [resolvable:$true] %s758
          %764 = dma.hbm_to_vmem [thread:$0]  %s757, 2048, %s759, %s748, 64, 64, 4
        $region80: #{tpu_custom_call.1} parent=31 // pred_fallthru
          _
        // Predicated region
        $region81: #{tpu_custom_call.1} parent=31 // pred_check
          %p765 = pneg %p456
        $region82: #{tpu_custom_call.1} parent=31 // pred_check_branch
          %767 = sbr.rel (%p765) target = $region84
        $region83: #{tpu_custom_call.1} parent=31 // pred_region
          %p768 = scmp.lt.s32.totalorder %s40, 1
          %s769 = scalar_select %p768, %s40, 1
          %s770 = scalar_lea.vmem %s16, %s769
        $region84: #{tpu_custom_call.1} parent=31 // pred_fallthru
          _
        // Predicated region
        $region85: #{tpu_custom_call.1} parent=31 // pred_check
          %p771 = pneg %p482
        $region86: #{tpu_custom_call.1} parent=31 // pred_check_branch
          %773 = sbr.rel (%p771) target = $region88
        $region87: #{tpu_custom_call.1} parent=31 // pred_region
          %s774 = sand.u32 %s472, 1
          %s775 = scalar_lea.sflag [#allocation19], %s774
          %s776 = sand.u32 %s472, 1
          %s777 = smul.addr %s776, 128
          %s778 = scalar_lea.vmem [#allocation18], %s777
          %s780 = ssub.s32 2048, 2048
          %781 = vsyncadd %s775, %s780
          %s782 = smul.addr %s40, 32
          %s783 = smul.addr %s782, 64
          %s784 = scalar_lea.hbm %s17, %s783
          %s785 = sshll.u32 %s778, 4
          %s786 = int_to_ptr.vmem [resolvable:$true] %s785
          %791 = dma.hbm_to_vmem [thread:$0]  %s784, 2048, %s786, %s775, 128, 128, 8
        $region88: #{tpu_custom_call.1} parent=31 // pred_fallthru
          _
        // Predicated region
        $region89: #{tpu_custom_call.1} parent=31 // pred_check
          %p792 = pneg %p508
        $region90: #{tpu_custom_call.1} parent=31 // pred_check_branch
          %794 = sbr.rel (%p792) target = $region92
        $region91: #{tpu_custom_call.1} parent=31 // pred_region
          %p795 = scmp.lt.s32.totalorder %s40, 1
          %s796 = scalar_select %p795, %s40, 1
          %s797 = smul.addr %s796, 2
          %s798 = scalar_lea.vmem %s18, %s797
        $region92: #{tpu_custom_call.1} parent=31 // pred_fallthru
          _
      $region32: #{tpu_custom_call.1} parent=5 // pred_fallthru
        _
      %p799 = scmp.le.s32.totalorder 1, %s40
      %p800 = scmp.lt.s32.totalorder %s40, 3
      %p801 = pnand %p799, %p800
      %p802 = pneg %p801
      // Predicated region
      $region93: #{tpu_custom_call.1} parent=5 // pred_check
        _
      $region94: #{tpu_custom_call.1} parent=5 // pred_check_branch
        %804 = sbr.rel (%p801) target = $region96
      $region95: #{tpu_custom_call.1} parent=5 // pred_region
        %s805 = ssub.s32 %s40, 1
        // Predicated region
        $region97: #{tpu_custom_call.1} parent=95 // pred_check
          %p806 = pneg %p82
        $region98: #{tpu_custom_call.1} parent=95 // pred_check_branch
          %808 = sbr.rel (%p806) target = $region100
        $region99: #{tpu_custom_call.1} parent=95 // pred_region
          %809 = dma.done [#allocation4], 512
        $region100: #{tpu_custom_call.1} parent=95 // pred_fallthru
          _
        // Predicated region
        $region101: #{tpu_custom_call.1} parent=95 // pred_check
          %p810 = pneg %p103
        $region102: #{tpu_custom_call.1} parent=95 // pred_check_branch
          %812 = sbr.rel (%p810) target = $region104
        $region103: #{tpu_custom_call.1} parent=95 // pred_region
          %813 = dma.done [#allocation7], 2048
        $region104: #{tpu_custom_call.1} parent=95 // pred_fallthru
          _
        // Predicated region
        $region105: #{tpu_custom_call.1} parent=95 // pred_check
          %p814 = pneg %p124
        $region106: #{tpu_custom_call.1} parent=95 // pred_check_branch
          %816 = sbr.rel (%p814) target = $region108
        $region107: #{tpu_custom_call.1} parent=95 // pred_region
          %817 = dma.done [#allocation7], 2048
        $region108: #{tpu_custom_call.1} parent=95 // pred_fallthru
          _
        %s818 = sand.u32 %s45, 1
        %s819 = scalar_lea.sflag [#allocation10], %s818
        %s820 = sand.u32 %s163, 1
        %s821 = smul.addr %s820, 768
        %s822 = scalar_lea.vmem [#allocation9], %s821
        // Predicated region
        $region109: #{tpu_custom_call.1} parent=95 // pred_check
          %p823 = pneg %p176
        $region110: #{tpu_custom_call.1} parent=95 // pred_check_branch
          %825 = sbr.rel (%p823) target = $region112
        $region111: #{tpu_custom_call.1} parent=95 // pred_region
          %826 = dma.done %s819, 12288
        $region112: #{tpu_custom_call.1} parent=95 // pred_fallthru
          _
        %s827 = sand.u32 %s45, 1
        %s828 = scalar_lea.sflag [#allocation10], %s827
        %s829 = sand.u32 %s215, 1
        %s830 = smul.addr %s829, 256
        %s831 = scalar_lea.vmem [#allocation11], %s830
        // Predicated region
        $region113: #{tpu_custom_call.1} parent=95 // pred_check
          %p832 = pneg %p228
        $region114: #{tpu_custom_call.1} parent=95 // pred_check_branch
          %834 = sbr.rel (%p832) target = $region116
        $region115: #{tpu_custom_call.1} parent=95 // pred_region
          %835 = dma.done %s828, 4096
        $region116: #{tpu_custom_call.1} parent=95 // pred_fallthru
          _
        %s836 = sand.u32 %s45, 1
        %s837 = scalar_lea.sflag [#allocation13], %s836
        %s838 = sand.u32 %s267, 1
        %s839 = smul.addr %s838, 256
        %s840 = scalar_lea.vmem [#allocation12], %s839
        // Predicated region
        $region117: #{tpu_custom_call.1} parent=95 // pred_check
          %p841 = pneg %p280
        $region118: #{tpu_custom_call.1} parent=95 // pred_check_branch
          %843 = sbr.rel (%p841) target = $region120
        $region119: #{tpu_custom_call.1} parent=95 // pred_region
          %844 = dma.done %s837, 4096
        $region120: #{tpu_custom_call.1} parent=95 // pred_fallthru
          _
        %s845 = sand.u32 %s45, 1
        %s846 = scalar_lea.sflag [#allocation13], %s845
        %s847 = sand.u32 %s319, 1
        %s848 = smul.addr %s847, 512
        %s849 = scalar_lea.vmem [#allocation14], %s848
        // Predicated region
        $region121: #{tpu_custom_call.1} parent=95 // pred_check
          %p850 = pneg %p332
        $region122: #{tpu_custom_call.1} parent=95 // pred_check_branch
          %852 = sbr.rel (%p850) target = $region124
        $region123: #{tpu_custom_call.1} parent=95 // pred_region
          %853 = dma.done %s846, 8192
        $region124: #{tpu_custom_call.1} parent=95 // pred_fallthru
          _
        %s854 = sand.u32 %s45, 1
        %s855 = scalar_lea.sflag [#allocation16], %s854
        %s856 = sand.u32 %s371, 1
        %s857 = smul.addr %s856, 256
        %s858 = scalar_lea.vmem [#allocation15], %s857
        // Predicated region
        $region125: #{tpu_custom_call.1} parent=95 // pred_check
          %p859 = pneg %p384
        $region126: #{tpu_custom_call.1} parent=95 // pred_check_branch
          %861 = sbr.rel (%p859) target = $region128
        $region127: #{tpu_custom_call.1} parent=95 // pred_region
          %862 = dma.done %s855, 4096
        $region128: #{tpu_custom_call.1} parent=95 // pred_fallthru
          _
        %s863 = sand.u32 %s45, 1
        %s864 = scalar_lea.sflag [#allocation16], %s863
        %s865 = sand.u32 %s423, 1
        %s866 = smul.addr %s865, 128
        %s867 = scalar_lea.vmem [#allocation17], %s866
        // Predicated region
        $region129: #{tpu_custom_call.1} parent=95 // pred_check
          %p868 = pneg %p436
        $region130: #{tpu_custom_call.1} parent=95 // pred_check_branch
          %870 = sbr.rel (%p868) target = $region132
        $region131: #{tpu_custom_call.1} parent=95 // pred_region
          %871 = dma.done %s864, 2048
        $region132: #{tpu_custom_call.1} parent=95 // pred_fallthru
          _
        %s872 = sand.u32 %s475, 1
        %s873 = scalar_lea.sflag [#allocation19], %s872
        %s874 = sand.u32 %s475, 1
        %s875 = smul.addr %s874, 128
        %s876 = scalar_lea.vmem [#allocation18], %s875
        // Predicated region
        $region133: #{tpu_custom_call.1} parent=95 // pred_check
          %p877 = pneg %p488
        $region134: #{tpu_custom_call.1} parent=95 // pred_check_branch
          %879 = sbr.rel (%p877) target = $region136
        $region135: #{tpu_custom_call.1} parent=95 // pred_region
          %880 = dma.done %s873, 2048
        $region136: #{tpu_custom_call.1} parent=95 // pred_fallthru
          _
        %p881 = pneg %p61
        %p882 = pneg %p58
        %p883 = pneg %p82
        %p884 = pneg %p79
        %p885 = pneg %p103
        %p886 = pneg %p100
        %p887 = pneg %p124
        %p888 = pneg %p121
        %p889 = scmp.lt.s32.totalorder %s45, 1
        %s890 = scalar_select %p889, %s45, 1
        %s891 = smul.addr %s890, 2
        %s892 = smul.addr %s891, 8
        %s893 = scalar_lea.vmem %s4, %s892
        %p894 = pneg %p150
        %p895 = pneg %p147
        %s896 = sand.u32 %s45, 1
        %s897 = scalar_lea.sflag [#allocation10], %s896
        %s898 = sand.u32 %s163, 1
        %s899 = smul.addr %s898, 768
        %s900 = scalar_lea.vmem [#allocation9], %s899
        %p901 = pneg %p176
        %p902 = pneg %p173
        %p903 = scmp.lt.s32.totalorder %s45, 1
        %s904 = scalar_select %p903, %s45, 1
        %s905 = smul.addr %s904, 6
        %s906 = scalar_lea.vmem %s6, %s905
        %p907 = pneg %p202
        %p908 = pneg %p199
        %s909 = sand.u32 %s45, 1
        %s910 = scalar_lea.sflag [#allocation10], %s909
        %s911 = sand.u32 %s215, 1
        %s912 = smul.addr %s911, 256
        %s913 = scalar_lea.vmem [#allocation11], %s912
        %p914 = pneg %p228
        %p915 = pneg %p225
        %p916 = scmp.lt.s32.totalorder %s45, 1
        %s917 = scalar_select %p916, %s45, 1
        %s918 = smul.addr %s917, 2
        %s919 = scalar_lea.vmem %s8, %s918
        %p920 = pneg %p254
        %p921 = pneg %p251
        %s922 = sand.u32 %s45, 1
        %s923 = scalar_lea.sflag [#allocation13], %s922
        %s924 = sand.u32 %s267, 1
        %s925 = smul.addr %s924, 256
        %s926 = scalar_lea.vmem [#allocation12], %s925
        %p927 = pneg %p280
        %p928 = pneg %p277
        %p929 = scmp.lt.s32.totalorder %s45, 1
        %s930 = scalar_select %p929, %s45, 1
        %s931 = smul.addr %s930, 2
        %s932 = scalar_lea.vmem %s10, %s931
        %p933 = pneg %p306
        %p934 = pneg %p303
        %s935 = sand.u32 %s45, 1
        %s936 = scalar_lea.sflag [#allocation13], %s935
        %s937 = sand.u32 %s319, 1
        %s938 = smul.addr %s937, 512
        %s939 = scalar_lea.vmem [#allocation14], %s938
        %p940 = pneg %p332
        %p941 = pneg %p329
        %p942 = scmp.lt.s32.totalorder %s45, 1
        %s943 = scalar_select %p942, %s45, 1
        %s944 = smul.addr %s943, 4
        %s945 = scalar_lea.vmem %s12, %s944
        %p946 = pneg %p358
        %p947 = pneg %p355
        %s948 = sand.u32 %s45, 1
        %s949 = scalar_lea.sflag [#allocation16], %s948
        %s950 = sand.u32 %s371, 1
        %s951 = smul.addr %s950, 256
        %s952 = scalar_lea.vmem [#allocation15], %s951
        %p953 = pneg %p384
        %p954 = pneg %p381
        %p955 = scmp.lt.s32.totalorder %s45, 1
        %s956 = scalar_select %p955, %s45, 1
        %s957 = smul.addr %s956, 2
        %s958 = scalar_lea.vmem %s14, %s957
        %p959 = pneg %p410
        %p960 = pneg %p407
        %s961 = sand.u32 %s45, 1
        %s962 = scalar_lea.sflag [#allocation16], %s961
        %s963 = sand.u32 %s423, 1
        %s964 = smul.addr %s963, 128
        %s965 = scalar_lea.vmem [#allocation17], %s964
        %p966 = pneg %p436
        %p967 = pneg %p433
        %p968 = scmp.lt.s32.totalorder %s45, 1
        %s969 = scalar_select %p968, %s45, 1
        %s970 = scalar_lea.vmem %s16, %s969
        %p971 = pneg %p462
        %p972 = pneg %p459
        %s973 = sand.u32 %s475, 1
        %s974 = scalar_lea.sflag [#allocation19], %s973
        %s975 = sand.u32 %s475, 1
        %s976 = smul.addr %s975, 128
        %s977 = scalar_lea.vmem [#allocation18], %s976
        %p978 = pneg %p488
        %p979 = pneg %p485
        %p980 = scmp.lt.s32.totalorder %s45, 1
        %s981 = scalar_select %p980, %s45, 1
        %s982 = smul.addr %s981, 2
        %s983 = scalar_lea.vmem %s18, %s982
        %p984 = pneg %p514
        %p985 = pneg %p511
        %p986 = pneg %p535
        %p987 = pneg %p532
        %p988 = scmp.lt.s32.totalorder %s45, 1
        %s989 = scalar_select %p988, %s45, 1
        %s990 = smul.addr %s989, 2
        %s991 = smul.addr %s990, 8
        %s992 = scalar_lea.vmem %s4, %s991
        %p993 = scmp.lt.s32.totalorder %s45, 1
        %s994 = scalar_select %p993, %s45, 1
        %s995 = smul.addr %s994, 6
        %s996 = scalar_lea.vmem %s6, %s995
        %p997 = scmp.lt.s32.totalorder %s45, 1
        %s998 = scalar_select %p997, %s45, 1
        %s999 = smul.addr %s998, 2
        %s1000 = scalar_lea.vmem %s8, %s999
        %p1001 = scmp.lt.s32.totalorder %s45, 1
        %s1002 = scalar_select %p1001, %s45, 1
        %s1003 = smul.addr %s1002, 2
        %s1004 = scalar_lea.vmem %s10, %s1003
        %p1005 = scmp.lt.s32.totalorder %s45, 1
        %s1006 = scalar_select %p1005, %s45, 1
        %s1007 = smul.addr %s1006, 4
        %s1008 = scalar_lea.vmem %s12, %s1007
        %p1009 = scmp.lt.s32.totalorder %s45, 1
        %s1010 = scalar_select %p1009, %s45, 1
        %s1011 = smul.addr %s1010, 2
        %s1012 = scalar_lea.vmem %s14, %s1011
        %p1013 = scmp.lt.s32.totalorder %s45, 1
        %s1014 = scalar_select %p1013, %s45, 1
        %s1015 = scalar_lea.vmem %s16, %s1014
        %p1016 = scmp.lt.s32.totalorder %s45, 1
        %s1017 = scalar_select %p1016, %s45, 1
        %s1018 = smul.addr %s1017, 2
        %s1019 = scalar_lea.vmem %s18, %s1018
        %p1021 = scmp.eq.s32.totalorder %s45, 0
        // Predicated region
        $region137: #{tpu_custom_call.1} parent=95 // pred_check
          %p1022 = pneg %p1021
        $region138: #{tpu_custom_call.1} parent=95 // pred_check_branch
          %1024 = sbr.rel (%p1022) target = $region140
        $region139: #{tpu_custom_call.1} parent=95 // pred_region
          %v1025 = vld [vmem:[%s0] sm:$0xff]
          %v1026 = vld [vmem:[%s0 + $0x8] sm:$0xff]
          %v1027 = vld [vmem:[%s0 + $0x10] sm:$0xff]
          %v1028 = vld [vmem:[%s0 + $0x18] sm:$0xff]
          %1029 = vst [vmem:[#allocation2] sm:$0xff] %v1025
          %1030 = vst [vmem:[#allocation2 + $0x8] sm:$0xff] %v1026
          %1031 = vst [vmem:[#allocation2 + $0x10] sm:$0xff] %v1027
          %1032 = vst [vmem:[#allocation2 + $0x18] sm:$0xff] %v1028
        $region140: #{tpu_custom_call.1} parent=95 // pred_fallthru
          _
        %v1033 = vld [vmem:[#allocation2] sm:$0xff]
        %v1034 = vld [vmem:[#allocation2 + $0x8] sm:$0xff]
        %v1035 = vld [vmem:[#allocation2 + $0x10] sm:$0xff]
        %v1036 = vld [vmem:[#allocation2 + $0x18] sm:$0xff]
        %v1037 = vld [vmem:[#allocation3] sm:$0xff]
        %v1038 = vld [vmem:[#allocation3 + $0x8] sm:$0xff]
        %v1039 = vld [vmem:[#allocation3 + $0x10] sm:$0xff]
        %v1040 = vld [vmem:[#allocation3 + $0x18] sm:$0xff]
        %v1041 = vpack.c.bf16 %v1039, %v1037
        %v1042 = vpack.c.bf16 %v1040, %v1038
        %v1043 = vld [vmem:[%s992] sm:$0x3f]
        %v1044 = vld [vmem:[%s992 + $0x8] sm:$0x3f]
        %v1045 = vadd.f32 %v1033, %v1034
        %1046 = vadd.xlane.f32.xlu0 %v1045
        %v1047 = vpop.xlane.xlu0 %1046
        %v1048 = vadd.f32 %v1035, %v1036
        %1049 = vadd.xlane.f32.xlu0 %v1048
        %v1050 = vpop.xlane.xlu0 %1049
        %v1051 = vrcp.pop 256.0
        %v1052 = vmul.f32 %v1047, %v1051
        %v1053 = vmul.f32 %v1050, %v1051
        %v1054 = vsub.f32 %v1033, %v1052
        %v1055 = vsub.f32 %v1034, %v1052
        %v1056 = vsub.f32 %v1035, %v1053
        %v1057 = vsub.f32 %v1036, %v1053
        %v1058 = vmul.f32 %v1054, %v1054
        %v1059 = vmul.f32 %v1055, %v1055
        %v1060 = vmul.f32 %v1056, %v1056
        %v1061 = vmul.f32 %v1057, %v1057
        %v1062 = vadd.f32 %v1058, %v1059
        %1063 = vadd.xlane.f32.xlu0 %v1062
        %v1064 = vpop.xlane.xlu0 %1063
        %v1065 = vadd.f32 %v1060, %v1061
        %1066 = vadd.xlane.f32.xlu0 %v1065
        %v1067 = vpop.xlane.xlu0 %1066
        %v1068 = vmul.f32 %v1064, %v1051
        %v1069 = vmul.f32 %v1067, %v1051
        %v1070 = vadd.f32 %v1068, 1e-05
        %v1071 = vadd.f32 %v1069, 1e-05
        %v1072 = vrsqrt.pop %v1070
        %v1073 = vrsqrt.pop %v1071
        %v1074 = vmul.f32 %v1054, %v1072
        %v1075 = vmul.f32 %v1055, %v1072
        %v1076 = vmul.f32 %v1056, %v1073
        %v1077 = vmul.f32 %v1057, %v1073
        %v1078 = vlaneseq
        %v1079 = vshrl.u32 %v1078, 7
        %v1080 = vsub.s32 0, %v1079
        %v1081 = vrot.slane %v1043, %v1080
        %v1082 = vlaneseq
        %v1083 = vshrl.u32 %v1082, 7
        %v1084 = vsub.s32 0, %v1083
        %v1085 = vrot.slane %v1044, %v1084
        %v1086 = vmul.f32 %v1074, %v1081
        %v1087 = vmul.f32 %v1075, %v1085
        %v1088 = vmul.f32 %v1076, %v1081
        %v1089 = vmul.f32 %v1077, %v1085
        %v1090 = vlaneseq
        %v1091 = vshrl.u32 %v1090, 7
        %v1092 = vsub.s32 1, %v1091
        %v1093 = vrot.slane %v1043, %v1092
        %v1094 = vlaneseq
        %v1095 = vshrl.u32 %v1094, 7
        %v1096 = vsub.s32 1, %v1095
        %v1097 = vrot.slane %v1044, %v1096
        %v1098 = vadd.f32 %v1086, %v1093
        %v1099 = vadd.f32 %v1087, %v1097
        %v1100 = vadd.f32 %v1088, %v1093
        %v1101 = vadd.f32 %v1089, %v1097
        %v1102 = vpack.c.bf16 %v1100, %v1098
        %v1103 = vpack.c.bf16 %v1101, %v1099
        %v1104 = vld [vmem:[%s822] sm:$0xff]
        %v1105 = vld [vmem:[%s822 + $0x8] sm:$0xff]
        %v1106 = vld [vmem:[%s822 + $0x10] sm:$0xff]
        %v1107 = vld [vmem:[%s822 + $0x18] sm:$0xff]
        %v1108 = vld [vmem:[%s822 + $0x20] sm:$0xff]
        %v1109 = vld [vmem:[%s822 + $0x28] sm:$0xff]
        %v1110 = vld [vmem:[%s822 + $0x30] sm:$0xff]
        %v1111 = vld [vmem:[%s822 + $0x38] sm:$0xff]
        %v1112 = vld [vmem:[%s822 + $0x40] sm:$0xff]
        %v1113 = vld [vmem:[%s822 + $0x48] sm:$0xff]
        %v1114 = vld [vmem:[%s822 + $0x50] sm:$0xff]
        %v1115 = vld [vmem:[%s822 + $0x58] sm:$0xff]
        %v1116 = vld [vmem:[%s822 + $0x60] sm:$0xff]
        %v1117 = vld [vmem:[%s822 + $0x68] sm:$0xff]
        %v1118 = vld [vmem:[%s822 + $0x70] sm:$0xff]
        %v1119 = vld [vmem:[%s822 + $0x78] sm:$0xff]
        %v1120 = vld [vmem:[%s822 + $0x80] sm:$0xff]
        %v1121 = vld [vmem:[%s822 + $0x88] sm:$0xff]
        %v1122 = vld [vmem:[%s822 + $0x90] sm:$0xff]
        %v1123 = vld [vmem:[%s822 + $0x98] sm:$0xff]
        %v1124 = vld [vmem:[%s822 + $0xa0] sm:$0xff]
        %v1125 = vld [vmem:[%s822 + $0xa8] sm:$0xff]
        %v1126 = vld [vmem:[%s822 + $0xb0] sm:$0xff]
        %v1127 = vld [vmem:[%s822 + $0xb8] sm:$0xff]
        %v1128 = vld [vmem:[%s822 + $0xc0] sm:$0xff]
        %v1129 = vld [vmem:[%s822 + $0xc8] sm:$0xff]
        %v1130 = vld [vmem:[%s822 + $0xd0] sm:$0xff]
        %v1131 = vld [vmem:[%s822 + $0xd8] sm:$0xff]
        %v1132 = vld [vmem:[%s822 + $0xe0] sm:$0xff]
        %v1133 = vld [vmem:[%s822 + $0xe8] sm:$0xff]
        %v1134 = vld [vmem:[%s822 + $0xf0] sm:$0xff]
        %v1135 = vld [vmem:[%s822 + $0xf8] sm:$0xff]
        %v1136 = vld [vmem:[%s822 + $0x100] sm:$0xff]
        %v1137 = vld [vmem:[%s822 + $0x108] sm:$0xff]
        %v1138 = vld [vmem:[%s822 + $0x110] sm:$0xff]
        %v1139 = vld [vmem:[%s822 + $0x118] sm:$0xff]
        %v1140 = vld [vmem:[%s822 + $0x120] sm:$0xff]
        %v1141 = vld [vmem:[%s822 + $0x128] sm:$0xff]
        %v1142 = vld [vmem:[%s822 + $0x130] sm:$0xff]
        %v1143 = vld [vmem:[%s822 + $0x138] sm:$0xff]
        %v1144 = vld [vmem:[%s822 + $0x140] sm:$0xff]
        %v1145 = vld [vmem:[%s822 + $0x148] sm:$0xff]
        %v1146 = vld [vmem:[%s822 + $0x150] sm:$0xff]
        %v1147 = vld [vmem:[%s822 + $0x158] sm:$0xff]
        %v1148 = vld [vmem:[%s822 + $0x160] sm:$0xff]
        %v1149 = vld [vmem:[%s822 + $0x168] sm:$0xff]
        %v1150 = vld [vmem:[%s822 + $0x170] sm:$0xff]
        %v1151 = vld [vmem:[%s822 + $0x178] sm:$0xff]
        %v1152 = vld [vmem:[%s822 + $0x180] sm:$0xff]
        %v1153 = vld [vmem:[%s822 + $0x188] sm:$0xff]
        %v1154 = vld [vmem:[%s822 + $0x190] sm:$0xff]
        %v1155 = vld [vmem:[%s822 + $0x198] sm:$0xff]
        %v1156 = vld [vmem:[%s822 + $0x1a0] sm:$0xff]
        %v1157 = vld [vmem:[%s822 + $0x1a8] sm:$0xff]
        %v1158 = vld [vmem:[%s822 + $0x1b0] sm:$0xff]
        %v1159 = vld [vmem:[%s822 + $0x1b8] sm:$0xff]
        %v1160 = vld [vmem:[%s822 + $0x1c0] sm:$0xff]
        %v1161 = vld [vmem:[%s822 + $0x1c8] sm:$0xff]
        %v1162 = vld [vmem:[%s822 + $0x1d0] sm:$0xff]
        %v1163 = vld [vmem:[%s822 + $0x1d8] sm:$0xff]
        %v1164 = vld [vmem:[%s822 + $0x1e0] sm:$0xff]
        %v1165 = vld [vmem:[%s822 + $0x1e8] sm:$0xff]
        %v1166 = vld [vmem:[%s822 + $0x1f0] sm:$0xff]
        %v1167 = vld [vmem:[%s822 + $0x1f8] sm:$0xff]
        %v1168 = vld [vmem:[%s822 + $0x200] sm:$0xff]
        %v1169 = vld [vmem:[%s822 + $0x208] sm:$0xff]
        %v1170 = vld [vmem:[%s822 + $0x210] sm:$0xff]
        %v1171 = vld [vmem:[%s822 + $0x218] sm:$0xff]
        %v1172 = vld [vmem:[%s822 + $0x220] sm:$0xff]
        %v1173 = vld [vmem:[%s822 + $0x228] sm:$0xff]
        %v1174 = vld [vmem:[%s822 + $0x230] sm:$0xff]
        %v1175 = vld [vmem:[%s822 + $0x238] sm:$0xff]
        %v1176 = vld [vmem:[%s822 + $0x240] sm:$0xff]
        %v1177 = vld [vmem:[%s822 + $0x248] sm:$0xff]
        %v1178 = vld [vmem:[%s822 + $0x250] sm:$0xff]
        %v1179 = vld [vmem:[%s822 + $0x258] sm:$0xff]
        %v1180 = vld [vmem:[%s822 + $0x260] sm:$0xff]
        %v1181 = vld [vmem:[%s822 + $0x268] sm:$0xff]
        %v1182 = vld [vmem:[%s822 + $0x270] sm:$0xff]
        %v1183 = vld [vmem:[%s822 + $0x278] sm:$0xff]
        %v1184 = vld [vmem:[%s822 + $0x280] sm:$0xff]
        %v1185 = vld [vmem:[%s822 + $0x288] sm:$0xff]
        %v1186 = vld [vmem:[%s822 + $0x290] sm:$0xff]
        %v1187 = vld [vmem:[%s822 + $0x298] sm:$0xff]
        %v1188 = vld [vmem:[%s822 + $0x2a0] sm:$0xff]
        %v1189 = vld [vmem:[%s822 + $0x2a8] sm:$0xff]
        %v1190 = vld [vmem:[%s822 + $0x2b0] sm:$0xff]
        %v1191 = vld [vmem:[%s822 + $0x2b8] sm:$0xff]
        %v1192 = vld [vmem:[%s822 + $0x2c0] sm:$0xff]
        %v1193 = vld [vmem:[%s822 + $0x2c8] sm:$0xff]
        %v1194 = vld [vmem:[%s822 + $0x2d0] sm:$0xff]
        %v1195 = vld [vmem:[%s822 + $0x2d8] sm:$0xff]
        %v1196 = vld [vmem:[%s822 + $0x2e0] sm:$0xff]
        %v1197 = vld [vmem:[%s822 + $0x2e8] sm:$0xff]
        %v1198 = vld [vmem:[%s822 + $0x2f0] sm:$0xff]
        %v1199 = vld [vmem:[%s822 + $0x2f8] sm:$0xff]
        %v1200 = vld [vmem:[%s996] sm:$0x3f]
        %v1202 = vlaneseq
        %v1203 = vshrl.u32 %v1202, 7
        %v1204 = vsub.s32 0, %v1203
        %v1205 = vrot.slane %v1200, %v1204
        %v1206 = vlaneseq
        %v1207 = vshrl.u32 %v1206, 7
        %v1208 = vsub.s32 1, %v1207
        %v1209 = vrot.slane %v1200, %v1208
        %v1210 = vlaneseq
        %v1211 = vshrl.u32 %v1210, 7
        %v1212 = vsub.s32 2, %v1211
        %v1213 = vrot.slane %v1200, %v1212
        %v1214 = vlaneseq
        %v1215 = vshrl.u32 %v1214, 7
        %v1216 = vsub.s32 3, %v1215
        %v1217 = vrot.slane %v1200, %v1216
        %v1218 = vlaneseq
        %v1219 = vshrl.u32 %v1218, 7
        %v1220 = vsub.s32 4, %v1219
        %v1221 = vrot.slane %v1200, %v1220
        %v1222 = vlaneseq
        %v1223 = vshrl.u32 %v1222, 7
        %v1224 = vsub.s32 5, %v1223
        %v1225 = vrot.slane %v1200, %v1224
        %v1328 = vunpack.c.l.b16 %v1104
        %v1329 = vunpack.c.h.b16 %v1104
        %v1330 = vunpack.c.l.b16 %v1105
        %v1331 = vunpack.c.h.b16 %v1105
        %v1332 = vunpack.c.l.b16 %v1106
        %v1333 = vunpack.c.h.b16 %v1106
        %v1334 = vunpack.c.l.b16 %v1107
        %v1335 = vunpack.c.h.b16 %v1107
        %v1336 = vunpack.c.l.b16 %v1108
        %v1337 = vunpack.c.h.b16 %v1108
        %v1338 = vunpack.c.l.b16 %v1109
        %v1339 = vunpack.c.h.b16 %v1109
        %v1340 = vunpack.c.l.b16 %v1110
        %v1341 = vunpack.c.h.b16 %v1110
        %v1342 = vunpack.c.l.b16 %v1111
        %v1343 = vunpack.c.h.b16 %v1111
        %v1344 = vunpack.c.l.b16 %v1112
        %v1345 = vunpack.c.h.b16 %v1112
        %v1346 = vunpack.c.l.b16 %v1113
        %v1347 = vunpack.c.h.b16 %v1113
        %v1348 = vunpack.c.l.b16 %v1114
        %v1349 = vunpack.c.h.b16 %v1114
        %v1350 = vunpack.c.l.b16 %v1115
        %v1351 = vunpack.c.h.b16 %v1115
        %v1352 = vunpack.c.l.b16 %v1116
        %v1353 = vunpack.c.h.b16 %v1116
        %v1354 = vunpack.c.l.b16 %v1117
        %v1355 = vunpack.c.h.b16 %v1117
        %v1356 = vunpack.c.l.b16 %v1118
        %v1357 = vunpack.c.h.b16 %v1118
        %v1358 = vunpack.c.l.b16 %v1119
        %v1359 = vunpack.c.h.b16 %v1119
        %v1360 = vunpack.c.l.b16 %v1120
        %v1361 = vunpack.c.h.b16 %v1120
        %v1362 = vunpack.c.l.b16 %v1121
        %v1363 = vunpack.c.h.b16 %v1121
        %v1364 = vunpack.c.l.b16 %v1122
        %v1365 = vunpack.c.h.b16 %v1122
        %v1366 = vunpack.c.l.b16 %v1123
        %v1367 = vunpack.c.h.b16 %v1123
        %v1368 = vunpack.c.l.b16 %v1124
        %v1369 = vunpack.c.h.b16 %v1124
        %v1370 = vunpack.c.l.b16 %v1125
        %v1371 = vunpack.c.h.b16 %v1125
        %v1372 = vunpack.c.l.b16 %v1126
        %v1373 = vunpack.c.h.b16 %v1126
        %v1374 = vunpack.c.l.b16 %v1127
        %v1375 = vunpack.c.h.b16 %v1127
        %v1376 = vunpack.c.l.b16 %v1128
        %v1377 = vunpack.c.h.b16 %v1128
        %v1378 = vunpack.c.l.b16 %v1129
        %v1379 = vunpack.c.h.b16 %v1129
        %v1380 = vunpack.c.l.b16 %v1130
        %v1381 = vunpack.c.h.b16 %v1130
        %v1382 = vunpack.c.l.b16 %v1131
        %v1383 = vunpack.c.h.b16 %v1131
        %v1384 = vunpack.c.l.b16 %v1132
        %v1385 = vunpack.c.h.b16 %v1132
        %v1386 = vunpack.c.l.b16 %v1133
        %v1387 = vunpack.c.h.b16 %v1133
        %v1388 = vunpack.c.l.b16 %v1134
        %v1389 = vunpack.c.h.b16 %v1134
        %v1390 = vunpack.c.l.b16 %v1135
        %v1391 = vunpack.c.h.b16 %v1135
        %v1392 = vunpack.c.l.b16 %v1136
        %v1393 = vunpack.c.h.b16 %v1136
        %v1394 = vunpack.c.l.b16 %v1137
        %v1395 = vunpack.c.h.b16 %v1137
        %v1396 = vunpack.c.l.b16 %v1138
        %v1397 = vunpack.c.h.b16 %v1138
        %v1398 = vunpack.c.l.b16 %v1139
        %v1399 = vunpack.c.h.b16 %v1139
        %v1400 = vunpack.c.l.b16 %v1140
        %v1401 = vunpack.c.h.b16 %v1140
        %v1402 = vunpack.c.l.b16 %v1141
        %v1403 = vunpack.c.h.b16 %v1141
        %v1404 = vunpack.c.l.b16 %v1142
        %v1405 = vunpack.c.h.b16 %v1142
        %v1406 = vunpack.c.l.b16 %v1143
        %v1407 = vunpack.c.h.b16 %v1143
        %v1408 = vunpack.c.l.b16 %v1144
        %v1409 = vunpack.c.h.b16 %v1144
        %v1410 = vunpack.c.l.b16 %v1145
        %v1411 = vunpack.c.h.b16 %v1145
        %v1412 = vunpack.c.l.b16 %v1146
        %v1413 = vunpack.c.h.b16 %v1146
        %v1414 = vunpack.c.l.b16 %v1147
        %v1415 = vunpack.c.h.b16 %v1147
        %v1416 = vunpack.c.l.b16 %v1148
        %v1417 = vunpack.c.h.b16 %v1148
        %v1418 = vunpack.c.l.b16 %v1149
        %v1419 = vunpack.c.h.b16 %v1149
        %v1420 = vunpack.c.l.b16 %v1150
        %v1421 = vunpack.c.h.b16 %v1150
        %v1422 = vunpack.c.l.b16 %v1151
        %v1423 = vunpack.c.h.b16 %v1151
        %v1424 = vunpack.c.l.b16 %v1152
        %v1425 = vunpack.c.h.b16 %v1152
        %v1426 = vunpack.c.l.b16 %v1153
        %v1427 = vunpack.c.h.b16 %v1153
        %v1428 = vunpack.c.l.b16 %v1154
        %v1429 = vunpack.c.h.b16 %v1154
        %v1430 = vunpack.c.l.b16 %v1155
        %v1431 = vunpack.c.h.b16 %v1155
        %v1432 = vunpack.c.l.b16 %v1156
        %v1433 = vunpack.c.h.b16 %v1156
        %v1434 = vunpack.c.l.b16 %v1157
        %v1435 = vunpack.c.h.b16 %v1157
        %v1436 = vunpack.c.l.b16 %v1158
        %v1437 = vunpack.c.h.b16 %v1158
        %v1438 = vunpack.c.l.b16 %v1159
        %v1439 = vunpack.c.h.b16 %v1159
        %v1440 = vunpack.c.l.b16 %v1160
        %v1441 = vunpack.c.h.b16 %v1160
        %v1442 = vunpack.c.l.b16 %v1161
        %v1443 = vunpack.c.h.b16 %v1161
        %v1444 = vunpack.c.l.b16 %v1162
        %v1445 = vunpack.c.h.b16 %v1162
        %v1446 = vunpack.c.l.b16 %v1163
        %v1447 = vunpack.c.h.b16 %v1163
        %v1448 = vunpack.c.l.b16 %v1164
        %v1449 = vunpack.c.h.b16 %v1164
        %v1450 = vunpack.c.l.b16 %v1165
        %v1451 = vunpack.c.h.b16 %v1165
        %v1452 = vunpack.c.l.b16 %v1166
        %v1453 = vunpack.c.h.b16 %v1166
        %v1454 = vunpack.c.l.b16 %v1167
        %v1455 = vunpack.c.h.b16 %v1167
        %v1456 = vunpack.c.l.b16 %v1168
        %v1457 = vunpack.c.h.b16 %v1168
        %v1458 = vunpack.c.l.b16 %v1169
        %v1459 = vunpack.c.h.b16 %v1169
        %v1460 = vunpack.c.l.b16 %v1170
        %v1461 = vunpack.c.h.b16 %v1170
        %v1462 = vunpack.c.l.b16 %v1171
        %v1463 = vunpack.c.h.b16 %v1171
        %v1464 = vunpack.c.l.b16 %v1172
        %v1465 = vunpack.c.h.b16 %v1172
        %v1466 = vunpack.c.l.b16 %v1173
        %v1467 = vunpack.c.h.b16 %v1173
        %v1468 = vunpack.c.l.b16 %v1174
        %v1469 = vunpack.c.h.b16 %v1174
        %v1470 = vunpack.c.l.b16 %v1175
        %v1471 = vunpack.c.h.b16 %v1175
        %v1472 = vunpack.c.l.b16 %v1176
        %v1473 = vunpack.c.h.b16 %v1176
        %v1474 = vunpack.c.l.b16 %v1177
        %v1475 = vunpack.c.h.b16 %v1177
        %v1476 = vunpack.c.l.b16 %v1178
        %v1477 = vunpack.c.h.b16 %v1178
        %v1478 = vunpack.c.l.b16 %v1179
        %v1479 = vunpack.c.h.b16 %v1179
        %v1480 = vunpack.c.l.b16 %v1180
        %v1481 = vunpack.c.h.b16 %v1180
        %v1482 = vunpack.c.l.b16 %v1181
        %v1483 = vunpack.c.h.b16 %v1181
        %v1484 = vunpack.c.l.b16 %v1182
        %v1485 = vunpack.c.h.b16 %v1182
        %v1486 = vunpack.c.l.b16 %v1183
        %v1487 = vunpack.c.h.b16 %v1183
        %v1488 = vunpack.c.l.b16 %v1184
        %v1489 = vunpack.c.h.b16 %v1184
        %v1490 = vunpack.c.l.b16 %v1185
        %v1491 = vunpack.c.h.b16 %v1185
        %v1492 = vunpack.c.l.b16 %v1186
        %v1493 = vunpack.c.h.b16 %v1186
        %v1494 = vunpack.c.l.b16 %v1187
        %v1495 = vunpack.c.h.b16 %v1187
        %v1496 = vunpack.c.l.b16 %v1188
        %v1497 = vunpack.c.h.b16 %v1188
        %v1498 = vunpack.c.l.b16 %v1189
        %v1499 = vunpack.c.h.b16 %v1189
        %v1500 = vunpack.c.l.b16 %v1190
        %v1501 = vunpack.c.h.b16 %v1190
        %v1502 = vunpack.c.l.b16 %v1191
        %v1503 = vunpack.c.h.b16 %v1191
        %v1504 = vunpack.c.l.b16 %v1192
        %v1505 = vunpack.c.h.b16 %v1192
        %v1506 = vunpack.c.l.b16 %v1193
        %v1507 = vunpack.c.h.b16 %v1193
        %v1508 = vunpack.c.l.b16 %v1194
        %v1509 = vunpack.c.h.b16 %v1194
        %v1510 = vunpack.c.l.b16 %v1195
        %v1511 = vunpack.c.h.b16 %v1195
        %v1512 = vunpack.c.l.b16 %v1196
        %v1513 = vunpack.c.h.b16 %v1196
        %v1514 = vunpack.c.l.b16 %v1197
        %v1515 = vunpack.c.h.b16 %v1197
        %v1516 = vunpack.c.l.b16 %v1198
        %v1517 = vunpack.c.h.b16 %v1198
        %v1518 = vunpack.c.l.b16 %v1199
        %v1519 = vunpack.c.h.b16 %v1199
        %v1520 = vpack.c.b16 %v1334, %v1328
        %v1521 = vpack.c.b16 %v1335, %v1329
        %v1522 = vpack.c.b16 %v1336, %v1330
        %v1523 = vpack.c.b16 %v1337, %v1331
        %v1524 = vpack.c.b16 %v1338, %v1332
        %v1525 = vpack.c.b16 %v1339, %v1333
        %v1526 = vpack.c.b16 %v1346, %v1340
        %v1527 = vpack.c.b16 %v1347, %v1341
        %v1528 = vpack.c.b16 %v1348, %v1342
        %v1529 = vpack.c.b16 %v1349, %v1343
        %v1530 = vpack.c.b16 %v1350, %v1344
        %v1531 = vpack.c.b16 %v1351, %v1345
        %v1532 = vpack.c.b16 %v1358, %v1352
        %v1533 = vpack.c.b16 %v1359, %v1353
        %v1534 = vpack.c.b16 %v1360, %v1354
        %v1535 = vpack.c.b16 %v1361, %v1355
        %v1536 = vpack.c.b16 %v1362, %v1356
        %v1537 = vpack.c.b16 %v1363, %v1357
        %v1538 = vpack.c.b16 %v1370, %v1364
        %v1539 = vpack.c.b16 %v1371, %v1365
        %v1540 = vpack.c.b16 %v1372, %v1366
        %v1541 = vpack.c.b16 %v1373, %v1367
        %v1542 = vpack.c.b16 %v1374, %v1368
        %v1543 = vpack.c.b16 %v1375, %v1369
        %v1544 = vpack.c.b16 %v1382, %v1376
        %v1545 = vpack.c.b16 %v1383, %v1377
        %v1546 = vpack.c.b16 %v1384, %v1378
        %v1547 = vpack.c.b16 %v1385, %v1379
        %v1548 = vpack.c.b16 %v1386, %v1380
        %v1549 = vpack.c.b16 %v1387, %v1381
        %v1550 = vpack.c.b16 %v1394, %v1388
        %v1551 = vpack.c.b16 %v1395, %v1389
        %v1552 = vpack.c.b16 %v1396, %v1390
        %v1553 = vpack.c.b16 %v1397, %v1391
        %v1554 = vpack.c.b16 %v1398, %v1392
        %v1555 = vpack.c.b16 %v1399, %v1393
        %v1556 = vpack.c.b16 %v1406, %v1400
        %v1557 = vpack.c.b16 %v1407, %v1401
        %v1558 = vpack.c.b16 %v1408, %v1402
        %v1559 = vpack.c.b16 %v1409, %v1403
        %v1560 = vpack.c.b16 %v1410, %v1404
        %v1561 = vpack.c.b16 %v1411, %v1405
        %v1562 = vpack.c.b16 %v1418, %v1412
        %v1563 = vpack.c.b16 %v1419, %v1413
        %v1564 = vpack.c.b16 %v1420, %v1414
        %v1565 = vpack.c.b16 %v1421, %v1415
        %v1566 = vpack.c.b16 %v1422, %v1416
        %v1567 = vpack.c.b16 %v1423, %v1417
        %v1568 = vpack.c.b16 %v1430, %v1424
        %v1569 = vpack.c.b16 %v1431, %v1425
        %v1570 = vpack.c.b16 %v1432, %v1426
        %v1571 = vpack.c.b16 %v1433, %v1427
        %v1572 = vpack.c.b16 %v1434, %v1428
        %v1573 = vpack.c.b16 %v1435, %v1429
        %v1574 = vpack.c.b16 %v1442, %v1436
        %v1575 = vpack.c.b16 %v1443, %v1437
        %v1576 = vpack.c.b16 %v1444, %v1438
        %v1577 = vpack.c.b16 %v1445, %v1439
        %v1578 = vpack.c.b16 %v1446, %v1440
        %v1579 = vpack.c.b16 %v1447, %v1441
        %v1580 = vpack.c.b16 %v1454, %v1448
        %v1581 = vpack.c.b16 %v1455, %v1449
        %v1582 = vpack.c.b16 %v1456, %v1450
        %v1583 = vpack.c.b16 %v1457, %v1451
        %v1584 = vpack.c.b16 %v1458, %v1452
        %v1585 = vpack.c.b16 %v1459, %v1453
        %v1586 = vpack.c.b16 %v1466, %v1460
        %v1587 = vpack.c.b16 %v1467, %v1461
        %v1588 = vpack.c.b16 %v1468, %v1462
        %v1589 = vpack.c.b16 %v1469, %v1463
        %v1590 = vpack.c.b16 %v1470, %v1464
        %v1591 = vpack.c.b16 %v1471, %v1465
        %v1592 = vpack.c.b16 %v1478, %v1472
        %v1593 = vpack.c.b16 %v1479, %v1473
        %v1594 = vpack.c.b16 %v1480, %v1474
        %v1595 = vpack.c.b16 %v1481, %v1475
        %v1596 = vpack.c.b16 %v1482, %v1476
        %v1597 = vpack.c.b16 %v1483, %v1477
        %v1598 = vpack.c.b16 %v1490, %v1484
        %v1599 = vpack.c.b16 %v1491, %v1485
        %v1600 = vpack.c.b16 %v1492, %v1486
        %v1601 = vpack.c.b16 %v1493, %v1487
        %v1602 = vpack.c.b16 %v1494, %v1488
        %v1603 = vpack.c.b16 %v1495, %v1489
        %v1604 = vpack.c.b16 %v1502, %v1496
        %v1605 = vpack.c.b16 %v1503, %v1497
        %v1606 = vpack.c.b16 %v1504, %v1498
        %v1607 = vpack.c.b16 %v1505, %v1499
        %v1608 = vpack.c.b16 %v1506, %v1500
        %v1609 = vpack.c.b16 %v1507, %v1501
        %v1610 = vpack.c.b16 %v1514, %v1508
        %v1611 = vpack.c.b16 %v1515, %v1509
        %v1612 = vpack.c.b16 %v1516, %v1510
        %v1613 = vpack.c.b16 %v1517, %v1511
        %v1614 = vpack.c.b16 %v1518, %v1512
        %v1615 = vpack.c.b16 %v1519, %v1513
        %1712 = vmatprep.subr.bf16.mxu0 %v1521
        %1713 = vmatpush1.bf16.msra.mxu0 %v1520
        %1714 = vmatprep.subr.bf16.mxu0 %v1527
        %1715 = vmatpush1.bf16.msra.mxu0 %v1526
        %1716 = vmatprep.subr.bf16.mxu0 %v1533
        %1717 = vmatpush1.bf16.msra.mxu0 %v1532
        %1718 = vmatprep.subr.bf16.mxu0 %v1539
        %1719 = vmatpush1.bf16.msra.mxu0 %v1538
        %1720 = vmatprep.subr.bf16.mxu0 %v1545
        %1721 = vmatpush1.bf16.msra.mxu0 %v1544
        %1722 = vmatprep.subr.bf16.mxu0 %v1551
        %1723 = vmatpush1.bf16.msra.mxu0 %v1550
        %1724 = vmatprep.subr.bf16.mxu0 %v1557
        %1725 = vmatpush1.bf16.msra.mxu0 %v1556
        %1726 = vmatprep.subr.bf16.mxu0 %v1563
        %1727 = vmatpush1.bf16.msra.mxu0 %v1562
        %1728 = vmatprep.subr.bf16.mxu0 %v1569
        %1729 = vmatpush1.bf16.msra.mxu0 %v1568
        %1730 = vmatprep.subr.bf16.mxu0 %v1575
        %1731 = vmatpush1.bf16.msra.mxu0 %v1574
        %1732 = vmatprep.subr.bf16.mxu0 %v1581
        %1733 = vmatpush1.bf16.msra.mxu0 %v1580
        %1734 = vmatprep.subr.bf16.mxu0 %v1587
        %1735 = vmatpush1.bf16.msra.mxu0 %v1586
        %1736 = vmatprep.subr.bf16.mxu0 %v1593
        %1737 = vmatpush1.bf16.msra.mxu0 %v1592
        %1738 = vmatprep.subr.bf16.mxu0 %v1599
        %1739 = vmatpush1.bf16.msra.mxu0 %v1598
        %1740 = vmatprep.subr.bf16.mxu0 %v1605
        %1741 = vmatpush1.bf16.msra.mxu0 %v1604
        %1742 = vmatprep.subr.bf16.mxu0 %v1611
        %1743 = vmatpush1.bf16.msra.mxu0 %v1610
        %1744 = vmatprep.mubr.bf16.mxu0 %v1103
        %1745 = vmatmul.mubr.bf16.gmra.mrb[0].mxu0 %v1102
        %v1746 = vpop.f32.mrb[0].mxu0
        %v1747 = vadd.f32 %v1205, %v1746
        %v1748 = vpop.f32.mrb[0].mxu0
        %v1749 = vadd.f32 %v1209, %v1748
        %v1750 = vpop.f32.mrb[0].mxu0
        %v1751 = vadd.f32 %v1205, %v1750
        %v1752 = vpop.f32.mrb[0].mxu0
        %v1753 = vadd.f32 %v1209, %v1752
        %1754 = vdwg.mxu0
        %1755 = vmatprep.subr.bf16.mxu0 %v1523
        %1756 = vmatpush1.bf16.msra.mxu0 %v1522
        %1757 = vmatprep.subr.bf16.mxu0 %v1529
        %1758 = vmatpush1.bf16.msra.mxu0 %v1528
        %1759 = vmatprep.subr.bf16.mxu0 %v1535
        %1760 = vmatpush1.bf16.msra.mxu0 %v1534
        %1761 = vmatprep.subr.bf16.mxu0 %v1541
        %1762 = vmatpush1.bf16.msra.mxu0 %v1540
        %1763 = vmatprep.subr.bf16.mxu0 %v1547
        %1764 = vmatpush1.bf16.msra.mxu0 %v1546
        %1765 = vmatprep.subr.bf16.mxu0 %v1553
        %1766 = vmatpush1.bf16.msra.mxu0 %v1552
        %1767 = vmatprep.subr.bf16.mxu0 %v1559
        %1768 = vmatpush1.bf16.msra.mxu0 %v1558
        %1769 = vmatprep.subr.bf16.mxu0 %v1565
        %1770 = vmatpush1.bf16.msra.mxu0 %v1564
        %1771 = vmatprep.subr.bf16.mxu0 %v1571
        %1772 = vmatpush1.bf16.msra.mxu0 %v1570
        %1773 = vmatprep.subr.bf16.mxu0 %v1577
        %1774 = vmatpush1.bf16.msra.mxu0 %v1576
        %1775 = vmatprep.subr.bf16.mxu0 %v1583
        %1776 = vmatpush1.bf16.msra.mxu0 %v1582
        %1777 = vmatprep.subr.bf16.mxu0 %v1589
        %1778 = vmatpush1.bf16.msra.mxu0 %v1588
        %1779 = vmatprep.subr.bf16.mxu0 %v1595
        %1780 = vmatpush1.bf16.msra.mxu0 %v1594
        %1781 = vmatprep.subr.bf16.mxu0 %v1601
        %1782 = vmatpush1.bf16.msra.mxu0 %v1600
        %1783 = vmatprep.subr.bf16.mxu0 %v1607
        %1784 = vmatpush1.bf16.msra.mxu0 %v1606
        %1785 = vmatprep.subr.bf16.mxu0 %v1613
        %1786 = vmatpush1.bf16.msra.mxu0 %v1612
        %1787 = vmatprep.mubr.bf16.mxu0 %v1103
        %1788 = vmatmul.mubr.bf16.gmra.mrb[0].mxu0 %v1102
        %v1789 = vpop.f32.mrb[0].mxu0
        %v1790 = vadd.f32 %v1213, %v1789
        %v1791 = vpop.f32.mrb[0].mxu0
        %v1792 = vadd.f32 %v1217, %v1791
        %v1793 = vpop.f32.mrb[0].mxu0
        %v1794 = vadd.f32 %v1213, %v1793
        %v1795 = vpop.f32.mrb[0].mxu0
        %v1796 = vadd.f32 %v1217, %v1795
        %1797 = vdwg.mxu0
        %1798 = vmatprep.subr.bf16.mxu0 %v1525
        %1799 = vmatpush1.bf16.msra.mxu0 %v1524
        %1800 = vmatprep.subr.bf16.mxu0 %v1531
        %1801 = vmatpush1.bf16.msra.mxu0 %v1530
        %1802 = vmatprep.subr.bf16.mxu0 %v1537
        %1803 = vmatpush1.bf16.msra.mxu0 %v1536
        %1804 = vmatprep.subr.bf16.mxu0 %v1543
        %1805 = vmatpush1.bf16.msra.mxu0 %v1542
        %1806 = vmatprep.subr.bf16.mxu0 %v1549
        %1807 = vmatpush1.bf16.msra.mxu0 %v1548
        %1808 = vmatprep.subr.bf16.mxu0 %v1555
        %1809 = vmatpush1.bf16.msra.mxu0 %v1554
        %1810 = vmatprep.subr.bf16.mxu0 %v1561
        %1811 = vmatpush1.bf16.msra.mxu0 %v1560
        %1812 = vmatprep.subr.bf16.mxu0 %v1567
        %1813 = vmatpush1.bf16.msra.mxu0 %v1566
        %1814 = vmatprep.subr.bf16.mxu0 %v1573
        %1815 = vmatpush1.bf16.msra.mxu0 %v1572
        %1816 = vmatprep.subr.bf16.mxu0 %v1579
        %1817 = vmatpush1.bf16.msra.mxu0 %v1578
        %1818 = vmatprep.subr.bf16.mxu0 %v1585
        %1819 = vmatpush1.bf16.msra.mxu0 %v1584
        %1820 = vmatprep.subr.bf16.mxu0 %v1591
        %1821 = vmatpush1.bf16.msra.mxu0 %v1590
        %1822 = vmatprep.subr.bf16.mxu0 %v1597
        %1823 = vmatpush1.bf16.msra.mxu0 %v1596
        %1824 = vmatprep.subr.bf16.mxu0 %v1603
        %1825 = vmatpush1.bf16.msra.mxu0 %v1602
        %1826 = vmatprep.subr.bf16.mxu0 %v1609
        %1827 = vmatpush1.bf16.msra.mxu0 %v1608
        %1828 = vmatprep.subr.bf16.mxu0 %v1615
        %1829 = vmatpush1.bf16.msra.mxu0 %v1614
        %1830 = vmatprep.mubr.bf16.mxu0 %v1103
        %1831 = vmatmul.mubr.bf16.gmra.mrb[0].mxu0 %v1102
        %v1832 = vpop.f32.mrb[0].mxu0
        %v1833 = vadd.f32 %v1221, %v1832
        %v1834 = vpop.f32.mrb[0].mxu0
        %v1835 = vadd.f32 %v1225, %v1834
        %v1836 = vpop.f32.mrb[0].mxu0
        %v1837 = vadd.f32 %v1221, %v1836
        %v1838 = vpop.f32.mrb[0].mxu0
        %v1839 = vadd.f32 %v1225, %v1838
        %1840 = vdwg.mxu0
        %v1841 = vld [vmem:[%s831] sm:$0xff]
        %v1842 = vld [vmem:[%s831 + $0x8] sm:$0xff]
        %v1843 = vld [vmem:[%s831 + $0x10] sm:$0xff]
        %v1844 = vld [vmem:[%s831 + $0x18] sm:$0xff]
        %v1845 = vld [vmem:[%s831 + $0x20] sm:$0xff]
        %v1846 = vld [vmem:[%s831 + $0x28] sm:$0xff]
        %v1847 = vld [vmem:[%s831 + $0x30] sm:$0xff]
        %v1848 = vld [vmem:[%s831 + $0x38] sm:$0xff]
        %v1849 = vld [vmem:[%s831 + $0x40] sm:$0xff]
        %v1850 = vld [vmem:[%s831 + $0x48] sm:$0xff]
        %v1851 = vld [vmem:[%s831 + $0x50] sm:$0xff]
        %v1852 = vld [vmem:[%s831 + $0x58] sm:$0xff]
        %v1853 = vld [vmem:[%s831 + $0x60] sm:$0xff]
        %v1854 = vld [vmem:[%s831 + $0x68] sm:$0xff]
        %v1855 = vld [vmem:[%s831 + $0x70] sm:$0xff]
        %v1856 = vld [vmem:[%s831 + $0x78] sm:$0xff]
        %v1857 = vld [vmem:[%s831 + $0x80] sm:$0xff]
        %v1858 = vld [vmem:[%s831 + $0x88] sm:$0xff]
        %v1859 = vld [vmem:[%s831 + $0x90] sm:$0xff]
        %v1860 = vld [vmem:[%s831 + $0x98] sm:$0xff]
        %v1861 = vld [vmem:[%s831 + $0xa0] sm:$0xff]
        %v1862 = vld [vmem:[%s831 + $0xa8] sm:$0xff]
        %v1863 = vld [vmem:[%s831 + $0xb0] sm:$0xff]
        %v1864 = vld [vmem:[%s831 + $0xb8] sm:$0xff]
        %v1865 = vld [vmem:[%s831 + $0xc0] sm:$0xff]
        %v1866 = vld [vmem:[%s831 + $0xc8] sm:$0xff]
        %v1867 = vld [vmem:[%s831 + $0xd0] sm:$0xff]
        %v1868 = vld [vmem:[%s831 + $0xd8] sm:$0xff]
        %v1869 = vld [vmem:[%s831 + $0xe0] sm:$0xff]
        %v1870 = vld [vmem:[%s831 + $0xe8] sm:$0xff]
        %v1871 = vld [vmem:[%s831 + $0xf0] sm:$0xff]
        %v1872 = vld [vmem:[%s831 + $0xf8] sm:$0xff]
        %v1873 = vld [vmem:[%s1000] sm:$0x3]
        %v1874 = vld [vmem:[#allocation6] sm:$0xff]
        %v1875 = vld [vmem:[#allocation6 + $0x8] sm:$0xff]
        %v1876 = vld [vmem:[#allocation6 + $0x10] sm:$0xff]
        %v1877 = vld [vmem:[#allocation6 + $0x18] sm:$0xff]
        %v1878 = vld [vmem:[#allocation6 + $0x20] sm:$0xff]
        %v1879 = vld [vmem:[#allocation6 + $0x28] sm:$0xff]
        %v1880 = vld [vmem:[#allocation6 + $0x30] sm:$0xff]
        %v1881 = vld [vmem:[#allocation6 + $0x38] sm:$0xff]
        %v1882 = vld [vmem:[#allocation6 + $0x40] sm:$0xff]
        %v1883 = vld [vmem:[#allocation6 + $0x48] sm:$0xff]
        %v1884 = vld [vmem:[#allocation6 + $0x50] sm:$0xff]
        %v1885 = vld [vmem:[#allocation6 + $0x58] sm:$0xff]
        %v1886 = vld [vmem:[#allocation6 + $0x60] sm:$0xff]
        %v1887 = vld [vmem:[#allocation6 + $0x68] sm:$0xff]
        %v1888 = vld [vmem:[#allocation6 + $0x70] sm:$0xff]
        %v1889 = vld [vmem:[#allocation6 + $0x78] sm:$0xff]
        %1892 = vrot.lane.b32.xlu0 %v1747, 96
        %v1893 = vpop.permute.xlu0 %1892
        %1894 = vrot.lane.b32.xlu0 %v1751, 96
        %v1895 = vpop.permute.xlu0 %1894
        %1898 = vrot.lane.b32.xlu0 %v1747, 64
        %v1899 = vpop.permute.xlu0 %1898
        %1900 = vrot.lane.b32.xlu0 %v1751, 64
        %v1901 = vpop.permute.xlu0 %1900
        %1904 = vrot.lane.b32.xlu0 %v1747, 32
        %v1905 = vpop.permute.xlu0 %1904
        %1906 = vrot.lane.b32.xlu0 %v1751, 32
        %v1907 = vpop.permute.xlu0 %1906
        %1912 = vrot.lane.b32.xlu0 %v1749, 96
        %v1913 = vpop.permute.xlu0 %1912
        %1914 = vrot.lane.b32.xlu0 %v1753, 96
        %v1915 = vpop.permute.xlu0 %1914
        %1918 = vrot.lane.b32.xlu0 %v1749, 64
        %v1919 = vpop.permute.xlu0 %1918
        %1920 = vrot.lane.b32.xlu0 %v1753, 64
        %v1921 = vpop.permute.xlu0 %1920
        %1924 = vrot.lane.b32.xlu0 %v1749, 32
        %v1925 = vpop.permute.xlu0 %1924
        %1926 = vrot.lane.b32.xlu0 %v1753, 32
        %v1927 = vpop.permute.xlu0 %1926
        %v1930 = vpack.c.bf16 %v1751, %v1747
        %v1931 = vpack.c.bf16 %v1895, %v1893
        %v1932 = vpack.c.bf16 %v1901, %v1899
        %v1933 = vpack.c.bf16 %v1907, %v1905
        %v1934 = vpack.c.bf16 %v1753, %v1749
        %v1935 = vpack.c.bf16 %v1915, %v1913
        %v1936 = vpack.c.bf16 %v1921, %v1919
        %v1937 = vpack.c.bf16 %v1927, %v1925
        %1940 = vrot.lane.b32.xlu0 %v1790, 96
        %v1941 = vpop.permute.xlu0 %1940
        %1942 = vrot.lane.b32.xlu0 %v1794, 96
        %v1943 = vpop.permute.xlu0 %1942
        %1946 = vrot.lane.b32.xlu0 %v1790, 64
        %v1947 = vpop.permute.xlu0 %1946
        %1948 = vrot.lane.b32.xlu0 %v1794, 64
        %v1949 = vpop.permute.xlu0 %1948
        %1952 = vrot.lane.b32.xlu0 %v1790, 32
        %v1953 = vpop.permute.xlu0 %1952
        %1954 = vrot.lane.b32.xlu0 %v1794, 32
        %v1955 = vpop.permute.xlu0 %1954
        %1960 = vrot.lane.b32.xlu0 %v1792, 96
        %v1961 = vpop.permute.xlu0 %1960
        %1962 = vrot.lane.b32.xlu0 %v1796, 96
        %v1963 = vpop.permute.xlu0 %1962
        %1966 = vrot.lane.b32.xlu0 %v1792, 64
        %v1967 = vpop.permute.xlu0 %1966
        %1968 = vrot.lane.b32.xlu0 %v1796, 64
        %v1969 = vpop.permute.xlu0 %1968
        %1972 = vrot.lane.b32.xlu0 %v1792, 32
        %v1973 = vpop.permute.xlu0 %1972
        %1974 = vrot.lane.b32.xlu0 %v1796, 32
        %v1975 = vpop.permute.xlu0 %1974
        %v1978 = vpack.c.bf16 %v1794, %v1790
        %v1979 = vpack.c.bf16 %v1943, %v1941
        %v1980 = vpack.c.bf16 %v1949, %v1947
        %v1981 = vpack.c.bf16 %v1955, %v1953
        %v1982 = vpack.c.bf16 %v1796, %v1792
        %v1983 = vpack.c.bf16 %v1963, %v1961
        %v1984 = vpack.c.bf16 %v1969, %v1967
        %v1985 = vpack.c.bf16 %v1975, %v1973
        %1988 = vrot.lane.b32.xlu0 %v1833, 96
        %v1989 = vpop.permute.xlu0 %1988
        %1990 = vrot.lane.b32.xlu0 %v1837, 96
        %v1991 = vpop.permute.xlu0 %1990
        %1994 = vrot.lane.b32.xlu0 %v1833, 64
        %v1995 = vpop.permute.xlu0 %1994
        %1996 = vrot.lane.b32.xlu0 %v1837, 64
        %v1997 = vpop.permute.xlu0 %1996
        %2000 = vrot.lane.b32.xlu0 %v1833, 32
        %v2001 = vpop.permute.xlu0 %2000
        %2002 = vrot.lane.b32.xlu0 %v1837, 32
        %v2003 = vpop.permute.xlu0 %2002
        %2008 = vrot.lane.b32.xlu0 %v1835, 96
        %v2009 = vpop.permute.xlu0 %2008
        %2010 = vrot.lane.b32.xlu0 %v1839, 96
        %v2011 = vpop.permute.xlu0 %2010
        %2014 = vrot.lane.b32.xlu0 %v1835, 64
        %v2015 = vpop.permute.xlu0 %2014
        %2016 = vrot.lane.b32.xlu0 %v1839, 64
        %v2017 = vpop.permute.xlu0 %2016
        %2020 = vrot.lane.b32.xlu0 %v1835, 32
        %v2021 = vpop.permute.xlu0 %2020
        %2022 = vrot.lane.b32.xlu0 %v1839, 32
        %v2023 = vpop.permute.xlu0 %2022
        %v2026 = vpack.c.bf16 %v1837, %v1833
        %v2027 = vpack.c.bf16 %v1991, %v1989
        %v2028 = vpack.c.bf16 %v1997, %v1995
        %v2029 = vpack.c.bf16 %v2003, %v2001
        %v2030 = vpack.c.bf16 %v1839, %v1835
        %v2031 = vpack.c.bf16 %v2011, %v2009
        %v2032 = vpack.c.bf16 %v2017, %v2015
        %v2033 = vpack.c.bf16 %v2023, %v2021
        %vm2034 = vcmask 261120
        %v2036 = vsel %vm2034, %v1930, 0
        %v2039 = vsel %vm2034, %v1931, 0
        %v2042 = vsel %vm2034, %v1932, 0
        %v2045 = vsel %vm2034, %v1933, 0
        %v2048 = vsel %vm2034, %v1934, 0
        %v2051 = vsel %vm2034, %v1935, 0
        %v2054 = vsel %vm2034, %v1936, 0
        %v2057 = vsel %vm2034, %v1937, 0
        %v2060 = vsel %vm2034, %v1978, 0
        %v2063 = vsel %vm2034, %v1979, 0
        %v2066 = vsel %vm2034, %v1980, 0
        %v2069 = vsel %vm2034, %v1981, 0
        %v2072 = vsel %vm2034, %v1982, 0
        %v2075 = vsel %vm2034, %v1983, 0
        %v2078 = vsel %vm2034, %v1984, 0
        %v2081 = vsel %vm2034, %v1985, 0
        %2083 = vmatprep.subr.bf16.mxu0 0
        %2084 = vmatpush1.bf16.xpose.msra.mxu0 %v2060
        %2085 = vmatprep.subr.bf16.mxu0 0
        %2086 = vmatpush1.bf16.xpose.msra.mxu0 %v2063
        %2087 = vmatprep.subr.bf16.mxu0 0
        %2088 = vmatpush1.bf16.xpose.msra.mxu0 %v2066
        %2089 = vmatprep.subr.bf16.mxu0 0
        %2090 = vmatpush1.bf16.xpose.msra.mxu0 %v2069
        %2091 = vmatprep.subr.bf16.mxu0 0
        %2092 = vmatpush1.bf16.xpose.msra.mxu0 %v2072
        %2093 = vmatprep.subr.bf16.mxu0 0
        %2094 = vmatpush1.bf16.xpose.msra.mxu0 %v2075
        %2095 = vmatprep.subr.bf16.mxu0 0
        %2096 = vmatpush1.bf16.xpose.msra.mxu0 %v2078
        %2097 = vmatprep.subr.bf16.mxu0 0
        %2098 = vmatpush1.bf16.xpose.msra.mxu0 %v2081
        %2099 = vmatprep.subr.bf16.mxu0 0
        %2100 = vmatpush1.bf16.xpose.msra.mxu0 0
        %2101 = vmatprep.subr.bf16.mxu0 0
        %2102 = vmatpush1.bf16.xpose.msra.mxu0 0
        %2103 = vmatprep.subr.bf16.mxu0 0
        %2104 = vmatpush1.bf16.xpose.msra.mxu0 0
        %2105 = vmatprep.subr.bf16.mxu0 0
        %2106 = vmatpush1.bf16.xpose.msra.mxu0 0
        %2107 = vmatprep.subr.bf16.mxu0 0
        %2108 = vmatpush1.bf16.xpose.msra.mxu0 0
        %2109 = vmatprep.subr.bf16.mxu0 0
        %2110 = vmatpush1.bf16.xpose.msra.mxu0 0
        %2111 = vmatprep.subr.bf16.mxu0 0
        %2112 = vmatpush1.bf16.xpose.msra.mxu0 0
        %2113 = vmatprep.subr.bf16.mxu0 0
        %2114 = vmatpush1.bf16.xpose.msra.mxu0 0
        %2115 = vmatprep.mubr.bf16.mxu0 0
        %2116 = vmatmul.mubr.bf16.gmra.mrb[0].mxu0 %v2036
        %v2117 = vpop.f32.mrb[0].mxu0
        %v2118 = vadd.f32 %v1874, %v2117
        %v2119 = vpop.f32.mrb[0].mxu0
        %v2120 = vpop.f32.mrb[0].mxu0
        %v2121 = vadd.f32 %v1875, %v2120
        %v2122 = vpop.f32.mrb[0].mxu0
        %2123 = vmatprep.mubr.bf16.mxu0 0
        %2124 = vmatmul.mubr.bf16.gmra.mrb[0].mxu0 %v2039
        %v2125 = vpop.f32.mrb[0].mxu0
        %v2126 = vadd.f32 %v1876, %v2125
        %v2127 = vpop.f32.mrb[0].mxu0
        %v2128 = vpop.f32.mrb[0].mxu0
        %v2129 = vadd.f32 %v1877, %v2128
        %v2130 = vpop.f32.mrb[0].mxu0
        %2131 = vmatprep.mubr.bf16.mxu0 0
        %2132 = vmatmul.mubr.bf16.gmra.mrb[0].mxu0 %v2042
        %v2133 = vpop.f32.mrb[0].mxu0
        %v2134 = vadd.f32 %v1878, %v2133
        %v2135 = vpop.f32.mrb[0].mxu0
        %v2136 = vpop.f32.mrb[0].mxu0
        %v2137 = vadd.f32 %v1879, %v2136
        %v2138 = vpop.f32.mrb[0].mxu0
        %2139 = vmatprep.mubr.bf16.mxu0 0
        %2140 = vmatmul.mubr.bf16.gmra.mrb[0].mxu0 %v2045
        %v2141 = vpop.f32.mrb[0].mxu0
        %v2142 = vadd.f32 %v1880, %v2141
        %v2143 = vpop.f32.mrb[0].mxu0
        %v2144 = vpop.f32.mrb[0].mxu0
        %v2145 = vadd.f32 %v1881, %v2144
        %v2146 = vpop.f32.mrb[0].mxu0
        %2147 = vmatprep.mubr.bf16.mxu0 0
        %2148 = vmatmul.mubr.bf16.gmra.mrb[0].mxu0 %v2048
        %v2149 = vpop.f32.mrb[0].mxu0
        %v2150 = vadd.f32 %v1882, %v2149
        %v2151 = vpop.f32.mrb[0].mxu0
        %v2152 = vpop.f32.mrb[0].mxu0
        %v2153 = vadd.f32 %v1883, %v2152
        %v2154 = vpop.f32.mrb[0].mxu0
        %2155 = vmatprep.mubr.bf16.mxu0 0
        %2156 = vmatmul.mubr.bf16.gmra.mrb[0].mxu0 %v2051
        %v2157 = vpop.f32.mrb[0].mxu0
        %v2158 = vadd.f32 %v1884, %v2157
        %v2159 = vpop.f32.mrb[0].mxu0
        %v2160 = vpop.f32.mrb[0].mxu0
        %v2161 = vadd.f32 %v1885, %v2160
        %v2162 = vpop.f32.mrb[0].mxu0
        %2163 = vmatprep.mubr.bf16.mxu0 0
        %2164 = vmatmul.mubr.bf16.gmra.mrb[0].mxu0 %v2054
        %v2165 = vpop.f32.mrb[0].mxu0
        %v2166 = vadd.f32 %v1886, %v2165
        %v2167 = vpop.f32.mrb[0].mxu0
        %v2168 = vpop.f32.mrb[0].mxu0
        %v2169 = vadd.f32 %v1887, %v2168
        %v2170 = vpop.f32.mrb[0].mxu0
        %2171 = vmatprep.mubr.bf16.mxu0 0
        %2172 = vmatmul.mubr.bf16.gmra.mrb[0].mxu0 %v2057
        %v2173 = vpop.f32.mrb[0].mxu0
        %v2174 = vadd.f32 %v1888, %v2173
        %v2175 = vpop.f32.mrb[0].mxu0
        %v2176 = vpop.f32.mrb[0].mxu0
        %v2177 = vadd.f32 %v1889, %v2176
        %v2178 = vpop.f32.mrb[0].mxu0
        %2179 = vdwg.mxu0
        %2180 = vmax.xlane.f32.xlu0 %v2118
        %v2181 = vpop.xlane.xlu0 %2180
        %2182 = vmax.xlane.f32.xlu0 %v2121
        %v2183 = vpop.xlane.xlu0 %2182
        %2184 = vmax.xlane.f32.xlu0 %v2126
        %v2185 = vpop.xlane.xlu0 %2184
        %2186 = vmax.xlane.f32.xlu0 %v2129
        %v2187 = vpop.xlane.xlu0 %2186
        %2188 = vmax.xlane.f32.xlu0 %v2134
        %v2189 = vpop.xlane.xlu0 %2188
        %2190 = vmax.xlane.f32.xlu0 %v2137
        %v2191 = vpop.xlane.xlu0 %2190
        %2192 = vmax.xlane.f32.xlu0 %v2142
        %v2193 = vpop.xlane.xlu0 %2192
        %2194 = vmax.xlane.f32.xlu0 %v2145
        %v2195 = vpop.xlane.xlu0 %2194
        %2196 = vmax.xlane.f32.xlu0 %v2150
        %v2197 = vpop.xlane.xlu0 %2196
        %2198 = vmax.xlane.f32.xlu0 %v2153
        %v2199 = vpop.xlane.xlu0 %2198
        %2200 = vmax.xlane.f32.xlu0 %v2158
        %v2201 = vpop.xlane.xlu0 %2200
        %2202 = vmax.xlane.f32.xlu0 %v2161
        %v2203 = vpop.xlane.xlu0 %2202
        %2204 = vmax.xlane.f32.xlu0 %v2166
        %v2205 = vpop.xlane.xlu0 %2204
        %2206 = vmax.xlane.f32.xlu0 %v2169
        %v2207 = vpop.xlane.xlu0 %2206
        %2208 = vmax.xlane.f32.xlu0 %v2174
        %v2209 = vpop.xlane.xlu0 %2208
        %2210 = vmax.xlane.f32.xlu0 %v2177
        %v2211 = vpop.xlane.xlu0 %2210
        %v2212 = vsub.f32 %v2118, %v2181
        %v2213 = vsub.f32 %v2121, %v2183
        %v2214 = vsub.f32 %v2126, %v2185
        %v2215 = vsub.f32 %v2129, %v2187
        %v2216 = vsub.f32 %v2134, %v2189
        %v2217 = vsub.f32 %v2137, %v2191
        %v2218 = vsub.f32 %v2142, %v2193
        %v2219 = vsub.f32 %v2145, %v2195
        %v2220 = vsub.f32 %v2150, %v2197
        %v2221 = vsub.f32 %v2153, %v2199
        %v2222 = vsub.f32 %v2158, %v2201
        %v2223 = vsub.f32 %v2161, %v2203
        %v2224 = vsub.f32 %v2166, %v2205
        %v2225 = vsub.f32 %v2169, %v2207
        %v2226 = vsub.f32 %v2174, %v2209
        %v2227 = vsub.f32 %v2177, %v2211
        %v2228 = vmul.f32 %v2212, 1.442695
        %v2229 = vpow.pop %v2228
        %v2230 = vmul.f32 %v2213, 1.442695
        %v2231 = vpow.pop %v2230
        %v2232 = vmul.f32 %v2214, 1.442695
        %v2233 = vpow.pop %v2232
        %v2234 = vmul.f32 %v2215, 1.442695
        %v2235 = vpow.pop %v2234
        %v2236 = vmul.f32 %v2216, 1.442695
        %v2237 = vpow.pop %v2236
        %v2238 = vmul.f32 %v2217, 1.442695
        %v2239 = vpow.pop %v2238
        %v2240 = vmul.f32 %v2218, 1.442695
        %v2241 = vpow.pop %v2240
        %v2242 = vmul.f32 %v2219, 1.442695
        %v2243 = vpow.pop %v2242
        %v2244 = vmul.f32 %v2220, 1.442695
        %v2245 = vpow.pop %v2244
        %v2246 = vmul.f32 %v2221, 1.442695
        %v2247 = vpow.pop %v2246
        %v2248 = vmul.f32 %v2222, 1.442695
        %v2249 = vpow.pop %v2248
        %v2250 = vmul.f32 %v2223, 1.442695
        %v2251 = vpow.pop %v2250
        %v2252 = vmul.f32 %v2224, 1.442695
        %v2253 = vpow.pop %v2252
        %v2254 = vmul.f32 %v2225, 1.442695
        %v2255 = vpow.pop %v2254
        %v2256 = vmul.f32 %v2226, 1.442695
        %v2257 = vpow.pop %v2256
        %v2258 = vmul.f32 %v2227, 1.442695
        %v2259 = vpow.pop %v2258
        %2260 = vadd.xlane.f32.xlu0 %v2229
        %v2261 = vpop.xlane.xlu0 %2260
        %2262 = vadd.xlane.f32.xlu0 %v2231
        %v2263 = vpop.xlane.xlu0 %2262
        %2264 = vadd.xlane.f32.xlu0 %v2233
        %v2265 = vpop.xlane.xlu0 %2264
        %2266 = vadd.xlane.f32.xlu0 %v2235
        %v2267 = vpop.xlane.xlu0 %2266
        %2268 = vadd.xlane.f32.xlu0 %v2237
        %v2269 = vpop.xlane.xlu0 %2268
        %2270 = vadd.xlane.f32.xlu0 %v2239
        %v2271 = vpop.xlane.xlu0 %2270
        %2272 = vadd.xlane.f32.xlu0 %v2241
        %v2273 = vpop.xlane.xlu0 %2272
        %2274 = vadd.xlane.f32.xlu0 %v2243
        %v2275 = vpop.xlane.xlu0 %2274
        %2276 = vadd.xlane.f32.xlu0 %v2245
        %v2277 = vpop.xlane.xlu0 %2276
        %2278 = vadd.xlane.f32.xlu0 %v2247
        %v2279 = vpop.xlane.xlu0 %2278
        %2280 = vadd.xlane.f32.xlu0 %v2249
        %v2281 = vpop.xlane.xlu0 %2280
        %2282 = vadd.xlane.f32.xlu0 %v2251
        %v2283 = vpop.xlane.xlu0 %2282
        %2284 = vadd.xlane.f32.xlu0 %v2253
        %v2285 = vpop.xlane.xlu0 %2284
        %2286 = vadd.xlane.f32.xlu0 %v2255
        %v2287 = vpop.xlane.xlu0 %2286
        %2288 = vadd.xlane.f32.xlu0 %v2257
        %v2289 = vpop.xlane.xlu0 %2288
        %2290 = vadd.xlane.f32.xlu0 %v2259
        %v2291 = vpop.xlane.xlu0 %2290
        %v2292 = vrcp.pop %v2261
        %v2293 = vrcp.pop %v2263
        %v2294 = vrcp.pop %v2265
        %v2295 = vrcp.pop %v2267
        %v2296 = vrcp.pop %v2269
        %v2297 = vrcp.pop %v2271
        %v2298 = vrcp.pop %v2273
        %v2299 = vrcp.pop %v2275
        %v2300 = vrcp.pop %v2277
        %v2301 = vrcp.pop %v2279
        %v2302 = vrcp.pop %v2281
        %v2303 = vrcp.pop %v2283
        %v2304 = vrcp.pop %v2285
        %v2305 = vrcp.pop %v2287
        %v2306 = vrcp.pop %v2289
        %v2307 = vrcp.pop %v2291
        %v2308 = vmul.f32 %v2229, %v2292
        %v2309 = vmul.f32 %v2231, %v2293
        %v2310 = vmul.f32 %v2233, %v2294
        %v2311 = vmul.f32 %v2235, %v2295
        %v2312 = vmul.f32 %v2237, %v2296
        %v2313 = vmul.f32 %v2239, %v2297
        %v2314 = vmul.f32 %v2241, %v2298
        %v2315 = vmul.f32 %v2243, %v2299
        %v2316 = vmul.f32 %v2245, %v2300
        %v2317 = vmul.f32 %v2247, %v2301
        %v2318 = vmul.f32 %v2249, %v2302
        %v2319 = vmul.f32 %v2251, %v2303
        %v2320 = vmul.f32 %v2253, %v2304
        %v2321 = vmul.f32 %v2255, %v2305
        %v2322 = vmul.f32 %v2257, %v2306
        %v2323 = vmul.f32 %v2259, %v2307
        %v2324 = vpack.c.bf16 %v2309, %v2308
        %v2325 = vpack.c.bf16 %v2311, %v2310
        %v2326 = vpack.c.bf16 %v2313, %v2312
        %v2327 = vpack.c.bf16 %v2315, %v2314
        %v2328 = vpack.c.bf16 %v2317, %v2316
        %v2329 = vpack.c.bf16 %v2319, %v2318
        %v2330 = vpack.c.bf16 %v2321, %v2320
        %v2331 = vpack.c.bf16 %v2323, %v2322
        %2332 = vmatprep.subr.bf16.mxu0 0
        %2333 = vmatpush1.bf16.msra.mxu0 %v2026
        %2334 = vmatprep.subr.bf16.mxu0 0
        %2335 = vmatpush1.bf16.msra.mxu0 %v2027
        %2336 = vmatprep.subr.bf16.mxu0 0
        %2337 = vmatpush1.bf16.msra.mxu0 %v2028
        %2338 = vmatprep.subr.bf16.mxu0 0
        %2339 = vmatpush1.bf16.msra.mxu0 %v2029
        %2340 = vmatprep.subr.bf16.mxu0 0
        %2341 = vmatpush1.bf16.msra.mxu0 %v2030
        %2342 = vmatprep.subr.bf16.mxu0 0
        %2343 = vmatpush1.bf16.msra.mxu0 %v2031
        %2344 = vmatprep.subr.bf16.mxu0 0
        %2345 = vmatpush1.bf16.msra.mxu0 %v2032
        %2346 = vmatprep.subr.bf16.mxu0 0
        %2347 = vmatpush1.bf16.msra.mxu0 %v2033
        %2348 = vmatprep.subr.bf16.mxu0 0
        %2349 = vmatpush1.bf16.msra.mxu0 0
        %2350 = vmatprep.subr.bf16.mxu0 0
        %2351 = vmatpush1.bf16.msra.mxu0 0
        %2352 = vmatprep.subr.bf16.mxu0 0
        %2353 = vmatpush1.bf16.msra.mxu0 0
        %2354 = vmatprep.subr.bf16.mxu0 0
        %2355 = vmatpush1.bf16.msra.mxu0 0
        %2356 = vmatprep.subr.bf16.mxu0 0
        %2357 = vmatpush1.bf16.msra.mxu0 0
        %2358 = vmatprep.subr.bf16.mxu0 0
        %2359 = vmatpush1.bf16.msra.mxu0 0
        %2360 = vmatprep.subr.bf16.mxu0 0
        %2361 = vmatpush1.bf16.msra.mxu0 0
        %2362 = vmatprep.subr.bf16.mxu0 0
        %2363 = vmatpush1.bf16.msra.mxu0 0
        %2364 = vmatprep.mubr.bf16.mxu0 0
        %2365 = vmatmul.mubr.bf16.gmra.mrb[0].mxu0 %v2324
        %v2366 = vpop.f32.mrb[0].mxu0
        %v2367 = vadd.f32 0.0, %v2366
        %v2368 = vpop.f32.mrb[0].mxu0
        %v2369 = vpop.f32.mrb[0].mxu0
        %v2370 = vadd.f32 0.0, %v2369
        %v2371 = vpop.f32.mrb[0].mxu0
        %2372 = vmatprep.mubr.bf16.mxu0 0
        %2373 = vmatmul.mubr.bf16.gmra.mrb[0].mxu0 %v2325
        %v2374 = vpop.f32.mrb[0].mxu0
        %v2375 = vadd.f32 0.0, %v2374
        %v2376 = vpop.f32.mrb[0].mxu0
        %v2377 = vpop.f32.mrb[0].mxu0
        %v2378 = vadd.f32 0.0, %v2377
        %v2379 = vpop.f32.mrb[0].mxu0
        %2380 = vmatprep.mubr.bf16.mxu0 0
        %2381 = vmatmul.mubr.bf16.gmra.mrb[0].mxu0 %v2326
        %v2382 = vpop.f32.mrb[0].mxu0
        %v2383 = vadd.f32 0.0, %v2382
        %v2384 = vpop.f32.mrb[0].mxu0
        %v2385 = vpop.f32.mrb[0].mxu0
        %v2386 = vadd.f32 0.0, %v2385
        %v2387 = vpop.f32.mrb[0].mxu0
        %2388 = vmatprep.mubr.bf16.mxu0 0
        %2389 = vmatmul.mubr.bf16.gmra.mrb[0].mxu0 %v2327
        %v2390 = vpop.f32.mrb[0].mxu0
        %v2391 = vadd.f32 0.0, %v2390
        %v2392 = vpop.f32.mrb[0].mxu0
        %v2393 = vpop.f32.mrb[0].mxu0
        %v2394 = vadd.f32 0.0, %v2393
        %v2395 = vpop.f32.mrb[0].mxu0
        %2396 = vmatprep.mubr.bf16.mxu0 0
        %2397 = vmatmul.mubr.bf16.gmra.mrb[0].mxu0 %v2328
        %v2398 = vpop.f32.mrb[0].mxu0
        %v2399 = vadd.f32 0.0, %v2398
        %v2400 = vpop.f32.mrb[0].mxu0
        %v2401 = vpop.f32.mrb[0].mxu0
        %v2402 = vadd.f32 0.0, %v2401
        %v2403 = vpop.f32.mrb[0].mxu0
        %2404 = vmatprep.mubr.bf16.mxu0 0
        %2405 = vmatmul.mubr.bf16.gmra.mrb[0].mxu0 %v2329
        %v2406 = vpop.f32.mrb[0].mxu0
        %v2407 = vadd.f32 0.0, %v2406
        %v2408 = vpop.f32.mrb[0].mxu0
        %v2409 = vpop.f32.mrb[0].mxu0
        %v2410 = vadd.f32 0.0, %v2409
        %v2411 = vpop.f32.mrb[0].mxu0
        %2412 = vmatprep.mubr.bf16.mxu0 0
        %2413 = vmatmul.mubr.bf16.gmra.mrb[0].mxu0 %v2330
        %v2414 = vpop.f32.mrb[0].mxu0
        %v2415 = vadd.f32 0.0, %v2414
        %v2416 = vpop.f32.mrb[0].mxu0
        %v2417 = vpop.f32.mrb[0].mxu0
        %v2418 = vadd.f32 0.0, %v2417
        %v2419 = vpop.f32.mrb[0].mxu0
        %2420 = vmatprep.mubr.bf16.mxu0 0
        %2421 = vmatmul.mubr.bf16.gmra.mrb[0].mxu0 %v2331
        %v2422 = vpop.f32.mrb[0].mxu0
        %v2423 = vadd.f32 0.0, %v2422
        %v2424 = vpop.f32.mrb[0].mxu0
        %v2425 = vpop.f32.mrb[0].mxu0
        %v2426 = vadd.f32 0.0, %v2425
        %v2427 = vpop.f32.mrb[0].mxu0
        %2428 = vdwg.mxu0
        %2431 = vrot.lane.b32.xlu0 %v2375, 32
        %v2432 = vpop.permute.xlu0 %2431
        %2433 = vrot.lane.b32.xlu0 %v2378, 32
        %v2434 = vpop.permute.xlu0 %2433
        %2439 = vrot.lane.b32.xlu0 %v2383, 64
        %v2440 = vpop.permute.xlu0 %2439
        %2441 = vrot.lane.b32.xlu0 %v2386, 64
        %v2442 = vpop.permute.xlu0 %2441
        %2447 = vrot.lane.b32.xlu0 %v2391, 96
        %v2448 = vpop.permute.xlu0 %2447
        %2449 = vrot.lane.b32.xlu0 %v2394, 96
        %v2450 = vpop.permute.xlu0 %2449
        %2455 = vrot.lane.b32.xlu0 %v2407, 32
        %v2456 = vpop.permute.xlu0 %2455
        %2457 = vrot.lane.b32.xlu0 %v2410, 32
        %v2458 = vpop.permute.xlu0 %2457
        %2463 = vrot.lane.b32.xlu0 %v2415, 64
        %v2464 = vpop.permute.xlu0 %2463
        %2465 = vrot.lane.b32.xlu0 %v2418, 64
        %v2466 = vpop.permute.xlu0 %2465
        %2471 = vrot.lane.b32.xlu0 %v2423, 96
        %v2472 = vpop.permute.xlu0 %2471
        %2473 = vrot.lane.b32.xlu0 %v2426, 96
        %v2474 = vpop.permute.xlu0 %2473
        %v2477 = vsel %vm2034, %v2367, %v2432
        %v2478 = vsel %vm2034, %v2370, %v2434
        %vm2479 = vcmask 523264
        %v2480 = vsel %vm2479, %v2477, %v2440
        %v2481 = vsel %vm2479, %v2478, %v2442
        %vm2482 = vcmask 785408
        %v2483 = vsel %vm2482, %v2480, %v2448
        %v2484 = vsel %vm2482, %v2481, %v2450
        %v2485 = vsel %vm2034, %v2399, %v2456
        %v2486 = vsel %vm2034, %v2402, %v2458
        %v2487 = vsel %vm2479, %v2485, %v2464
        %v2488 = vsel %vm2479, %v2486, %v2466
        %v2489 = vsel %vm2482, %v2487, %v2472
        %v2490 = vsel %vm2482, %v2488, %v2474
        %v2491 = vpack.c.bf16 %v2484, %v2483
        %v2492 = vpack.c.bf16 %v2490, %v2489
        %v2494 = vlaneseq
        %v2495 = vshrl.u32 %v2494, 7
        %v2496 = vsub.s32 0, %v2495
        %v2497 = vrot.slane %v1873, %v2496
        %v2498 = vlaneseq
        %v2499 = vshrl.u32 %v2498, 7
        %v2500 = vsub.s32 1, %v2499
        %v2501 = vrot.slane %v1873, %v2500
        %v2536 = vunpack.c.l.b16 %v1841
        %v2537 = vunpack.c.h.b16 %v1841
        %v2538 = vunpack.c.l.b16 %v1842
        %v2539 = vunpack.c.h.b16 %v1842
        %v2540 = vunpack.c.l.b16 %v1843
        %v2541 = vunpack.c.h.b16 %v1843
        %v2542 = vunpack.c.l.b16 %v1844
        %v2543 = vunpack.c.h.b16 %v1844
        %v2544 = vunpack.c.l.b16 %v1845
        %v2545 = vunpack.c.h.b16 %v1845
        %v2546 = vunpack.c.l.b16 %v1846
        %v2547 = vunpack.c.h.b16 %v1846
        %v2548 = vunpack.c.l.b16 %v1847
        %v2549 = vunpack.c.h.b16 %v1847
        %v2550 = vunpack.c.l.b16 %v1848
        %v2551 = vunpack.c.h.b16 %v1848
        %v2552 = vunpack.c.l.b16 %v1849
        %v2553 = vunpack.c.h.b16 %v1849
        %v2554 = vunpack.c.l.b16 %v1850
        %v2555 = vunpack.c.h.b16 %v1850
        %v2556 = vunpack.c.l.b16 %v1851
        %v2557 = vunpack.c.h.b16 %v1851
        %v2558 = vunpack.c.l.b16 %v1852
        %v2559 = vunpack.c.h.b16 %v1852
        %v2560 = vunpack.c.l.b16 %v1853
        %v2561 = vunpack.c.h.b16 %v1853
        %v2562 = vunpack.c.l.b16 %v1854
        %v2563 = vunpack.c.h.b16 %v1854
        %v2564 = vunpack.c.l.b16 %v1855
        %v2565 = vunpack.c.h.b16 %v1855
        %v2566 = vunpack.c.l.b16 %v1856
        %v2567 = vunpack.c.h.b16 %v1856
        %v2568 = vunpack.c.l.b16 %v1857
        %v2569 = vunpack.c.h.b16 %v1857
        %v2570 = vunpack.c.l.b16 %v1858
        %v2571 = vunpack.c.h.b16 %v1858
        %v2572 = vunpack.c.l.b16 %v1859
        %v2573 = vunpack.c.h.b16 %v1859
        %v2574 = vunpack.c.l.b16 %v1860
        %v2575 = vunpack.c.h.b16 %v1860
        %v2576 = vunpack.c.l.b16 %v1861
        %v2577 = vunpack.c.h.b16 %v1861
        %v2578 = vunpack.c.l.b16 %v1862
        %v2579 = vunpack.c.h.b16 %v1862
        %v2580 = vunpack.c.l.b16 %v1863
        %v2581 = vunpack.c.h.b16 %v1863
        %v2582 = vunpack.c.l.b16 %v1864
        %v2583 = vunpack.c.h.b16 %v1864
        %v2584 = vunpack.c.l.b16 %v1865
        %v2585 = vunpack.c.h.b16 %v1865
        %v2586 = vunpack.c.l.b16 %v1866
        %v2587 = vunpack.c.h.b16 %v1866
        %v2588 = vunpack.c.l.b16 %v1867
        %v2589 = vunpack.c.h.b16 %v1867
        %v2590 = vunpack.c.l.b16 %v1868
        %v2591 = vunpack.c.h.b16 %v1868
        %v2592 = vunpack.c.l.b16 %v1869
        %v2593 = vunpack.c.h.b16 %v1869
        %v2594 = vunpack.c.l.b16 %v1870
        %v2595 = vunpack.c.h.b16 %v1870
        %v2596 = vunpack.c.l.b16 %v1871
        %v2597 = vunpack.c.h.b16 %v1871
        %v2598 = vunpack.c.l.b16 %v1872
        %v2599 = vunpack.c.h.b16 %v1872
        %v2600 = vpack.c.b16 %v2538, %v2536
        %v2601 = vpack.c.b16 %v2539, %v2537
        %v2602 = vpack.c.b16 %v2542, %v2540
        %v2603 = vpack.c.b16 %v2543, %v2541
        %v2604 = vpack.c.b16 %v2546, %v2544
        %v2605 = vpack.c.b16 %v2547, %v2545
        %v2606 = vpack.c.b16 %v2550, %v2548
        %v2607 = vpack.c.b16 %v2551, %v2549
        %v2608 = vpack.c.b16 %v2554, %v2552
        %v2609 = vpack.c.b16 %v2555, %v2553
        %v2610 = vpack.c.b16 %v2558, %v2556
        %v2611 = vpack.c.b16 %v2559, %v2557
        %v2612 = vpack.c.b16 %v2562, %v2560
        %v2613 = vpack.c.b16 %v2563, %v2561
        %v2614 = vpack.c.b16 %v2566, %v2564
        %v2615 = vpack.c.b16 %v2567, %v2565
        %v2616 = vpack.c.b16 %v2570, %v2568
        %v2617 = vpack.c.b16 %v2571, %v2569
        %v2618 = vpack.c.b16 %v2574, %v2572
        %v2619 = vpack.c.b16 %v2575, %v2573
        %v2620 = vpack.c.b16 %v2578, %v2576
        %v2621 = vpack.c.b16 %v2579, %v2577
        %v2622 = vpack.c.b16 %v2582, %v2580
        %v2623 = vpack.c.b16 %v2583, %v2581
        %v2624 = vpack.c.b16 %v2586, %v2584
        %v2625 = vpack.c.b16 %v2587, %v2585
        %v2626 = vpack.c.b16 %v2590, %v2588
        %v2627 = vpack.c.b16 %v2591, %v2589
        %v2628 = vpack.c.b16 %v2594, %v2592
        %v2629 = vpack.c.b16 %v2595, %v2593
        %v2630 = vpack.c.b16 %v2598, %v2596
        %v2631 = vpack.c.b16 %v2599, %v2597
        %2664 = vmatprep.subr.bf16.mxu0 %v2601
        %2665 = vmatpush1.bf16.msra.mxu0 %v2600
        %2666 = vmatprep.subr.bf16.mxu0 %v2603
        %2667 = vmatpush1.bf16.msra.mxu0 %v2602
        %2668 = vmatprep.subr.bf16.mxu0 %v2605
        %2669 = vmatpush1.bf16.msra.mxu0 %v2604
        %2670 = vmatprep.subr.bf16.mxu0 %v2607
        %2671 = vmatpush1.bf16.msra.mxu0 %v2606
        %2672 = vmatprep.subr.bf16.mxu0 %v2609
        %2673 = vmatpush1.bf16.msra.mxu0 %v2608
        %2674 = vmatprep.subr.bf16.mxu0 %v2611
        %2675 = vmatpush1.bf16.msra.mxu0 %v2610
        %2676 = vmatprep.subr.bf16.mxu0 %v2613
        %2677 = vmatpush1.bf16.msra.mxu0 %v2612
        %2678 = vmatprep.subr.bf16.mxu0 %v2615
        %2679 = vmatpush1.bf16.msra.mxu0 %v2614
        %2680 = vmatprep.subr.bf16.mxu0 %v2617
        %2681 = vmatpush1.bf16.msra.mxu0 %v2616
        %2682 = vmatprep.subr.bf16.mxu0 %v2619
        %2683 = vmatpush1.bf16.msra.mxu0 %v2618
        %2684 = vmatprep.subr.bf16.mxu0 %v2621
        %2685 = vmatpush1.bf16.msra.mxu0 %v2620
        %2686 = vmatprep.subr.bf16.mxu0 %v2623
        %2687 = vmatpush1.bf16.msra.mxu0 %v2622
        %2688 = vmatprep.subr.bf16.mxu0 %v2625
        %2689 = vmatpush1.bf16.msra.mxu0 %v2624
        %2690 = vmatprep.subr.bf16.mxu0 %v2627
        %2691 = vmatpush1.bf16.msra.mxu0 %v2626
        %2692 = vmatprep.subr.bf16.mxu0 %v2629
        %2693 = vmatpush1.bf16.msra.mxu0 %v2628
        %2694 = vmatprep.subr.bf16.mxu0 %v2631
        %2695 = vmatpush1.bf16.msra.mxu0 %v2630
        %2696 = vmatprep.mubr.bf16.mxu0 %v2492
        %2697 = vmatmul.mubr.bf16.gmra.mrb[0].mxu0 %v2491
        %v2698 = vpop.f32.mrb[0].mxu0
        %v2699 = vadd.f32 %v2497, %v2698
        %v2700 = vpop.f32.mrb[0].mxu0
        %v2701 = vadd.f32 %v2501, %v2700
        %v2702 = vpop.f32.mrb[0].mxu0
        %v2703 = vadd.f32 %v2497, %v2702
        %v2704 = vpop.f32.mrb[0].mxu0
        %v2705 = vadd.f32 %v2501, %v2704
        %2706 = vdwg.mxu0
        %v2707 = vadd.f32 %v1033, %v2699
        %v2708 = vadd.f32 %v1034, %v2701
        %v2709 = vadd.f32 %v1035, %v2703
        %v2710 = vadd.f32 %v1036, %v2705
        %v2711 = vadd.f32 %v2707, %v2708
        %2712 = vadd.xlane.f32.xlu0 %v2711
        %v2713 = vpop.xlane.xlu0 %2712
        %v2714 = vadd.f32 %v2709, %v2710
        %2715 = vadd.xlane.f32.xlu0 %v2714
        %v2716 = vpop.xlane.xlu0 %2715
        %v2717 = vmul.f32 %v2713, %v1051
        %v2718 = vmul.f32 %v2716, %v1051
        %v2719 = vsub.f32 %v2707, %v2717
        %v2720 = vsub.f32 %v2708, %v2717
        %v2721 = vsub.f32 %v2709, %v2718
        %v2722 = vsub.f32 %v2710, %v2718
        %v2723 = vmul.f32 %v2719, %v2719
        %v2724 = vmul.f32 %v2720, %v2720
        %v2725 = vmul.f32 %v2721, %v2721
        %v2726 = vmul.f32 %v2722, %v2722
        %v2727 = vadd.f32 %v2723, %v2724
        %2728 = vadd.xlane.f32.xlu0 %v2727
        %v2729 = vpop.xlane.xlu0 %2728
        %v2730 = vadd.f32 %v2725, %v2726
        %2731 = vadd.xlane.f32.xlu0 %v2730
        %v2732 = vpop.xlane.xlu0 %2731
        %v2733 = vmul.f32 %v2729, %v1051
        %v2734 = vmul.f32 %v2732, %v1051
        %v2735 = vadd.f32 %v2733, 1e-05
        %v2736 = vadd.f32 %v2734, 1e-05
        %v2737 = vrsqrt.pop %v2735
        %v2738 = vrsqrt.pop %v2736
        %v2739 = vmul.f32 %v2719, %v2737
        %v2740 = vmul.f32 %v2720, %v2737
        %v2741 = vmul.f32 %v2721, %v2738
        %v2742 = vmul.f32 %v2722, %v2738
        %v2743 = vlaneseq
        %v2744 = vshrl.u32 %v2743, 7
        %v2745 = vsub.s32 2, %v2744
        %v2746 = vrot.slane %v1043, %v2745
        %v2747 = vlaneseq
        %v2748 = vshrl.u32 %v2747, 7
        %v2749 = vsub.s32 2, %v2748
        %v2750 = vrot.slane %v1044, %v2749
        %v2751 = vmul.f32 %v2739, %v2746
        %v2752 = vmul.f32 %v2740, %v2750
        %v2753 = vmul.f32 %v2741, %v2746
        %v2754 = vmul.f32 %v2742, %v2750
        %v2755 = vlaneseq
        %v2756 = vshrl.u32 %v2755, 7
        %v2757 = vsub.s32 3, %v2756
        %v2758 = vrot.slane %v1043, %v2757
        %v2759 = vlaneseq
        %v2760 = vshrl.u32 %v2759, 7
        %v2761 = vsub.s32 3, %v2760
        %v2762 = vrot.slane %v1044, %v2761
        %v2763 = vadd.f32 %v2751, %v2758
        %v2764 = vadd.f32 %v2752, %v2762
        %v2765 = vadd.f32 %v2753, %v2758
        %v2766 = vadd.f32 %v2754, %v2762
        %v2767 = vpack.c.bf16 %v2765, %v2763
        %v2768 = vpack.c.bf16 %v2766, %v2764
        %v2769 = vld [vmem:[%s840] sm:$0xff]
        %v2770 = vld [vmem:[%s840 + $0x8] sm:$0xff]
        %v2771 = vld [vmem:[%s840 + $0x10] sm:$0xff]
        %v2772 = vld [vmem:[%s840 + $0x18] sm:$0xff]
        %v2773 = vld [vmem:[%s840 + $0x20] sm:$0xff]
        %v2774 = vld [vmem:[%s840 + $0x28] sm:$0xff]
        %v2775 = vld [vmem:[%s840 + $0x30] sm:$0xff]
        %v2776 = vld [vmem:[%s840 + $0x38] sm:$0xff]
        %v2777 = vld [vmem:[%s840 + $0x40] sm:$0xff]
        %v2778 = vld [vmem:[%s840 + $0x48] sm:$0xff]
        %v2779 = vld [vmem:[%s840 + $0x50] sm:$0xff]
        %v2780 = vld [vmem:[%s840 + $0x58] sm:$0xff]
        %v2781 = vld [vmem:[%s840 + $0x60] sm:$0xff]
        %v2782 = vld [vmem:[%s840 + $0x68] sm:$0xff]
        %v2783 = vld [vmem:[%s840 + $0x70] sm:$0xff]
        %v2784 = vld [vmem:[%s840 + $0x78] sm:$0xff]
        %v2785 = vld [vmem:[%s840 + $0x80] sm:$0xff]
        %v2786 = vld [vmem:[%s840 + $0x88] sm:$0xff]
        %v2787 = vld [vmem:[%s840 + $0x90] sm:$0xff]
        %v2788 = vld [vmem:[%s840 + $0x98] sm:$0xff]
        %v2789 = vld [vmem:[%s840 + $0xa0] sm:$0xff]
        %v2790 = vld [vmem:[%s840 + $0xa8] sm:$0xff]
        %v2791 = vld [vmem:[%s840 + $0xb0] sm:$0xff]
        %v2792 = vld [vmem:[%s840 + $0xb8] sm:$0xff]
        %v2793 = vld [vmem:[%s840 + $0xc0] sm:$0xff]
        %v2794 = vld [vmem:[%s840 + $0xc8] sm:$0xff]
        %v2795 = vld [vmem:[%s840 + $0xd0] sm:$0xff]
        %v2796 = vld [vmem:[%s840 + $0xd8] sm:$0xff]
        %v2797 = vld [vmem:[%s840 + $0xe0] sm:$0xff]
        %v2798 = vld [vmem:[%s840 + $0xe8] sm:$0xff]
        %v2799 = vld [vmem:[%s840 + $0xf0] sm:$0xff]
        %v2800 = vld [vmem:[%s840 + $0xf8] sm:$0xff]
        %v2801 = vld [vmem:[%s1004] sm:$0x3]
        %v2803 = vlaneseq
        %v2804 = vshrl.u32 %v2803, 7
        %v2805 = vsub.s32 0, %v2804
        %v2806 = vrot.slane %v2801, %v2805
        %v2807 = vlaneseq
        %v2808 = vshrl.u32 %v2807, 7
        %v2809 = vsub.s32 1, %v2808
        %v2810 = vrot.slane %v2801, %v2809
        %v2845 = vunpack.c.l.b16 %v2769
        %v2846 = vunpack.c.h.b16 %v2769
        %v2847 = vunpack.c.l.b16 %v2770
        %v2848 = vunpack.c.h.b16 %v2770
        %v2849 = vunpack.c.l.b16 %v2771
        %v2850 = vunpack.c.h.b16 %v2771
        %v2851 = vunpack.c.l.b16 %v2772
        %v2852 = vunpack.c.h.b16 %v2772
        %v2853 = vunpack.c.l.b16 %v2773
        %v2854 = vunpack.c.h.b16 %v2773
        %v2855 = vunpack.c.l.b16 %v2774
        %v2856 = vunpack.c.h.b16 %v2774
        %v2857 = vunpack.c.l.b16 %v2775
        %v2858 = vunpack.c.h.b16 %v2775
        %v2859 = vunpack.c.l.b16 %v2776
        %v2860 = vunpack.c.h.b16 %v2776
        %v2861 = vunpack.c.l.b16 %v2777
        %v2862 = vunpack.c.h.b16 %v2777
        %v2863 = vunpack.c.l.b16 %v2778
        %v2864 = vunpack.c.h.b16 %v2778
        %v2865 = vunpack.c.l.b16 %v2779
        %v2866 = vunpack.c.h.b16 %v2779
        %v2867 = vunpack.c.l.b16 %v2780
        %v2868 = vunpack.c.h.b16 %v2780
        %v2869 = vunpack.c.l.b16 %v2781
        %v2870 = vunpack.c.h.b16 %v2781
        %v2871 = vunpack.c.l.b16 %v2782
        %v2872 = vunpack.c.h.b16 %v2782
        %v2873 = vunpack.c.l.b16 %v2783
        %v2874 = vunpack.c.h.b16 %v2783
        %v2875 = vunpack.c.l.b16 %v2784
        %v2876 = vunpack.c.h.b16 %v2784
        %v2877 = vunpack.c.l.b16 %v2785
        %v2878 = vunpack.c.h.b16 %v2785
        %v2879 = vunpack.c.l.b16 %v2786
        %v2880 = vunpack.c.h.b16 %v2786
        %v2881 = vunpack.c.l.b16 %v2787
        %v2882 = vunpack.c.h.b16 %v2787
        %v2883 = vunpack.c.l.b16 %v2788
        %v2884 = vunpack.c.h.b16 %v2788
        %v2885 = vunpack.c.l.b16 %v2789
        %v2886 = vunpack.c.h.b16 %v2789
        %v2887 = vunpack.c.l.b16 %v2790
        %v2888 = vunpack.c.h.b16 %v2790
        %v2889 = vunpack.c.l.b16 %v2791
        %v2890 = vunpack.c.h.b16 %v2791
        %v2891 = vunpack.c.l.b16 %v2792
        %v2892 = vunpack.c.h.b16 %v2792
        %v2893 = vunpack.c.l.b16 %v2793
        %v2894 = vunpack.c.h.b16 %v2793
        %v2895 = vunpack.c.l.b16 %v2794
        %v2896 = vunpack.c.h.b16 %v2794
        %v2897 = vunpack.c.l.b16 %v2795
        %v2898 = vunpack.c.h.b16 %v2795
        %v2899 = vunpack.c.l.b16 %v2796
        %v2900 = vunpack.c.h.b16 %v2796
        %v2901 = vunpack.c.l.b16 %v2797
        %v2902 = vunpack.c.h.b16 %v2797
        %v2903 = vunpack.c.l.b16 %v2798
        %v2904 = vunpack.c.h.b16 %v2798
        %v2905 = vunpack.c.l.b16 %v2799
        %v2906 = vunpack.c.h.b16 %v2799
        %v2907 = vunpack.c.l.b16 %v2800
        %v2908 = vunpack.c.h.b16 %v2800
        %v2909 = vpack.c.b16 %v2847, %v2845
        %v2910 = vpack.c.b16 %v2848, %v2846
        %v2911 = vpack.c.b16 %v2851, %v2849
        %v2912 = vpack.c.b16 %v2852, %v2850
        %v2913 = vpack.c.b16 %v2855, %v2853
        %v2914 = vpack.c.b16 %v2856, %v2854
        %v2915 = vpack.c.b16 %v2859, %v2857
        %v2916 = vpack.c.b16 %v2860, %v2858
        %v2917 = vpack.c.b16 %v2863, %v2861
        %v2918 = vpack.c.b16 %v2864, %v2862
        %v2919 = vpack.c.b16 %v2867, %v2865
        %v2920 = vpack.c.b16 %v2868, %v2866
        %v2921 = vpack.c.b16 %v2871, %v2869
        %v2922 = vpack.c.b16 %v2872, %v2870
        %v2923 = vpack.c.b16 %v2875, %v2873
        %v2924 = vpack.c.b16 %v2876, %v2874
        %v2925 = vpack.c.b16 %v2879, %v2877
        %v2926 = vpack.c.b16 %v2880, %v2878
        %v2927 = vpack.c.b16 %v2883, %v2881
        %v2928 = vpack.c.b16 %v2884, %v2882
        %v2929 = vpack.c.b16 %v2887, %v2885
        %v2930 = vpack.c.b16 %v2888, %v2886
        %v2931 = vpack.c.b16 %v2891, %v2889
        %v2932 = vpack.c.b16 %v2892, %v2890
        %v2933 = vpack.c.b16 %v2895, %v2893
        %v2934 = vpack.c.b16 %v2896, %v2894
        %v2935 = vpack.c.b16 %v2899, %v2897
        %v2936 = vpack.c.b16 %v2900, %v2898
        %v2937 = vpack.c.b16 %v2903, %v2901
        %v2938 = vpack.c.b16 %v2904, %v2902
        %v2939 = vpack.c.b16 %v2907, %v2905
        %v2940 = vpack.c.b16 %v2908, %v2906
        %2973 = vmatprep.subr.bf16.mxu0 %v2910
        %2974 = vmatpush1.bf16.msra.mxu0 %v2909
        %2975 = vmatprep.subr.bf16.mxu0 %v2912
        %2976 = vmatpush1.bf16.msra.mxu0 %v2911
        %2977 = vmatprep.subr.bf16.mxu0 %v2914
        %2978 = vmatpush1.bf16.msra.mxu0 %v2913
        %2979 = vmatprep.subr.bf16.mxu0 %v2916
        %2980 = vmatpush1.bf16.msra.mxu0 %v2915
        %2981 = vmatprep.subr.bf16.mxu0 %v2918
        %2982 = vmatpush1.bf16.msra.mxu0 %v2917
        %2983 = vmatprep.subr.bf16.mxu0 %v2920
        %2984 = vmatpush1.bf16.msra.mxu0 %v2919
        %2985 = vmatprep.subr.bf16.mxu0 %v2922
        %2986 = vmatpush1.bf16.msra.mxu0 %v2921
        %2987 = vmatprep.subr.bf16.mxu0 %v2924
        %2988 = vmatpush1.bf16.msra.mxu0 %v2923
        %2989 = vmatprep.subr.bf16.mxu0 %v2926
        %2990 = vmatpush1.bf16.msra.mxu0 %v2925
        %2991 = vmatprep.subr.bf16.mxu0 %v2928
        %2992 = vmatpush1.bf16.msra.mxu0 %v2927
        %2993 = vmatprep.subr.bf16.mxu0 %v2930
        %2994 = vmatpush1.bf16.msra.mxu0 %v2929
        %2995 = vmatprep.subr.bf16.mxu0 %v2932
        %2996 = vmatpush1.bf16.msra.mxu0 %v2931
        %2997 = vmatprep.subr.bf16.mxu0 %v2934
        %2998 = vmatpush1.bf16.msra.mxu0 %v2933
        %2999 = vmatprep.subr.bf16.mxu0 %v2936
        %3000 = vmatpush1.bf16.msra.mxu0 %v2935
        %3001 = vmatprep.subr.bf16.mxu0 %v2938
        %3002 = vmatpush1.bf16.msra.mxu0 %v2937
        %3003 = vmatprep.subr.bf16.mxu0 %v2940
        %3004 = vmatpush1.bf16.msra.mxu0 %v2939
        %3005 = vmatprep.mubr.bf16.mxu0 %v2768
        %3006 = vmatmul.mubr.bf16.gmra.mrb[0].mxu0 %v2767
        %v3007 = vpop.f32.mrb[0].mxu0
        %v3008 = vadd.f32 %v2806, %v3007
        %v3009 = vpop.f32.mrb[0].mxu0
        %v3010 = vadd.f32 %v2810, %v3009
        %v3011 = vpop.f32.mrb[0].mxu0
        %v3012 = vadd.f32 %v2806, %v3011
        %v3013 = vpop.f32.mrb[0].mxu0
        %v3014 = vadd.f32 %v2810, %v3013
        %3015 = vdwg.mxu0
        %v3016 = vld [vmem:[%s849] sm:$0xff]
        %v3017 = vld [vmem:[%s849 + $0x8] sm:$0xff]
        %v3018 = vld [vmem:[%s849 + $0x10] sm:$0xff]
        %v3019 = vld [vmem:[%s849 + $0x18] sm:$0xff]
        %v3020 = vld [vmem:[%s849 + $0x20] sm:$0xff]
        %v3021 = vld [vmem:[%s849 + $0x28] sm:$0xff]
        %v3022 = vld [vmem:[%s849 + $0x30] sm:$0xff]
        %v3023 = vld [vmem:[%s849 + $0x38] sm:$0xff]
        %v3024 = vld [vmem:[%s849 + $0x40] sm:$0xff]
        %v3025 = vld [vmem:[%s849 + $0x48] sm:$0xff]
        %v3026 = vld [vmem:[%s849 + $0x50] sm:$0xff]
        %v3027 = vld [vmem:[%s849 + $0x58] sm:$0xff]
        %v3028 = vld [vmem:[%s849 + $0x60] sm:$0xff]
        %v3029 = vld [vmem:[%s849 + $0x68] sm:$0xff]
        %v3030 = vld [vmem:[%s849 + $0x70] sm:$0xff]
        %v3031 = vld [vmem:[%s849 + $0x78] sm:$0xff]
        %v3032 = vld [vmem:[%s849 + $0x80] sm:$0xff]
        %v3033 = vld [vmem:[%s849 + $0x88] sm:$0xff]
        %v3034 = vld [vmem:[%s849 + $0x90] sm:$0xff]
        %v3035 = vld [vmem:[%s849 + $0x98] sm:$0xff]
        %v3036 = vld [vmem:[%s849 + $0xa0] sm:$0xff]
        %v3037 = vld [vmem:[%s849 + $0xa8] sm:$0xff]
        %v3038 = vld [vmem:[%s849 + $0xb0] sm:$0xff]
        %v3039 = vld [vmem:[%s849 + $0xb8] sm:$0xff]
        %v3040 = vld [vmem:[%s849 + $0xc0] sm:$0xff]
        %v3041 = vld [vmem:[%s849 + $0xc8] sm:$0xff]
        %v3042 = vld [vmem:[%s849 + $0xd0] sm:$0xff]
        %v3043 = vld [vmem:[%s849 + $0xd8] sm:$0xff]
        %v3044 = vld [vmem:[%s849 + $0xe0] sm:$0xff]
        %v3045 = vld [vmem:[%s849 + $0xe8] sm:$0xff]
        %v3046 = vld [vmem:[%s849 + $0xf0] sm:$0xff]
        %v3047 = vld [vmem:[%s849 + $0xf8] sm:$0xff]
        %v3048 = vld [vmem:[%s849 + $0x100] sm:$0xff]
        %v3049 = vld [vmem:[%s849 + $0x108] sm:$0xff]
        %v3050 = vld [vmem:[%s849 + $0x110] sm:$0xff]
        %v3051 = vld [vmem:[%s849 + $0x118] sm:$0xff]
        %v3052 = vld [vmem:[%s849 + $0x120] sm:$0xff]
        %v3053 = vld [vmem:[%s849 + $0x128] sm:$0xff]
        %v3054 = vld [vmem:[%s849 + $0x130] sm:$0xff]
        %v3055 = vld [vmem:[%s849 + $0x138] sm:$0xff]
        %v3056 = vld [vmem:[%s849 + $0x140] sm:$0xff]
        %v3057 = vld [vmem:[%s849 + $0x148] sm:$0xff]
        %v3058 = vld [vmem:[%s849 + $0x150] sm:$0xff]
        %v3059 = vld [vmem:[%s849 + $0x158] sm:$0xff]
        %v3060 = vld [vmem:[%s849 + $0x160] sm:$0xff]
        %v3061 = vld [vmem:[%s849 + $0x168] sm:$0xff]
        %v3062 = vld [vmem:[%s849 + $0x170] sm:$0xff]
        %v3063 = vld [vmem:[%s849 + $0x178] sm:$0xff]
        %v3064 = vld [vmem:[%s849 + $0x180] sm:$0xff]
        %v3065 = vld [vmem:[%s849 + $0x188] sm:$0xff]
        %v3066 = vld [vmem:[%s849 + $0x190] sm:$0xff]
        %v3067 = vld [vmem:[%s849 + $0x198] sm:$0xff]
        %v3068 = vld [vmem:[%s849 + $0x1a0] sm:$0xff]
        %v3069 = vld [vmem:[%s849 + $0x1a8] sm:$0xff]
        %v3070 = vld [vmem:[%s849 + $0x1b0] sm:$0xff]
        %v3071 = vld [vmem:[%s849 + $0x1b8] sm:$0xff]
        %v3072 = vld [vmem:[%s849 + $0x1c0] sm:$0xff]
        %v3073 = vld [vmem:[%s849 + $0x1c8] sm:$0xff]
        %v3074 = vld [vmem:[%s849 + $0x1d0] sm:$0xff]
        %v3075 = vld [vmem:[%s849 + $0x1d8] sm:$0xff]
        %v3076 = vld [vmem:[%s849 + $0x1e0] sm:$0xff]
        %v3077 = vld [vmem:[%s849 + $0x1e8] sm:$0xff]
        %v3078 = vld [vmem:[%s849 + $0x1f0] sm:$0xff]
        %v3079 = vld [vmem:[%s849 + $0x1f8] sm:$0xff]
        %v3080 = vld [vmem:[%s1008] sm:$0xf]
        %v3082 = vlaneseq
        %v3083 = vshrl.u32 %v3082, 7
        %v3084 = vsub.s32 0, %v3083
        %v3085 = vrot.slane %v3080, %v3084
        %v3086 = vlaneseq
        %v3087 = vshrl.u32 %v3086, 7
        %v3088 = vsub.s32 1, %v3087
        %v3089 = vrot.slane %v3080, %v3088
        %v3090 = vlaneseq
        %v3091 = vshrl.u32 %v3090, 7
        %v3092 = vsub.s32 2, %v3091
        %v3093 = vrot.slane %v3080, %v3092
        %v3094 = vlaneseq
        %v3095 = vshrl.u32 %v3094, 7
        %v3096 = vsub.s32 3, %v3095
        %v3097 = vrot.slane %v3080, %v3096
        %v3166 = vunpack.c.l.b16 %v3016
        %v3167 = vunpack.c.h.b16 %v3016
        %v3168 = vunpack.c.l.b16 %v3017
        %v3169 = vunpack.c.h.b16 %v3017
        %v3170 = vunpack.c.l.b16 %v3018
        %v3171 = vunpack.c.h.b16 %v3018
        %v3172 = vunpack.c.l.b16 %v3019
        %v3173 = vunpack.c.h.b16 %v3019
        %v3174 = vunpack.c.l.b16 %v3020
        %v3175 = vunpack.c.h.b16 %v3020
        %v3176 = vunpack.c.l.b16 %v3021
        %v3177 = vunpack.c.h.b16 %v3021
        %v3178 = vunpack.c.l.b16 %v3022
        %v3179 = vunpack.c.h.b16 %v3022
        %v3180 = vunpack.c.l.b16 %v3023
        %v3181 = vunpack.c.h.b16 %v3023
        %v3182 = vunpack.c.l.b16 %v3024
        %v3183 = vunpack.c.h.b16 %v3024
        %v3184 = vunpack.c.l.b16 %v3025
        %v3185 = vunpack.c.h.b16 %v3025
        %v3186 = vunpack.c.l.b16 %v3026
        %v3187 = vunpack.c.h.b16 %v3026
        %v3188 = vunpack.c.l.b16 %v3027
        %v3189 = vunpack.c.h.b16 %v3027
        %v3190 = vunpack.c.l.b16 %v3028
        %v3191 = vunpack.c.h.b16 %v3028
        %v3192 = vunpack.c.l.b16 %v3029
        %v3193 = vunpack.c.h.b16 %v3029
        %v3194 = vunpack.c.l.b16 %v3030
        %v3195 = vunpack.c.h.b16 %v3030
        %v3196 = vunpack.c.l.b16 %v3031
        %v3197 = vunpack.c.h.b16 %v3031
        %v3198 = vunpack.c.l.b16 %v3032
        %v3199 = vunpack.c.h.b16 %v3032
        %v3200 = vunpack.c.l.b16 %v3033
        %v3201 = vunpack.c.h.b16 %v3033
        %v3202 = vunpack.c.l.b16 %v3034
        %v3203 = vunpack.c.h.b16 %v3034
        %v3204 = vunpack.c.l.b16 %v3035
        %v3205 = vunpack.c.h.b16 %v3035
        %v3206 = vunpack.c.l.b16 %v3036
        %v3207 = vunpack.c.h.b16 %v3036
        %v3208 = vunpack.c.l.b16 %v3037
        %v3209 = vunpack.c.h.b16 %v3037
        %v3210 = vunpack.c.l.b16 %v3038
        %v3211 = vunpack.c.h.b16 %v3038
        %v3212 = vunpack.c.l.b16 %v3039
        %v3213 = vunpack.c.h.b16 %v3039
        %v3214 = vunpack.c.l.b16 %v3040
        %v3215 = vunpack.c.h.b16 %v3040
        %v3216 = vunpack.c.l.b16 %v3041
        %v3217 = vunpack.c.h.b16 %v3041
        %v3218 = vunpack.c.l.b16 %v3042
        %v3219 = vunpack.c.h.b16 %v3042
        %v3220 = vunpack.c.l.b16 %v3043
        %v3221 = vunpack.c.h.b16 %v3043
        %v3222 = vunpack.c.l.b16 %v3044
        %v3223 = vunpack.c.h.b16 %v3044
        %v3224 = vunpack.c.l.b16 %v3045
        %v3225 = vunpack.c.h.b16 %v3045
        %v3226 = vunpack.c.l.b16 %v3046
        %v3227 = vunpack.c.h.b16 %v3046
        %v3228 = vunpack.c.l.b16 %v3047
        %v3229 = vunpack.c.h.b16 %v3047
        %v3230 = vunpack.c.l.b16 %v3048
        %v3231 = vunpack.c.h.b16 %v3048
        %v3232 = vunpack.c.l.b16 %v3049
        %v3233 = vunpack.c.h.b16 %v3049
        %v3234 = vunpack.c.l.b16 %v3050
        %v3235 = vunpack.c.h.b16 %v3050
        %v3236 = vunpack.c.l.b16 %v3051
        %v3237 = vunpack.c.h.b16 %v3051
        %v3238 = vunpack.c.l.b16 %v3052
        %v3239 = vunpack.c.h.b16 %v3052
        %v3240 = vunpack.c.l.b16 %v3053
        %v3241 = vunpack.c.h.b16 %v3053
        %v3242 = vunpack.c.l.b16 %v3054
        %v3243 = vunpack.c.h.b16 %v3054
        %v3244 = vunpack.c.l.b16 %v3055
        %v3245 = vunpack.c.h.b16 %v3055
        %v3246 = vunpack.c.l.b16 %v3056
        %v3247 = vunpack.c.h.b16 %v3056
        %v3248 = vunpack.c.l.b16 %v3057
        %v3249 = vunpack.c.h.b16 %v3057
        %v3250 = vunpack.c.l.b16 %v3058
        %v3251 = vunpack.c.h.b16 %v3058
        %v3252 = vunpack.c.l.b16 %v3059
        %v3253 = vunpack.c.h.b16 %v3059
        %v3254 = vunpack.c.l.b16 %v3060
        %v3255 = vunpack.c.h.b16 %v3060
        %v3256 = vunpack.c.l.b16 %v3061
        %v3257 = vunpack.c.h.b16 %v3061
        %v3258 = vunpack.c.l.b16 %v3062
        %v3259 = vunpack.c.h.b16 %v3062
        %v3260 = vunpack.c.l.b16 %v3063
        %v3261 = vunpack.c.h.b16 %v3063
        %v3262 = vunpack.c.l.b16 %v3064
        %v3263 = vunpack.c.h.b16 %v3064
        %v3264 = vunpack.c.l.b16 %v3065
        %v3265 = vunpack.c.h.b16 %v3065
        %v3266 = vunpack.c.l.b16 %v3066
        %v3267 = vunpack.c.h.b16 %v3066
        %v3268 = vunpack.c.l.b16 %v3067
        %v3269 = vunpack.c.h.b16 %v3067
        %v3270 = vunpack.c.l.b16 %v3068
        %v3271 = vunpack.c.h.b16 %v3068
        %v3272 = vunpack.c.l.b16 %v3069
        %v3273 = vunpack.c.h.b16 %v3069
        %v3274 = vunpack.c.l.b16 %v3070
        %v3275 = vunpack.c.h.b16 %v3070
        %v3276 = vunpack.c.l.b16 %v3071
        %v3277 = vunpack.c.h.b16 %v3071
        %v3278 = vunpack.c.l.b16 %v3072
        %v3279 = vunpack.c.h.b16 %v3072
        %v3280 = vunpack.c.l.b16 %v3073
        %v3281 = vunpack.c.h.b16 %v3073
        %v3282 = vunpack.c.l.b16 %v3074
        %v3283 = vunpack.c.h.b16 %v3074
        %v3284 = vunpack.c.l.b16 %v3075
        %v3285 = vunpack.c.h.b16 %v3075
        %v3286 = vunpack.c.l.b16 %v3076
        %v3287 = vunpack.c.h.b16 %v3076
        %v3288 = vunpack.c.l.b16 %v3077
        %v3289 = vunpack.c.h.b16 %v3077
        %v3290 = vunpack.c.l.b16 %v3078
        %v3291 = vunpack.c.h.b16 %v3078
        %v3292 = vunpack.c.l.b16 %v3079
        %v3293 = vunpack.c.h.b16 %v3079
        %v3294 = vpack.c.b16 %v3170, %v3166
        %v3295 = vpack.c.b16 %v3171, %v3167
        %v3296 = vpack.c.b16 %v3172, %v3168
        %v3297 = vpack.c.b16 %v3173, %v3169
        %v3298 = vpack.c.b16 %v3178, %v3174
        %v3299 = vpack.c.b16 %v3179, %v3175
        %v3300 = vpack.c.b16 %v3180, %v3176
        %v3301 = vpack.c.b16 %v3181, %v3177
        %v3302 = vpack.c.b16 %v3186, %v3182
        %v3303 = vpack.c.b16 %v3187, %v3183
        %v3304 = vpack.c.b16 %v3188, %v3184
        %v3305 = vpack.c.b16 %v3189, %v3185
        %v3306 = vpack.c.b16 %v3194, %v3190
        %v3307 = vpack.c.b16 %v3195, %v3191
        %v3308 = vpack.c.b16 %v3196, %v3192
        %v3309 = vpack.c.b16 %v3197, %v3193
        %v3310 = vpack.c.b16 %v3202, %v3198
        %v3311 = vpack.c.b16 %v3203, %v3199
        %v3312 = vpack.c.b16 %v3204, %v3200
        %v3313 = vpack.c.b16 %v3205, %v3201
        %v3314 = vpack.c.b16 %v3210, %v3206
        %v3315 = vpack.c.b16 %v3211, %v3207
        %v3316 = vpack.c.b16 %v3212, %v3208
        %v3317 = vpack.c.b16 %v3213, %v3209
        %v3318 = vpack.c.b16 %v3218, %v3214
        %v3319 = vpack.c.b16 %v3219, %v3215
        %v3320 = vpack.c.b16 %v3220, %v3216
        %v3321 = vpack.c.b16 %v3221, %v3217
        %v3322 = vpack.c.b16 %v3226, %v3222
        %v3323 = vpack.c.b16 %v3227, %v3223
        %v3324 = vpack.c.b16 %v3228, %v3224
        %v3325 = vpack.c.b16 %v3229, %v3225
        %v3326 = vpack.c.b16 %v3234, %v3230
        %v3327 = vpack.c.b16 %v3235, %v3231
        %v3328 = vpack.c.b16 %v3236, %v3232
        %v3329 = vpack.c.b16 %v3237, %v3233
        %v3330 = vpack.c.b16 %v3242, %v3238
        %v3331 = vpack.c.b16 %v3243, %v3239
        %v3332 = vpack.c.b16 %v3244, %v3240
        %v3333 = vpack.c.b16 %v3245, %v3241
        %v3334 = vpack.c.b16 %v3250, %v3246
        %v3335 = vpack.c.b16 %v3251, %v3247
        %v3336 = vpack.c.b16 %v3252, %v3248
        %v3337 = vpack.c.b16 %v3253, %v3249
        %v3338 = vpack.c.b16 %v3258, %v3254
        %v3339 = vpack.c.b16 %v3259, %v3255
        %v3340 = vpack.c.b16 %v3260, %v3256
        %v3341 = vpack.c.b16 %v3261, %v3257
        %v3342 = vpack.c.b16 %v3266, %v3262
        %v3343 = vpack.c.b16 %v3267, %v3263
        %v3344 = vpack.c.b16 %v3268, %v3264
        %v3345 = vpack.c.b16 %v3269, %v3265
        %v3346 = vpack.c.b16 %v3274, %v3270
        %v3347 = vpack.c.b16 %v3275, %v3271
        %v3348 = vpack.c.b16 %v3276, %v3272
        %v3349 = vpack.c.b16 %v3277, %v3273
        %v3350 = vpack.c.b16 %v3282, %v3278
        %v3351 = vpack.c.b16 %v3283, %v3279
        %v3352 = vpack.c.b16 %v3284, %v3280
        %v3353 = vpack.c.b16 %v3285, %v3281
        %v3354 = vpack.c.b16 %v3290, %v3286
        %v3355 = vpack.c.b16 %v3291, %v3287
        %v3356 = vpack.c.b16 %v3292, %v3288
        %v3357 = vpack.c.b16 %v3293, %v3289
        %3422 = vmatprep.subr.bf16.mxu0 %v3295
        %3423 = vmatpush1.bf16.msra.mxu0 %v3294
        %3424 = vmatprep.subr.bf16.mxu0 %v3299
        %3425 = vmatpush1.bf16.msra.mxu0 %v3298
        %3426 = vmatprep.subr.bf16.mxu0 %v3303
        %3427 = vmatpush1.bf16.msra.mxu0 %v3302
        %3428 = vmatprep.subr.bf16.mxu0 %v3307
        %3429 = vmatpush1.bf16.msra.mxu0 %v3306
        %3430 = vmatprep.subr.bf16.mxu0 %v3311
        %3431 = vmatpush1.bf16.msra.mxu0 %v3310
        %3432 = vmatprep.subr.bf16.mxu0 %v3315
        %3433 = vmatpush1.bf16.msra.mxu0 %v3314
        %3434 = vmatprep.subr.bf16.mxu0 %v3319
        %3435 = vmatpush1.bf16.msra.mxu0 %v3318
        %3436 = vmatprep.subr.bf16.mxu0 %v3323
        %3437 = vmatpush1.bf16.msra.mxu0 %v3322
        %3438 = vmatprep.subr.bf16.mxu0 %v3327
        %3439 = vmatpush1.bf16.msra.mxu0 %v3326
        %3440 = vmatprep.subr.bf16.mxu0 %v3331
        %3441 = vmatpush1.bf16.msra.mxu0 %v3330
        %3442 = vmatprep.subr.bf16.mxu0 %v3335
        %3443 = vmatpush1.bf16.msra.mxu0 %v3334
        %3444 = vmatprep.subr.bf16.mxu0 %v3339
        %3445 = vmatpush1.bf16.msra.mxu0 %v3338
        %3446 = vmatprep.subr.bf16.mxu0 %v3343
        %3447 = vmatpush1.bf16.msra.mxu0 %v3342
        %3448 = vmatprep.subr.bf16.mxu0 %v3347
        %3449 = vmatpush1.bf16.msra.mxu0 %v3346
        %3450 = vmatprep.subr.bf16.mxu0 %v3351
        %3451 = vmatpush1.bf16.msra.mxu0 %v3350
        %3452 = vmatprep.subr.bf16.mxu0 %v3355
        %3453 = vmatpush1.bf16.msra.mxu0 %v3354
        %3454 = vmatprep.mubr.bf16.mxu0 %v1042
        %3455 = vmatmul.mubr.bf16.gmra.mrb[0].mxu0 %v1041
        %v3456 = vpop.f32.mrb[0].mxu0
        %v3457 = vadd.f32 %v3085, %v3456
        %v3458 = vpop.f32.mrb[0].mxu0
        %v3459 = vadd.f32 %v3089, %v3458
        %v3460 = vpop.f32.mrb[0].mxu0
        %v3461 = vadd.f32 %v3085, %v3460
        %v3462 = vpop.f32.mrb[0].mxu0
        %v3463 = vadd.f32 %v3089, %v3462
        %3464 = vdwg.mxu0
        %3465 = vmatprep.subr.bf16.mxu0 %v3297
        %3466 = vmatpush1.bf16.msra.mxu0 %v3296
        %3467 = vmatprep.subr.bf16.mxu0 %v3301
        %3468 = vmatpush1.bf16.msra.mxu0 %v3300
        %3469 = vmatprep.subr.bf16.mxu0 %v3305
        %3470 = vmatpush1.bf16.msra.mxu0 %v3304
        %3471 = vmatprep.subr.bf16.mxu0 %v3309
        %3472 = vmatpush1.bf16.msra.mxu0 %v3308
        %3473 = vmatprep.subr.bf16.mxu0 %v3313
        %3474 = vmatpush1.bf16.msra.mxu0 %v3312
        %3475 = vmatprep.subr.bf16.mxu0 %v3317
        %3476 = vmatpush1.bf16.msra.mxu0 %v3316
        %3477 = vmatprep.subr.bf16.mxu0 %v3321
        %3478 = vmatpush1.bf16.msra.mxu0 %v3320
        %3479 = vmatprep.subr.bf16.mxu0 %v3325
        %3480 = vmatpush1.bf16.msra.mxu0 %v3324
        %3481 = vmatprep.subr.bf16.mxu0 %v3329
        %3482 = vmatpush1.bf16.msra.mxu0 %v3328
        %3483 = vmatprep.subr.bf16.mxu0 %v3333
        %3484 = vmatpush1.bf16.msra.mxu0 %v3332
        %3485 = vmatprep.subr.bf16.mxu0 %v3337
        %3486 = vmatpush1.bf16.msra.mxu0 %v3336
        %3487 = vmatprep.subr.bf16.mxu0 %v3341
        %3488 = vmatpush1.bf16.msra.mxu0 %v3340
        %3489 = vmatprep.subr.bf16.mxu0 %v3345
        %3490 = vmatpush1.bf16.msra.mxu0 %v3344
        %3491 = vmatprep.subr.bf16.mxu0 %v3349
        %3492 = vmatpush1.bf16.msra.mxu0 %v3348
        %3493 = vmatprep.subr.bf16.mxu0 %v3353
        %3494 = vmatpush1.bf16.msra.mxu0 %v3352
        %3495 = vmatprep.subr.bf16.mxu0 %v3357
        %3496 = vmatpush1.bf16.msra.mxu0 %v3356
        %3497 = vmatprep.mubr.bf16.mxu0 %v1042
        %3498 = vmatmul.mubr.bf16.gmra.mrb[0].mxu0 %v1041
        %v3499 = vpop.f32.mrb[0].mxu0
        %v3500 = vadd.f32 %v3093, %v3499
        %v3501 = vpop.f32.mrb[0].mxu0
        %v3502 = vadd.f32 %v3097, %v3501
        %v3503 = vpop.f32.mrb[0].mxu0
        %v3504 = vadd.f32 %v3093, %v3503
        %v3505 = vpop.f32.mrb[0].mxu0
        %v3506 = vadd.f32 %v3097, %v3505
        %3507 = vdwg.mxu0
        %v3508 = vld [vmem:[%s858] sm:$0xff]
        %v3509 = vld [vmem:[%s858 + $0x8] sm:$0xff]
        %v3510 = vld [vmem:[%s858 + $0x10] sm:$0xff]
        %v3511 = vld [vmem:[%s858 + $0x18] sm:$0xff]
        %v3512 = vld [vmem:[%s858 + $0x20] sm:$0xff]
        %v3513 = vld [vmem:[%s858 + $0x28] sm:$0xff]
        %v3514 = vld [vmem:[%s858 + $0x30] sm:$0xff]
        %v3515 = vld [vmem:[%s858 + $0x38] sm:$0xff]
        %v3516 = vld [vmem:[%s858 + $0x40] sm:$0xff]
        %v3517 = vld [vmem:[%s858 + $0x48] sm:$0xff]
        %v3518 = vld [vmem:[%s858 + $0x50] sm:$0xff]
        %v3519 = vld [vmem:[%s858 + $0x58] sm:$0xff]
        %v3520 = vld [vmem:[%s858 + $0x60] sm:$0xff]
        %v3521 = vld [vmem:[%s858 + $0x68] sm:$0xff]
        %v3522 = vld [vmem:[%s858 + $0x70] sm:$0xff]
        %v3523 = vld [vmem:[%s858 + $0x78] sm:$0xff]
        %v3524 = vld [vmem:[%s858 + $0x80] sm:$0xff]
        %v3525 = vld [vmem:[%s858 + $0x88] sm:$0xff]
        %v3526 = vld [vmem:[%s858 + $0x90] sm:$0xff]
        %v3527 = vld [vmem:[%s858 + $0x98] sm:$0xff]
        %v3528 = vld [vmem:[%s858 + $0xa0] sm:$0xff]
        %v3529 = vld [vmem:[%s858 + $0xa8] sm:$0xff]
        %v3530 = vld [vmem:[%s858 + $0xb0] sm:$0xff]
        %v3531 = vld [vmem:[%s858 + $0xb8] sm:$0xff]
        %v3532 = vld [vmem:[%s858 + $0xc0] sm:$0xff]
        %v3533 = vld [vmem:[%s858 + $0xc8] sm:$0xff]
        %v3534 = vld [vmem:[%s858 + $0xd0] sm:$0xff]
        %v3535 = vld [vmem:[%s858 + $0xd8] sm:$0xff]
        %v3536 = vld [vmem:[%s858 + $0xe0] sm:$0xff]
        %v3537 = vld [vmem:[%s858 + $0xe8] sm:$0xff]
        %v3538 = vld [vmem:[%s858 + $0xf0] sm:$0xff]
        %v3539 = vld [vmem:[%s858 + $0xf8] sm:$0xff]
        %v3540 = vld [vmem:[%s1012] sm:$0x3]
        %v3541 = vld [vmem:[#allocation8] sm:$0xff]
        %v3542 = vld [vmem:[#allocation8 + $0x8] sm:$0xff]
        %v3543 = vld [vmem:[#allocation8 + $0x10] sm:$0xff]
        %v3544 = vld [vmem:[#allocation8 + $0x18] sm:$0xff]
        %v3545 = vld [vmem:[#allocation8 + $0x20] sm:$0xff]
        %v3546 = vld [vmem:[#allocation8 + $0x28] sm:$0xff]
        %v3547 = vld [vmem:[#allocation8 + $0x30] sm:$0xff]
        %v3548 = vld [vmem:[#allocation8 + $0x38] sm:$0xff]
        %v3549 = vld [vmem:[#allocation8 + $0x40] sm:$0xff]
        %v3550 = vld [vmem:[#allocation8 + $0x48] sm:$0xff]
        %v3551 = vld [vmem:[#allocation8 + $0x50] sm:$0xff]
        %v3552 = vld [vmem:[#allocation8 + $0x58] sm:$0xff]
        %v3553 = vld [vmem:[#allocation8 + $0x60] sm:$0xff]
        %v3554 = vld [vmem:[#allocation8 + $0x68] sm:$0xff]
        %v3555 = vld [vmem:[#allocation8 + $0x70] sm:$0xff]
        %v3556 = vld [vmem:[#allocation8 + $0x78] sm:$0xff]
        %3559 = vrot.lane.b32.xlu0 %v3008, 96
        %v3560 = vpop.permute.xlu0 %3559
        %3561 = vrot.lane.b32.xlu0 %v3012, 96
        %v3562 = vpop.permute.xlu0 %3561
        %3565 = vrot.lane.b32.xlu0 %v3008, 64
        %v3566 = vpop.permute.xlu0 %3565
        %3567 = vrot.lane.b32.xlu0 %v3012, 64
        %v3568 = vpop.permute.xlu0 %3567
        %3571 = vrot.lane.b32.xlu0 %v3008, 32
        %v3572 = vpop.permute.xlu0 %3571
        %3573 = vrot.lane.b32.xlu0 %v3012, 32
        %v3574 = vpop.permute.xlu0 %3573
        %3579 = vrot.lane.b32.xlu0 %v3010, 96
        %v3580 = vpop.permute.xlu0 %3579
        %3581 = vrot.lane.b32.xlu0 %v3014, 96
        %v3582 = vpop.permute.xlu0 %3581
        %3585 = vrot.lane.b32.xlu0 %v3010, 64
        %v3586 = vpop.permute.xlu0 %3585
        %3587 = vrot.lane.b32.xlu0 %v3014, 64
        %v3588 = vpop.permute.xlu0 %3587
        %3591 = vrot.lane.b32.xlu0 %v3010, 32
        %v3592 = vpop.permute.xlu0 %3591
        %3593 = vrot.lane.b32.xlu0 %v3014, 32
        %v3594 = vpop.permute.xlu0 %3593
        %v3597 = vpack.c.bf16 %v3012, %v3008
        %v3598 = vpack.c.bf16 %v3562, %v3560
        %v3599 = vpack.c.bf16 %v3568, %v3566
        %v3600 = vpack.c.bf16 %v3574, %v3572
        %v3601 = vpack.c.bf16 %v3014, %v3010
        %v3602 = vpack.c.bf16 %v3582, %v3580
        %v3603 = vpack.c.bf16 %v3588, %v3586
        %v3604 = vpack.c.bf16 %v3594, %v3592
        %3607 = vrot.lane.b32.xlu0 %v3457, 96
        %v3608 = vpop.permute.xlu0 %3607
        %3609 = vrot.lane.b32.xlu0 %v3461, 96
        %v3610 = vpop.permute.xlu0 %3609
        %3613 = vrot.lane.b32.xlu0 %v3457, 64
        %v3614 = vpop.permute.xlu0 %3613
        %3615 = vrot.lane.b32.xlu0 %v3461, 64
        %v3616 = vpop.permute.xlu0 %3615
        %3619 = vrot.lane.b32.xlu0 %v3457, 32
        %v3620 = vpop.permute.xlu0 %3619
        %3621 = vrot.lane.b32.xlu0 %v3461, 32
        %v3622 = vpop.permute.xlu0 %3621
        %3627 = vrot.lane.b32.xlu0 %v3459, 96
        %v3628 = vpop.permute.xlu0 %3627
        %3629 = vrot.lane.b32.xlu0 %v3463, 96
        %v3630 = vpop.permute.xlu0 %3629
        %3633 = vrot.lane.b32.xlu0 %v3459, 64
        %v3634 = vpop.permute.xlu0 %3633
        %3635 = vrot.lane.b32.xlu0 %v3463, 64
        %v3636 = vpop.permute.xlu0 %3635
        %3639 = vrot.lane.b32.xlu0 %v3459, 32
        %v3640 = vpop.permute.xlu0 %3639
        %3641 = vrot.lane.b32.xlu0 %v3463, 32
        %v3642 = vpop.permute.xlu0 %3641
        %v3645 = vpack.c.bf16 %v3461, %v3457
        %v3646 = vpack.c.bf16 %v3610, %v3608
        %v3647 = vpack.c.bf16 %v3616, %v3614
        %v3648 = vpack.c.bf16 %v3622, %v3620
        %v3649 = vpack.c.bf16 %v3463, %v3459
        %v3650 = vpack.c.bf16 %v3630, %v3628
        %v3651 = vpack.c.bf16 %v3636, %v3634
        %v3652 = vpack.c.bf16 %v3642, %v3640
        %3655 = vrot.lane.b32.xlu0 %v3500, 96
        %v3656 = vpop.permute.xlu0 %3655
        %3657 = vrot.lane.b32.xlu0 %v3504, 96
        %v3658 = vpop.permute.xlu0 %3657
        %3661 = vrot.lane.b32.xlu0 %v3500, 64
        %v3662 = vpop.permute.xlu0 %3661
        %3663 = vrot.lane.b32.xlu0 %v3504, 64
        %v3664 = vpop.permute.xlu0 %3663
        %3667 = vrot.lane.b32.xlu0 %v3500, 32
        %v3668 = vpop.permute.xlu0 %3667
        %3669 = vrot.lane.b32.xlu0 %v3504, 32
        %v3670 = vpop.permute.xlu0 %3669
        %3675 = vrot.lane.b32.xlu0 %v3502, 96
        %v3676 = vpop.permute.xlu0 %3675
        %3677 = vrot.lane.b32.xlu0 %v3506, 96
        %v3678 = vpop.permute.xlu0 %3677
        %3681 = vrot.lane.b32.xlu0 %v3502, 64
        %v3682 = vpop.permute.xlu0 %3681
        %3683 = vrot.lane.b32.xlu0 %v3506, 64
        %v3684 = vpop.permute.xlu0 %3683
        %3687 = vrot.lane.b32.xlu0 %v3502, 32
        %v3688 = vpop.permute.xlu0 %3687
        %3689 = vrot.lane.b32.xlu0 %v3506, 32
        %v3690 = vpop.permute.xlu0 %3689
        %v3693 = vpack.c.bf16 %v3504, %v3500
        %v3694 = vpack.c.bf16 %v3658, %v3656
        %v3695 = vpack.c.bf16 %v3664, %v3662
        %v3696 = vpack.c.bf16 %v3670, %v3668
        %v3697 = vpack.c.bf16 %v3506, %v3502
        %v3698 = vpack.c.bf16 %v3678, %v3676
        %v3699 = vpack.c.bf16 %v3684, %v3682
        %v3700 = vpack.c.bf16 %v3690, %v3688
        %v3702 = vsel %vm2034, %v3597, 0
        %v3705 = vsel %vm2034, %v3598, 0
        %v3708 = vsel %vm2034, %v3599, 0
        %v3711 = vsel %vm2034, %v3600, 0
        %v3714 = vsel %vm2034, %v3601, 0
        %v3717 = vsel %vm2034, %v3602, 0
        %v3720 = vsel %vm2034, %v3603, 0
        %v3723 = vsel %vm2034, %v3604, 0
        %v3726 = vsel %vm2034, %v3645, 0
        %v3729 = vsel %vm2034, %v3646, 0
        %v3732 = vsel %vm2034, %v3647, 0
        %v3735 = vsel %vm2034, %v3648, 0
        %v3738 = vsel %vm2034, %v3649, 0
        %v3741 = vsel %vm2034, %v3650, 0
        %v3744 = vsel %vm2034, %v3651, 0
        %v3747 = vsel %vm2034, %v3652, 0
        %3749 = vmatprep.subr.bf16.mxu0 0
        %3750 = vmatpush1.bf16.xpose.msra.mxu0 %v3726
        %3751 = vmatprep.subr.bf16.mxu0 0
        %3752 = vmatpush1.bf16.xpose.msra.mxu0 %v3729
        %3753 = vmatprep.subr.bf16.mxu0 0
        %3754 = vmatpush1.bf16.xpose.msra.mxu0 %v3732
        %3755 = vmatprep.subr.bf16.mxu0 0
        %3756 = vmatpush1.bf16.xpose.msra.mxu0 %v3735
        %3757 = vmatprep.subr.bf16.mxu0 0
        %3758 = vmatpush1.bf16.xpose.msra.mxu0 %v3738
        %3759 = vmatprep.subr.bf16.mxu0 0
        %3760 = vmatpush1.bf16.xpose.msra.mxu0 %v3741
        %3761 = vmatprep.subr.bf16.mxu0 0
        %3762 = vmatpush1.bf16.xpose.msra.mxu0 %v3744
        %3763 = vmatprep.subr.bf16.mxu0 0
        %3764 = vmatpush1.bf16.xpose.msra.mxu0 %v3747
        %3765 = vmatprep.subr.bf16.mxu0 0
        %3766 = vmatpush1.bf16.xpose.msra.mxu0 0
        %3767 = vmatprep.subr.bf16.mxu0 0
        %3768 = vmatpush1.bf16.xpose.msra.mxu0 0
        %3769 = vmatprep.subr.bf16.mxu0 0
        %3770 = vmatpush1.bf16.xpose.msra.mxu0 0
        %3771 = vmatprep.subr.bf16.mxu0 0
        %3772 = vmatpush1.bf16.xpose.msra.mxu0 0
        %3773 = vmatprep.subr.bf16.mxu0 0
        %3774 = vmatpush1.bf16.xpose.msra.mxu0 0
        %3775 = vmatprep.subr.bf16.mxu0 0
        %3776 = vmatpush1.bf16.xpose.msra.mxu0 0
        %3777 = vmatprep.subr.bf16.mxu0 0
        %3778 = vmatpush1.bf16.xpose.msra.mxu0 0
        %3779 = vmatprep.subr.bf16.mxu0 0
        %3780 = vmatpush1.bf16.xpose.msra.mxu0 0
        %3781 = vmatprep.mubr.bf16.mxu0 0
        %3782 = vmatmul.mubr.bf16.gmra.mrb[0].mxu0 %v3702
        %v3783 = vpop.f32.mrb[0].mxu0
        %v3784 = vadd.f32 %v3541, %v3783
        %v3785 = vpop.f32.mrb[0].mxu0
        %v3786 = vpop.f32.mrb[0].mxu0
        %v3787 = vadd.f32 %v3542, %v3786
        %v3788 = vpop.f32.mrb[0].mxu0
        %3789 = vmatprep.mubr.bf16.mxu0 0
        %3790 = vmatmul.mubr.bf16.gmra.mrb[0].mxu0 %v3705
        %v3791 = vpop.f32.mrb[0].mxu0
        %v3792 = vadd.f32 %v3543, %v3791
        %v3793 = vpop.f32.mrb[0].mxu0
        %v3794 = vpop.f32.mrb[0].mxu0
        %v3795 = vadd.f32 %v3544, %v3794
        %v3796 = vpop.f32.mrb[0].mxu0
        %3797 = vmatprep.mubr.bf16.mxu0 0
        %3798 = vmatmul.mubr.bf16.gmra.mrb[0].mxu0 %v3708
        %v3799 = vpop.f32.mrb[0].mxu0
        %v3800 = vadd.f32 %v3545, %v3799
        %v3801 = vpop.f32.mrb[0].mxu0
        %v3802 = vpop.f32.mrb[0].mxu0
        %v3803 = vadd.f32 %v3546, %v3802
        %v3804 = vpop.f32.mrb[0].mxu0
        %3805 = vmatprep.mubr.bf16.mxu0 0
        %3806 = vmatmul.mubr.bf16.gmra.mrb[0].mxu0 %v3711
        %v3807 = vpop.f32.mrb[0].mxu0
        %v3808 = vadd.f32 %v3547, %v3807
        %v3809 = vpop.f32.mrb[0].mxu0
        %v3810 = vpop.f32.mrb[0].mxu0
        %v3811 = vadd.f32 %v3548, %v3810
        %v3812 = vpop.f32.mrb[0].mxu0
        %3813 = vmatprep.mubr.bf16.mxu0 0
        %3814 = vmatmul.mubr.bf16.gmra.mrb[0].mxu0 %v3714
        %v3815 = vpop.f32.mrb[0].mxu0
        %v3816 = vadd.f32 %v3549, %v3815
        %v3817 = vpop.f32.mrb[0].mxu0
        %v3818 = vpop.f32.mrb[0].mxu0
        %v3819 = vadd.f32 %v3550, %v3818
        %v3820 = vpop.f32.mrb[0].mxu0
        %3821 = vmatprep.mubr.bf16.mxu0 0
        %3822 = vmatmul.mubr.bf16.gmra.mrb[0].mxu0 %v3717
        %v3823 = vpop.f32.mrb[0].mxu0
        %v3824 = vadd.f32 %v3551, %v3823
        %v3825 = vpop.f32.mrb[0].mxu0
        %v3826 = vpop.f32.mrb[0].mxu0
        %v3827 = vadd.f32 %v3552, %v3826
        %v3828 = vpop.f32.mrb[0].mxu0
        %3829 = vmatprep.mubr.bf16.mxu0 0
        %3830 = vmatmul.mubr.bf16.gmra.mrb[0].mxu0 %v3720
        %v3831 = vpop.f32.mrb[0].mxu0
        %v3832 = vadd.f32 %v3553, %v3831
        %v3833 = vpop.f32.mrb[0].mxu0
        %v3834 = vpop.f32.mrb[0].mxu0
        %v3835 = vadd.f32 %v3554, %v3834
        %v3836 = vpop.f32.mrb[0].mxu0
        %3837 = vmatprep.mubr.bf16.mxu0 0
        %3838 = vmatmul.mubr.bf16.gmra.mrb[0].mxu0 %v3723
        %v3839 = vpop.f32.mrb[0].mxu0
        %v3840 = vadd.f32 %v3555, %v3839
        %v3841 = vpop.f32.mrb[0].mxu0
        %v3842 = vpop.f32.mrb[0].mxu0
        %v3843 = vadd.f32 %v3556, %v3842
        %v3844 = vpop.f32.mrb[0].mxu0
        %3845 = vdwg.mxu0
        %3846 = vmax.xlane.f32.xlu0 %v3784
        %v3847 = vpop.xlane.xlu0 %3846
        %3848 = vmax.xlane.f32.xlu0 %v3787
        %v3849 = vpop.xlane.xlu0 %3848
        %3850 = vmax.xlane.f32.xlu0 %v3792
        %v3851 = vpop.xlane.xlu0 %3850
        %3852 = vmax.xlane.f32.xlu0 %v3795
        %v3853 = vpop.xlane.xlu0 %3852
        %3854 = vmax.xlane.f32.xlu0 %v3800
        %v3855 = vpop.xlane.xlu0 %3854
        %3856 = vmax.xlane.f32.xlu0 %v3803
        %v3857 = vpop.xlane.xlu0 %3856
        %3858 = vmax.xlane.f32.xlu0 %v3808
        %v3859 = vpop.xlane.xlu0 %3858
        %3860 = vmax.xlane.f32.xlu0 %v3811
        %v3861 = vpop.xlane.xlu0 %3860
        %3862 = vmax.xlane.f32.xlu0 %v3816
        %v3863 = vpop.xlane.xlu0 %3862
        %3864 = vmax.xlane.f32.xlu0 %v3819
        %v3865 = vpop.xlane.xlu0 %3864
        %3866 = vmax.xlane.f32.xlu0 %v3824
        %v3867 = vpop.xlane.xlu0 %3866
        %3868 = vmax.xlane.f32.xlu0 %v3827
        %v3869 = vpop.xlane.xlu0 %3868
        %3870 = vmax.xlane.f32.xlu0 %v3832
        %v3871 = vpop.xlane.xlu0 %3870
        %3872 = vmax.xlane.f32.xlu0 %v3835
        %v3873 = vpop.xlane.xlu0 %3872
        %3874 = vmax.xlane.f32.xlu0 %v3840
        %v3875 = vpop.xlane.xlu0 %3874
        %3876 = vmax.xlane.f32.xlu0 %v3843
        %v3877 = vpop.xlane.xlu0 %3876
        %v3878 = vsub.f32 %v3784, %v3847
        %v3879 = vsub.f32 %v3787, %v3849
        %v3880 = vsub.f32 %v3792, %v3851
        %v3881 = vsub.f32 %v3795, %v3853
        %v3882 = vsub.f32 %v3800, %v3855
        %v3883 = vsub.f32 %v3803, %v3857
        %v3884 = vsub.f32 %v3808, %v3859
        %v3885 = vsub.f32 %v3811, %v3861
        %v3886 = vsub.f32 %v3816, %v3863
        %v3887 = vsub.f32 %v3819, %v3865
        %v3888 = vsub.f32 %v3824, %v3867
        %v3889 = vsub.f32 %v3827, %v3869
        %v3890 = vsub.f32 %v3832, %v3871
        %v3891 = vsub.f32 %v3835, %v3873
        %v3892 = vsub.f32 %v3840, %v3875
        %v3893 = vsub.f32 %v3843, %v3877
        %v3894 = vmul.f32 %v3878, 1.442695
        %v3895 = vpow.pop %v3894
        %v3896 = vmul.f32 %v3879, 1.442695
        %v3897 = vpow.pop %v3896
        %v3898 = vmul.f32 %v3880, 1.442695
        %v3899 = vpow.pop %v3898
        %v3900 = vmul.f32 %v3881, 1.442695
        %v3901 = vpow.pop %v3900
        %v3902 = vmul.f32 %v3882, 1.442695
        %v3903 = vpow.pop %v3902
        %v3904 = vmul.f32 %v3883, 1.442695
        %v3905 = vpow.pop %v3904
        %v3906 = vmul.f32 %v3884, 1.442695
        %v3907 = vpow.pop %v3906
        %v3908 = vmul.f32 %v3885, 1.442695
        %v3909 = vpow.pop %v3908
        %v3910 = vmul.f32 %v3886, 1.442695
        %v3911 = vpow.pop %v3910
        %v3912 = vmul.f32 %v3887, 1.442695
        %v3913 = vpow.pop %v3912
        %v3914 = vmul.f32 %v3888, 1.442695
        %v3915 = vpow.pop %v3914
        %v3916 = vmul.f32 %v3889, 1.442695
        %v3917 = vpow.pop %v3916
        %v3918 = vmul.f32 %v3890, 1.442695
        %v3919 = vpow.pop %v3918
        %v3920 = vmul.f32 %v3891, 1.442695
        %v3921 = vpow.pop %v3920
        %v3922 = vmul.f32 %v3892, 1.442695
        %v3923 = vpow.pop %v3922
        %v3924 = vmul.f32 %v3893, 1.442695
        %v3925 = vpow.pop %v3924
        %3926 = vadd.xlane.f32.xlu0 %v3895
        %v3927 = vpop.xlane.xlu0 %3926
        %3928 = vadd.xlane.f32.xlu0 %v3897
        %v3929 = vpop.xlane.xlu0 %3928
        %3930 = vadd.xlane.f32.xlu0 %v3899
        %v3931 = vpop.xlane.xlu0 %3930
        %3932 = vadd.xlane.f32.xlu0 %v3901
        %v3933 = vpop.xlane.xlu0 %3932
        %3934 = vadd.xlane.f32.xlu0 %v3903
        %v3935 = vpop.xlane.xlu0 %3934
        %3936 = vadd.xlane.f32.xlu0 %v3905
        %v3937 = vpop.xlane.xlu0 %3936
        %3938 = vadd.xlane.f32.xlu0 %v3907
        %v3939 = vpop.xlane.xlu0 %3938
        %3940 = vadd.xlane.f32.xlu0 %v3909
        %v3941 = vpop.xlane.xlu0 %3940
        %3942 = vadd.xlane.f32.xlu0 %v3911
        %v3943 = vpop.xlane.xlu0 %3942
        %3944 = vadd.xlane.f32.xlu0 %v3913
        %v3945 = vpop.xlane.xlu0 %3944
        %3946 = vadd.xlane.f32.xlu0 %v3915
        %v3947 = vpop.xlane.xlu0 %3946
        %3948 = vadd.xlane.f32.xlu0 %v3917
        %v3949 = vpop.xlane.xlu0 %3948
        %3950 = vadd.xlane.f32.xlu0 %v3919
        %v3951 = vpop.xlane.xlu0 %3950
        %3952 = vadd.xlane.f32.xlu0 %v3921
        %v3953 = vpop.xlane.xlu0 %3952
        %3954 = vadd.xlane.f32.xlu0 %v3923
        %v3955 = vpop.xlane.xlu0 %3954
        %3956 = vadd.xlane.f32.xlu0 %v3925
        %v3957 = vpop.xlane.xlu0 %3956
        %v3958 = vrcp.pop %v3927
        %v3959 = vrcp.pop %v3929
        %v3960 = vrcp.pop %v3931
        %v3961 = vrcp.pop %v3933
        %v3962 = vrcp.pop %v3935
        %v3963 = vrcp.pop %v3937
        %v3964 = vrcp.pop %v3939
        %v3965 = vrcp.pop %v3941
        %v3966 = vrcp.pop %v3943
        %v3967 = vrcp.pop %v3945
        %v3968 = vrcp.pop %v3947
        %v3969 = vrcp.pop %v3949
        %v3970 = vrcp.pop %v3951
        %v3971 = vrcp.pop %v3953
        %v3972 = vrcp.pop %v3955
        %v3973 = vrcp.pop %v3957
        %v3974 = vmul.f32 %v3895, %v3958
        %v3975 = vmul.f32 %v3897, %v3959
        %v3976 = vmul.f32 %v3899, %v3960
        %v3977 = vmul.f32 %v3901, %v3961
        %v3978 = vmul.f32 %v3903, %v3962
        %v3979 = vmul.f32 %v3905, %v3963
        %v3980 = vmul.f32 %v3907, %v3964
        %v3981 = vmul.f32 %v3909, %v3965
        %v3982 = vmul.f32 %v3911, %v3966
        %v3983 = vmul.f32 %v3913, %v3967
        %v3984 = vmul.f32 %v3915, %v3968
        %v3985 = vmul.f32 %v3917, %v3969
        %v3986 = vmul.f32 %v3919, %v3970
        %v3987 = vmul.f32 %v3921, %v3971
        %v3988 = vmul.f32 %v3923, %v3972
        %v3989 = vmul.f32 %v3925, %v3973
        %v3990 = vpack.c.bf16 %v3975, %v3974
        %v3991 = vpack.c.bf16 %v3977, %v3976
        %v3992 = vpack.c.bf16 %v3979, %v3978
        %v3993 = vpack.c.bf16 %v3981, %v3980
        %v3994 = vpack.c.bf16 %v3983, %v3982
        %v3995 = vpack.c.bf16 %v3985, %v3984
        %v3996 = vpack.c.bf16 %v3987, %v3986
        %v3997 = vpack.c.bf16 %v3989, %v3988
        %3998 = vmatprep.subr.bf16.mxu0 0
        %3999 = vmatpush1.bf16.msra.mxu0 %v3693
        %4000 = vmatprep.subr.bf16.mxu0 0
        %4001 = vmatpush1.bf16.msra.mxu0 %v3694
        %4002 = vmatprep.subr.bf16.mxu0 0
        %4003 = vmatpush1.bf16.msra.mxu0 %v3695
        %4004 = vmatprep.subr.bf16.mxu0 0
        %4005 = vmatpush1.bf16.msra.mxu0 %v3696
        %4006 = vmatprep.subr.bf16.mxu0 0
        %4007 = vmatpush1.bf16.msra.mxu0 %v3697
        %4008 = vmatprep.subr.bf16.mxu0 0
        %4009 = vmatpush1.bf16.msra.mxu0 %v3698
        %4010 = vmatprep.subr.bf16.mxu0 0
        %4011 = vmatpush1.bf16.msra.mxu0 %v3699
        %4012 = vmatprep.subr.bf16.mxu0 0
        %4013 = vmatpush1.bf16.msra.mxu0 %v3700
        %4014 = vmatprep.subr.bf16.mxu0 0
        %4015 = vmatpush1.bf16.msra.mxu0 0
        %4016 = vmatprep.subr.bf16.mxu0 0
        %4017 = vmatpush1.bf16.msra.mxu0 0
        %4018 = vmatprep.subr.bf16.mxu0 0
        %4019 = vmatpush1.bf16.msra.mxu0 0
        %4020 = vmatprep.subr.bf16.mxu0 0
        %4021 = vmatpush1.bf16.msra.mxu0 0
        %4022 = vmatprep.subr.bf16.mxu0 0
        %4023 = vmatpush1.bf16.msra.mxu0 0
        %4024 = vmatprep.subr.bf16.mxu0 0
        %4025 = vmatpush1.bf16.msra.mxu0 0
        %4026 = vmatprep.subr.bf16.mxu0 0
        %4027 = vmatpush1.bf16.msra.mxu0 0
        %4028 = vmatprep.subr.bf16.mxu0 0
        %4029 = vmatpush1.bf16.msra.mxu0 0
        %4030 = vmatprep.mubr.bf16.mxu0 0
        %4031 = vmatmul.mubr.bf16.gmra.mrb[0].mxu0 %v3990
        %v4032 = vpop.f32.mrb[0].mxu0
        %v4033 = vadd.f32 0.0, %v4032
        %v4034 = vpop.f32.mrb[0].mxu0
        %v4035 = vpop.f32.mrb[0].mxu0
        %v4036 = vadd.f32 0.0, %v4035
        %v4037 = vpop.f32.mrb[0].mxu0
        %4038 = vmatprep.mubr.bf16.mxu0 0
        %4039 = vmatmul.mubr.bf16.gmra.mrb[0].mxu0 %v3991
        %v4040 = vpop.f32.mrb[0].mxu0
        %v4041 = vadd.f32 0.0, %v4040
        %v4042 = vpop.f32.mrb[0].mxu0
        %v4043 = vpop.f32.mrb[0].mxu0
        %v4044 = vadd.f32 0.0, %v4043
        %v4045 = vpop.f32.mrb[0].mxu0
        %4046 = vmatprep.mubr.bf16.mxu0 0
        %4047 = vmatmul.mubr.bf16.gmra.mrb[0].mxu0 %v3992
        %v4048 = vpop.f32.mrb[0].mxu0
        %v4049 = vadd.f32 0.0, %v4048
        %v4050 = vpop.f32.mrb[0].mxu0
        %v4051 = vpop.f32.mrb[0].mxu0
        %v4052 = vadd.f32 0.0, %v4051
        %v4053 = vpop.f32.mrb[0].mxu0
        %4054 = vmatprep.mubr.bf16.mxu0 0
        %4055 = vmatmul.mubr.bf16.gmra.mrb[0].mxu0 %v3993
        %v4056 = vpop.f32.mrb[0].mxu0
        %v4057 = vadd.f32 0.0, %v4056
        %v4058 = vpop.f32.mrb[0].mxu0
        %v4059 = vpop.f32.mrb[0].mxu0
        %v4060 = vadd.f32 0.0, %v4059
        %v4061 = vpop.f32.mrb[0].mxu0
        %4062 = vmatprep.mubr.bf16.mxu0 0
        %4063 = vmatmul.mubr.bf16.gmra.mrb[0].mxu0 %v3994
        %v4064 = vpop.f32.mrb[0].mxu0
        %v4065 = vadd.f32 0.0, %v4064
        %v4066 = vpop.f32.mrb[0].mxu0
        %v4067 = vpop.f32.mrb[0].mxu0
        %v4068 = vadd.f32 0.0, %v4067
        %v4069 = vpop.f32.mrb[0].mxu0
        %4070 = vmatprep.mubr.bf16.mxu0 0
        %4071 = vmatmul.mubr.bf16.gmra.mrb[0].mxu0 %v3995
        %v4072 = vpop.f32.mrb[0].mxu0
        %v4073 = vadd.f32 0.0, %v4072
        %v4074 = vpop.f32.mrb[0].mxu0
        %v4075 = vpop.f32.mrb[0].mxu0
        %v4076 = vadd.f32 0.0, %v4075
        %v4077 = vpop.f32.mrb[0].mxu0
        %4078 = vmatprep.mubr.bf16.mxu0 0
        %4079 = vmatmul.mubr.bf16.gmra.mrb[0].mxu0 %v3996
        %v4080 = vpop.f32.mrb[0].mxu0
        %v4081 = vadd.f32 0.0, %v4080
        %v4082 = vpop.f32.mrb[0].mxu0
        %v4083 = vpop.f32.mrb[0].mxu0
        %v4084 = vadd.f32 0.0, %v4083
        %v4085 = vpop.f32.mrb[0].mxu0
        %4086 = vmatprep.mubr.bf16.mxu0 0
        %4087 = vmatmul.mubr.bf16.gmra.mrb[0].mxu0 %v3997
        %v4088 = vpop.f32.mrb[0].mxu0
        %v4089 = vadd.f32 0.0, %v4088
        %v4090 = vpop.f32.mrb[0].mxu0
        %v4091 = vpop.f32.mrb[0].mxu0
        %v4092 = vadd.f32 0.0, %v4091
        %v4093 = vpop.f32.mrb[0].mxu0
        %4094 = vdwg.mxu0
        %4097 = vrot.lane.b32.xlu0 %v4041, 32
        %v4098 = vpop.permute.xlu0 %4097
        %4099 = vrot.lane.b32.xlu0 %v4044, 32
        %v4100 = vpop.permute.xlu0 %4099
        %4105 = vrot.lane.b32.xlu0 %v4049, 64
        %v4106 = vpop.permute.xlu0 %4105
        %4107 = vrot.lane.b32.xlu0 %v4052, 64
        %v4108 = vpop.permute.xlu0 %4107
        %4113 = vrot.lane.b32.xlu0 %v4057, 96
        %v4114 = vpop.permute.xlu0 %4113
        %4115 = vrot.lane.b32.xlu0 %v4060, 96
        %v4116 = vpop.permute.xlu0 %4115
        %4121 = vrot.lane.b32.xlu0 %v4073, 32
        %v4122 = vpop.permute.xlu0 %4121
        %4123 = vrot.lane.b32.xlu0 %v4076, 32
        %v4124 = vpop.permute.xlu0 %4123
        %4129 = vrot.lane.b32.xlu0 %v4081, 64
        %v4130 = vpop.permute.xlu0 %4129
        %4131 = vrot.lane.b32.xlu0 %v4084, 64
        %v4132 = vpop.permute.xlu0 %4131
        %4137 = vrot.lane.b32.xlu0 %v4089, 96
        %v4138 = vpop.permute.xlu0 %4137
        %4139 = vrot.lane.b32.xlu0 %v4092, 96
        %v4140 = vpop.permute.xlu0 %4139
        %v4143 = vsel %vm2034, %v4033, %v4098
        %v4144 = vsel %vm2034, %v4036, %v4100
        %v4145 = vsel %vm2479, %v4143, %v4106
        %v4146 = vsel %vm2479, %v4144, %v4108
        %v4147 = vsel %vm2482, %v4145, %v4114
        %v4148 = vsel %vm2482, %v4146, %v4116
        %v4149 = vsel %vm2034, %v4065, %v4122
        %v4150 = vsel %vm2034, %v4068, %v4124
        %v4151 = vsel %vm2479, %v4149, %v4130
        %v4152 = vsel %vm2479, %v4150, %v4132
        %v4153 = vsel %vm2482, %v4151, %v4138
        %v4154 = vsel %vm2482, %v4152, %v4140
        %v4155 = vpack.c.bf16 %v4148, %v4147
        %v4156 = vpack.c.bf16 %v4154, %v4153
        %v4158 = vlaneseq
        %v4159 = vshrl.u32 %v4158, 7
        %v4160 = vsub.s32 0, %v4159
        %v4161 = vrot.slane %v3540, %v4160
        %v4162 = vlaneseq
        %v4163 = vshrl.u32 %v4162, 7
        %v4164 = vsub.s32 1, %v4163
        %v4165 = vrot.slane %v3540, %v4164
        %v4200 = vunpack.c.l.b16 %v3508
        %v4201 = vunpack.c.h.b16 %v3508
        %v4202 = vunpack.c.l.b16 %v3509
        %v4203 = vunpack.c.h.b16 %v3509
        %v4204 = vunpack.c.l.b16 %v3510
        %v4205 = vunpack.c.h.b16 %v3510
        %v4206 = vunpack.c.l.b16 %v3511
        %v4207 = vunpack.c.h.b16 %v3511
        %v4208 = vunpack.c.l.b16 %v3512
        %v4209 = vunpack.c.h.b16 %v3512
        %v4210 = vunpack.c.l.b16 %v3513
        %v4211 = vunpack.c.h.b16 %v3513
        %v4212 = vunpack.c.l.b16 %v3514
        %v4213 = vunpack.c.h.b16 %v3514
        %v4214 = vunpack.c.l.b16 %v3515
        %v4215 = vunpack.c.h.b16 %v3515
        %v4216 = vunpack.c.l.b16 %v3516
        %v4217 = vunpack.c.h.b16 %v3516
        %v4218 = vunpack.c.l.b16 %v3517
        %v4219 = vunpack.c.h.b16 %v3517
        %v4220 = vunpack.c.l.b16 %v3518
        %v4221 = vunpack.c.h.b16 %v3518
        %v4222 = vunpack.c.l.b16 %v3519
        %v4223 = vunpack.c.h.b16 %v3519
        %v4224 = vunpack.c.l.b16 %v3520
        %v4225 = vunpack.c.h.b16 %v3520
        %v4226 = vunpack.c.l.b16 %v3521
        %v4227 = vunpack.c.h.b16 %v3521
        %v4228 = vunpack.c.l.b16 %v3522
        %v4229 = vunpack.c.h.b16 %v3522
        %v4230 = vunpack.c.l.b16 %v3523
        %v4231 = vunpack.c.h.b16 %v3523
        %v4232 = vunpack.c.l.b16 %v3524
        %v4233 = vunpack.c.h.b16 %v3524
        %v4234 = vunpack.c.l.b16 %v3525
        %v4235 = vunpack.c.h.b16 %v3525
        %v4236 = vunpack.c.l.b16 %v3526
        %v4237 = vunpack.c.h.b16 %v3526
        %v4238 = vunpack.c.l.b16 %v3527
        %v4239 = vunpack.c.h.b16 %v3527
        %v4240 = vunpack.c.l.b16 %v3528
        %v4241 = vunpack.c.h.b16 %v3528
        %v4242 = vunpack.c.l.b16 %v3529
        %v4243 = vunpack.c.h.b16 %v3529
        %v4244 = vunpack.c.l.b16 %v3530
        %v4245 = vunpack.c.h.b16 %v3530
        %v4246 = vunpack.c.l.b16 %v3531
        %v4247 = vunpack.c.h.b16 %v3531
        %v4248 = vunpack.c.l.b16 %v3532
        %v4249 = vunpack.c.h.b16 %v3532
        %v4250 = vunpack.c.l.b16 %v3533
        %v4251 = vunpack.c.h.b16 %v3533
        %v4252 = vunpack.c.l.b16 %v3534
        %v4253 = vunpack.c.h.b16 %v3534
        %v4254 = vunpack.c.l.b16 %v3535
        %v4255 = vunpack.c.h.b16 %v3535
        %v4256 = vunpack.c.l.b16 %v3536
        %v4257 = vunpack.c.h.b16 %v3536
        %v4258 = vunpack.c.l.b16 %v3537
        %v4259 = vunpack.c.h.b16 %v3537
        %v4260 = vunpack.c.l.b16 %v3538
        %v4261 = vunpack.c.h.b16 %v3538
        %v4262 = vunpack.c.l.b16 %v3539
        %v4263 = vunpack.c.h.b16 %v3539
        %v4264 = vpack.c.b16 %v4202, %v4200
        %v4265 = vpack.c.b16 %v4203, %v4201
        %v4266 = vpack.c.b16 %v4206, %v4204
        %v4267 = vpack.c.b16 %v4207, %v4205
        %v4268 = vpack.c.b16 %v4210, %v4208
        %v4269 = vpack.c.b16 %v4211, %v4209
        %v4270 = vpack.c.b16 %v4214, %v4212
        %v4271 = vpack.c.b16 %v4215, %v4213
        %v4272 = vpack.c.b16 %v4218, %v4216
        %v4273 = vpack.c.b16 %v4219, %v4217
        %v4274 = vpack.c.b16 %v4222, %v4220
        %v4275 = vpack.c.b16 %v4223, %v4221
        %v4276 = vpack.c.b16 %v4226, %v4224
        %v4277 = vpack.c.b16 %v4227, %v4225
        %v4278 = vpack.c.b16 %v4230, %v4228
        %v4279 = vpack.c.b16 %v4231, %v4229
        %v4280 = vpack.c.b16 %v4234, %v4232
        %v4281 = vpack.c.b16 %v4235, %v4233
        %v4282 = vpack.c.b16 %v4238, %v4236
        %v4283 = vpack.c.b16 %v4239, %v4237
        %v4284 = vpack.c.b16 %v4242, %v4240
        %v4285 = vpack.c.b16 %v4243, %v4241
        %v4286 = vpack.c.b16 %v4246, %v4244
        %v4287 = vpack.c.b16 %v4247, %v4245
        %v4288 = vpack.c.b16 %v4250, %v4248
        %v4289 = vpack.c.b16 %v4251, %v4249
        %v4290 = vpack.c.b16 %v4254, %v4252
        %v4291 = vpack.c.b16 %v4255, %v4253
        %v4292 = vpack.c.b16 %v4258, %v4256
        %v4293 = vpack.c.b16 %v4259, %v4257
        %v4294 = vpack.c.b16 %v4262, %v4260
        %v4295 = vpack.c.b16 %v4263, %v4261
        %4328 = vmatprep.subr.bf16.mxu0 %v4265
        %4329 = vmatpush1.bf16.msra.mxu0 %v4264
        %4330 = vmatprep.subr.bf16.mxu0 %v4267
        %4331 = vmatpush1.bf16.msra.mxu0 %v4266
        %4332 = vmatprep.subr.bf16.mxu0 %v4269
        %4333 = vmatpush1.bf16.msra.mxu0 %v4268
        %4334 = vmatprep.subr.bf16.mxu0 %v4271
        %4335 = vmatpush1.bf16.msra.mxu0 %v4270
        %4336 = vmatprep.subr.bf16.mxu0 %v4273
        %4337 = vmatpush1.bf16.msra.mxu0 %v4272
        %4338 = vmatprep.subr.bf16.mxu0 %v4275
        %4339 = vmatpush1.bf16.msra.mxu0 %v4274
        %4340 = vmatprep.subr.bf16.mxu0 %v4277
        %4341 = vmatpush1.bf16.msra.mxu0 %v4276
        %4342 = vmatprep.subr.bf16.mxu0 %v4279
        %4343 = vmatpush1.bf16.msra.mxu0 %v4278
        %4344 = vmatprep.subr.bf16.mxu0 %v4281
        %4345 = vmatpush1.bf16.msra.mxu0 %v4280
        %4346 = vmatprep.subr.bf16.mxu0 %v4283
        %4347 = vmatpush1.bf16.msra.mxu0 %v4282
        %4348 = vmatprep.subr.bf16.mxu0 %v4285
        %4349 = vmatpush1.bf16.msra.mxu0 %v4284
        %4350 = vmatprep.subr.bf16.mxu0 %v4287
        %4351 = vmatpush1.bf16.msra.mxu0 %v4286
        %4352 = vmatprep.subr.bf16.mxu0 %v4289
        %4353 = vmatpush1.bf16.msra.mxu0 %v4288
        %4354 = vmatprep.subr.bf16.mxu0 %v4291
        %4355 = vmatpush1.bf16.msra.mxu0 %v4290
        %4356 = vmatprep.subr.bf16.mxu0 %v4293
        %4357 = vmatpush1.bf16.msra.mxu0 %v4292
        %4358 = vmatprep.subr.bf16.mxu0 %v4295
        %4359 = vmatpush1.bf16.msra.mxu0 %v4294
        %4360 = vmatprep.mubr.bf16.mxu0 %v4156
        %4361 = vmatmul.mubr.bf16.gmra.mrb[0].mxu0 %v4155
        %v4362 = vpop.f32.mrb[0].mxu0
        %v4363 = vadd.f32 %v4161, %v4362
        %v4364 = vpop.f32.mrb[0].mxu0
        %v4365 = vadd.f32 %v4165, %v4364
        %v4366 = vpop.f32.mrb[0].mxu0
        %v4367 = vadd.f32 %v4161, %v4366
        %v4368 = vpop.f32.mrb[0].mxu0
        %v4369 = vadd.f32 %v4165, %v4368
        %4370 = vdwg.mxu0
        %v4371 = vadd.f32 %v2707, %v4363
        %v4372 = vadd.f32 %v2708, %v4365
        %v4373 = vadd.f32 %v2709, %v4367
        %v4374 = vadd.f32 %v2710, %v4369
        %v4375 = vadd.f32 %v4371, %v4372
        %4376 = vadd.xlane.f32.xlu0 %v4375
        %v4377 = vpop.xlane.xlu0 %4376
        %v4378 = vadd.f32 %v4373, %v4374
        %4379 = vadd.xlane.f32.xlu0 %v4378
        %v4380 = vpop.xlane.xlu0 %4379
        %v4381 = vmul.f32 %v4377, %v1051
        %v4382 = vmul.f32 %v4380, %v1051
        %v4383 = vsub.f32 %v4371, %v4381
        %v4384 = vsub.f32 %v4372, %v4381
        %v4385 = vsub.f32 %v4373, %v4382
        %v4386 = vsub.f32 %v4374, %v4382
        %v4387 = vmul.f32 %v4383, %v4383
        %v4388 = vmul.f32 %v4384, %v4384
        %v4389 = vmul.f32 %v4385, %v4385
        %v4390 = vmul.f32 %v4386, %v4386
        %v4391 = vadd.f32 %v4387, %v4388
        %4392 = vadd.xlane.f32.xlu0 %v4391
        %v4393 = vpop.xlane.xlu0 %4392
        %v4394 = vadd.f32 %v4389, %v4390
        %4395 = vadd.xlane.f32.xlu0 %v4394
        %v4396 = vpop.xlane.xlu0 %4395
        %v4397 = vmul.f32 %v4393, %v1051
        %v4398 = vmul.f32 %v4396, %v1051
        %v4399 = vadd.f32 %v4397, 1e-05
        %v4400 = vadd.f32 %v4398, 1e-05
        %v4401 = vrsqrt.pop %v4399
        %v4402 = vrsqrt.pop %v4400
        %v4403 = vmul.f32 %v4383, %v4401
        %v4404 = vmul.f32 %v4384, %v4401
        %v4405 = vmul.f32 %v4385, %v4402
        %v4406 = vmul.f32 %v4386, %v4402
        %v4407 = vlaneseq
        %v4408 = vshrl.u32 %v4407, 7
        %v4409 = vsub.s32 4, %v4408
        %v4410 = vrot.slane %v1043, %v4409
        %v4411 = vlaneseq
        %v4412 = vshrl.u32 %v4411, 7
        %v4413 = vsub.s32 4, %v4412
        %v4414 = vrot.slane %v1044, %v4413
        %v4415 = vmul.f32 %v4403, %v4410
        %v4416 = vmul.f32 %v4404, %v4414
        %v4417 = vmul.f32 %v4405, %v4410
        %v4418 = vmul.f32 %v4406, %v4414
        %v4419 = vlaneseq
        %v4420 = vshrl.u32 %v4419, 7
        %v4421 = vsub.s32 5, %v4420
        %v4422 = vrot.slane %v1043, %v4421
        %v4423 = vlaneseq
        %v4424 = vshrl.u32 %v4423, 7
        %v4425 = vsub.s32 5, %v4424
        %v4426 = vrot.slane %v1044, %v4425
        %v4427 = vadd.f32 %v4415, %v4422
        %v4428 = vadd.f32 %v4416, %v4426
        %v4429 = vadd.f32 %v4417, %v4422
        %v4430 = vadd.f32 %v4418, %v4426
        %v4431 = vpack.c.bf16 %v4429, %v4427
        %v4432 = vpack.c.bf16 %v4430, %v4428
        %v4433 = vld [vmem:[%s867] sm:$0xf]
        %v4434 = vld [vmem:[%s867 + $0x4] sm:$0xf]
        %v4435 = vld [vmem:[%s867 + $0x8] sm:$0xf]
        %v4436 = vld [vmem:[%s867 + $0xc] sm:$0xf]
        %v4437 = vld [vmem:[%s867 + $0x10] sm:$0xf]
        %v4438 = vld [vmem:[%s867 + $0x14] sm:$0xf]
        %v4439 = vld [vmem:[%s867 + $0x18] sm:$0xf]
        %v4440 = vld [vmem:[%s867 + $0x1c] sm:$0xf]
        %v4441 = vld [vmem:[%s867 + $0x20] sm:$0xf]
        %v4442 = vld [vmem:[%s867 + $0x24] sm:$0xf]
        %v4443 = vld [vmem:[%s867 + $0x28] sm:$0xf]
        %v4444 = vld [vmem:[%s867 + $0x2c] sm:$0xf]
        %v4445 = vld [vmem:[%s867 + $0x30] sm:$0xf]
        %v4446 = vld [vmem:[%s867 + $0x34] sm:$0xf]
        %v4447 = vld [vmem:[%s867 + $0x38] sm:$0xf]
        %v4448 = vld [vmem:[%s867 + $0x3c] sm:$0xf]
        %v4449 = vld [vmem:[%s867 + $0x40] sm:$0xf]
        %v4450 = vld [vmem:[%s867 + $0x44] sm:$0xf]
        %v4451 = vld [vmem:[%s867 + $0x48] sm:$0xf]
        %v4452 = vld [vmem:[%s867 + $0x4c] sm:$0xf]
        %v4453 = vld [vmem:[%s867 + $0x50] sm:$0xf]
        %v4454 = vld [vmem:[%s867 + $0x54] sm:$0xf]
        %v4455 = vld [vmem:[%s867 + $0x58] sm:$0xf]
        %v4456 = vld [vmem:[%s867 + $0x5c] sm:$0xf]
        %v4457 = vld [vmem:[%s867 + $0x60] sm:$0xf]
        %v4458 = vld [vmem:[%s867 + $0x64] sm:$0xf]
        %v4459 = vld [vmem:[%s867 + $0x68] sm:$0xf]
        %v4460 = vld [vmem:[%s867 + $0x6c] sm:$0xf]
        %v4461 = vld [vmem:[%s867 + $0x70] sm:$0xf]
        %v4462 = vld [vmem:[%s867 + $0x74] sm:$0xf]
        %v4463 = vld [vmem:[%s867 + $0x78] sm:$0xf]
        %v4464 = vld [vmem:[%s867 + $0x7c] sm:$0xf]
        %v4465 = vld [vmem:[%s1015] sm:$0x1]
        %v4467 = vlaneseq
        %v4468 = vshrl.u32 %v4467, 7
        %v4469 = vsub.s32 0, %v4468
        %v4470 = vrot.slane %v4465, %v4469
        %v4504 = vunpack.c.l.b16 %v4433
        %v4505 = vunpack.c.l.b16 %v4434
        %v4506 = vunpack.c.l.b16 %v4435
        %v4507 = vunpack.c.l.b16 %v4436
        %v4508 = vunpack.c.l.b16 %v4437
        %v4509 = vunpack.c.l.b16 %v4438
        %v4510 = vunpack.c.l.b16 %v4439
        %v4511 = vunpack.c.l.b16 %v4440
        %v4512 = vunpack.c.l.b16 %v4441
        %v4513 = vunpack.c.l.b16 %v4442
        %v4514 = vunpack.c.l.b16 %v4443
        %v4515 = vunpack.c.l.b16 %v4444
        %v4516 = vunpack.c.l.b16 %v4445
        %v4517 = vunpack.c.l.b16 %v4446
        %v4518 = vunpack.c.l.b16 %v4447
        %v4519 = vunpack.c.l.b16 %v4448
        %v4520 = vunpack.c.l.b16 %v4449
        %v4521 = vunpack.c.l.b16 %v4450
        %v4522 = vunpack.c.l.b16 %v4451
        %v4523 = vunpack.c.l.b16 %v4452
        %v4524 = vunpack.c.l.b16 %v4453
        %v4525 = vunpack.c.l.b16 %v4454
        %v4526 = vunpack.c.l.b16 %v4455
        %v4527 = vunpack.c.l.b16 %v4456
        %v4528 = vunpack.c.l.b16 %v4457
        %v4529 = vunpack.c.l.b16 %v4458
        %v4530 = vunpack.c.l.b16 %v4459
        %v4531 = vunpack.c.l.b16 %v4460
        %v4532 = vunpack.c.l.b16 %v4461
        %v4533 = vunpack.c.l.b16 %v4462
        %v4534 = vunpack.c.l.b16 %v4463
        %v4535 = vunpack.c.l.b16 %v4464
        %v4536 = vpack.c.b16 %v4505, %v4504
        %v4537 = vpack.c.b16 %v4507, %v4506
        %v4538 = vpack.c.b16 %v4509, %v4508
        %v4539 = vpack.c.b16 %v4511, %v4510
        %v4540 = vpack.c.b16 %v4513, %v4512
        %v4541 = vpack.c.b16 %v4515, %v4514
        %v4542 = vpack.c.b16 %v4517, %v4516
        %v4543 = vpack.c.b16 %v4519, %v4518
        %v4544 = vpack.c.b16 %v4521, %v4520
        %v4545 = vpack.c.b16 %v4523, %v4522
        %v4546 = vpack.c.b16 %v4525, %v4524
        %v4547 = vpack.c.b16 %v4527, %v4526
        %v4548 = vpack.c.b16 %v4529, %v4528
        %v4549 = vpack.c.b16 %v4531, %v4530
        %v4550 = vpack.c.b16 %v4533, %v4532
        %v4551 = vpack.c.b16 %v4535, %v4534
        %4568 = vmatprep.subr.bf16.mxu0 0
        %4569 = vmatpush1.bf16.msra.mxu0 %v4536
        %4570 = vmatprep.subr.bf16.mxu0 0
        %4571 = vmatpush1.bf16.msra.mxu0 %v4537
        %4572 = vmatprep.subr.bf16.mxu0 0
        %4573 = vmatpush1.bf16.msra.mxu0 %v4538
        %4574 = vmatprep.subr.bf16.mxu0 0
        %4575 = vmatpush1.bf16.msra.mxu0 %v4539
        %4576 = vmatprep.subr.bf16.mxu0 0
        %4577 = vmatpush1.bf16.msra.mxu0 %v4540
        %4578 = vmatprep.subr.bf16.mxu0 0
        %4579 = vmatpush1.bf16.msra.mxu0 %v4541
        %4580 = vmatprep.subr.bf16.mxu0 0
        %4581 = vmatpush1.bf16.msra.mxu0 %v4542
        %4582 = vmatprep.subr.bf16.mxu0 0
        %4583 = vmatpush1.bf16.msra.mxu0 %v4543
        %4584 = vmatprep.subr.bf16.mxu0 0
        %4585 = vmatpush1.bf16.msra.mxu0 %v4544
        %4586 = vmatprep.subr.bf16.mxu0 0
        %4587 = vmatpush1.bf16.msra.mxu0 %v4545
        %4588 = vmatprep.subr.bf16.mxu0 0
        %4589 = vmatpush1.bf16.msra.mxu0 %v4546
        %4590 = vmatprep.subr.bf16.mxu0 0
        %4591 = vmatpush1.bf16.msra.mxu0 %v4547
        %4592 = vmatprep.subr.bf16.mxu0 0
        %4593 = vmatpush1.bf16.msra.mxu0 %v4548
        %4594 = vmatprep.subr.bf16.mxu0 0
        %4595 = vmatpush1.bf16.msra.mxu0 %v4549
        %4596 = vmatprep.subr.bf16.mxu0 0
        %4597 = vmatpush1.bf16.msra.mxu0 %v4550
        %4598 = vmatprep.subr.bf16.mxu0 0
        %4599 = vmatpush1.bf16.msra.mxu0 %v4551
        %4600 = vmatprep.mubr.bf16.mxu0 %v4432
        %4601 = vmatmul.mubr.bf16.gmra.mrb[0].mxu0 %v4431
        %v4602 = vpop.f32.mrb[0].mxu0
        %v4603 = vadd.f32 %v4470, %v4602
        %v4604 = vpop.f32.mrb[0].mxu0
        %v4605 = vpop.f32.mrb[0].mxu0
        %v4606 = vadd.f32 %v4470, %v4605
        %v4607 = vpop.f32.mrb[0].mxu0
        %4608 = vdwg.mxu0
        %v4609 = vmul.f32 %v4603, 0.5
        %v4610 = vmul.f32 %v4606, 0.5
        %v4611 = vmul.f32 %v4603, 0.70710677
        %v4612 = vmul.f32 %v4606, 0.70710677
        %v4613 = vand.u32 2147483647, %v4611
        %v4614 = vand.u32 2147483647, %v4612
        %v4615 = vmul.f32 %v4613, 0.3275911
        %v4616 = vmul.f32 %v4614, 0.3275911
        %v4617 = vadd.f32 %v4615, 1.0
        %v4618 = vadd.f32 %v4616, 1.0
        %v4619 = vrcp.pop %v4617
        %v4620 = vrcp.pop %v4618
        %v4621 = vmul.f32 %v4619, 1.0614054
        %v4622 = vmul.f32 %v4620, 1.0614054
        %v4623 = vadd.f32 %v4621, -1.4531521
        %v4624 = vadd.f32 %v4622, -1.4531521
        %v4625 = vmul.f32 %v4623, %v4619
        %v4626 = vmul.f32 %v4624, %v4620
        %v4627 = vadd.f32 %v4625, 1.4214138
        %v4628 = vadd.f32 %v4626, 1.4214138
        %v4629 = vmul.f32 %v4627, %v4619
        %v4630 = vmul.f32 %v4628, %v4620
        %v4631 = vadd.f32 %v4629, -0.28449672
        %v4632 = vadd.f32 %v4630, -0.28449672
        %v4633 = vmul.f32 %v4631, %v4619
        %v4634 = vmul.f32 %v4632, %v4620
        %v4635 = vadd.f32 %v4633, 0.2548296
        %v4636 = vadd.f32 %v4634, 0.2548296
        %v4637 = vmul.f32 %v4635, %v4619
        %v4638 = vmul.f32 %v4636, %v4620
        %v4639 = vsub.f32 0.0, %v4613
        %v4640 = vsub.f32 0.0, %v4614
        %v4641 = vmul.f32 %v4639, %v4613
        %v4642 = vmul.f32 %v4640, %v4614
        %v4643 = vmul.f32 %v4641, 1.442695
        %v4644 = vpow.pop %v4643
        %v4645 = vmul.f32 %v4642, 1.442695
        %v4646 = vpow.pop %v4645
        %v4647 = vmul.f32 %v4637, %v4644
        %v4648 = vmul.f32 %v4638, %v4646
        %v4649 = vsub.f32 1.0, %v4647
        %v4650 = vsub.f32 1.0, %v4648
        %vm4651 = vcmp.ge.f32.partialorder %v4611, 0.0
        %vm4652 = vcmp.ge.f32.partialorder %v4612, 0.0
        %v4653 = vsub.f32 0.0, %v4649
        %v4654 = vsub.f32 0.0, %v4650
        %v4655 = vsel %vm4651, %v4649, %v4653
        %v4656 = vsel %vm4652, %v4650, %v4654
        %v4657 = vadd.f32 %v4655, 1.0
        %v4658 = vadd.f32 %v4656, 1.0
        %v4659 = vmul.f32 %v4609, %v4657
        %v4660 = vmul.f32 %v4610, %v4658
        %v4661 = vpack.c.bf16 %v4660, %v4659
        %v4662 = vld [vmem:[%s876] sm:$0xff]
        %v4663 = vld [vmem:[%s876 + $0x8] sm:$0xff]
        %v4664 = vld [vmem:[%s876 + $0x10] sm:$0xff]
        %v4665 = vld [vmem:[%s876 + $0x18] sm:$0xff]
        %v4666 = vld [vmem:[%s876 + $0x20] sm:$0xff]
        %v4667 = vld [vmem:[%s876 + $0x28] sm:$0xff]
        %v4668 = vld [vmem:[%s876 + $0x30] sm:$0xff]
        %v4669 = vld [vmem:[%s876 + $0x38] sm:$0xff]
        %v4670 = vld [vmem:[%s876 + $0x40] sm:$0xff]
        %v4671 = vld [vmem:[%s876 + $0x48] sm:$0xff]
        %v4672 = vld [vmem:[%s876 + $0x50] sm:$0xff]
        %v4673 = vld [vmem:[%s876 + $0x58] sm:$0xff]
        %v4674 = vld [vmem:[%s876 + $0x60] sm:$0xff]
        %v4675 = vld [vmem:[%s876 + $0x68] sm:$0xff]
        %v4676 = vld [vmem:[%s876 + $0x70] sm:$0xff]
        %v4677 = vld [vmem:[%s876 + $0x78] sm:$0xff]
        %v4678 = vld [vmem:[%s1019] sm:$0x3]
        %v4680 = vlaneseq
        %v4681 = vshrl.u32 %v4680, 7
        %v4682 = vsub.s32 0, %v4681
        %v4683 = vrot.slane %v4678, %v4682
        %v4684 = vlaneseq
        %v4685 = vshrl.u32 %v4684, 7
        %v4686 = vsub.s32 1, %v4685
        %v4687 = vrot.slane %v4678, %v4686
        %v4706 = vunpack.c.l.b16 %v4662
        %v4707 = vunpack.c.h.b16 %v4662
        %v4708 = vunpack.c.l.b16 %v4663
        %v4709 = vunpack.c.h.b16 %v4663
        %v4710 = vunpack.c.l.b16 %v4664
        %v4711 = vunpack.c.h.b16 %v4664
        %v4712 = vunpack.c.l.b16 %v4665
        %v4713 = vunpack.c.h.b16 %v4665
        %v4714 = vunpack.c.l.b16 %v4666
        %v4715 = vunpack.c.h.b16 %v4666
        %v4716 = vunpack.c.l.b16 %v4667
        %v4717 = vunpack.c.h.b16 %v4667
        %v4718 = vunpack.c.l.b16 %v4668
        %v4719 = vunpack.c.h.b16 %v4668
        %v4720 = vunpack.c.l.b16 %v4669
        %v4721 = vunpack.c.h.b16 %v4669
        %v4722 = vunpack.c.l.b16 %v4670
        %v4723 = vunpack.c.h.b16 %v4670
        %v4724 = vunpack.c.l.b16 %v4671
        %v4725 = vunpack.c.h.b16 %v4671
        %v4726 = vunpack.c.l.b16 %v4672
        %v4727 = vunpack.c.h.b16 %v4672
        %v4728 = vunpack.c.l.b16 %v4673
        %v4729 = vunpack.c.h.b16 %v4673
        %v4730 = vunpack.c.l.b16 %v4674
        %v4731 = vunpack.c.h.b16 %v4674
        %v4732 = vunpack.c.l.b16 %v4675
        %v4733 = vunpack.c.h.b16 %v4675
        %v4734 = vunpack.c.l.b16 %v4676
        %v4735 = vunpack.c.h.b16 %v4676
        %v4736 = vunpack.c.l.b16 %v4677
        %v4737 = vunpack.c.h.b16 %v4677
        %v4738 = vpack.c.b16 %v4708, %v4706
        %v4739 = vpack.c.b16 %v4709, %v4707
        %v4740 = vpack.c.b16 %v4712, %v4710
        %v4741 = vpack.c.b16 %v4713, %v4711
        %v4742 = vpack.c.b16 %v4716, %v4714
        %v4743 = vpack.c.b16 %v4717, %v4715
        %v4744 = vpack.c.b16 %v4720, %v4718
        %v4745 = vpack.c.b16 %v4721, %v4719
        %v4746 = vpack.c.b16 %v4724, %v4722
        %v4747 = vpack.c.b16 %v4725, %v4723
        %v4748 = vpack.c.b16 %v4728, %v4726
        %v4749 = vpack.c.b16 %v4729, %v4727
        %v4750 = vpack.c.b16 %v4732, %v4730
        %v4751 = vpack.c.b16 %v4733, %v4731
        %v4752 = vpack.c.b16 %v4736, %v4734
        %v4753 = vpack.c.b16 %v4737, %v4735
        %4770 = vmatprep.subr.bf16.mxu0 %v4739
        %4771 = vmatpush1.bf16.msra.mxu0 %v4738
        %4772 = vmatprep.subr.bf16.mxu0 %v4741
        %4773 = vmatpush1.bf16.msra.mxu0 %v4740
        %4774 = vmatprep.subr.bf16.mxu0 %v4743
        %4775 = vmatpush1.bf16.msra.mxu0 %v4742
        %4776 = vmatprep.subr.bf16.mxu0 %v4745
        %4777 = vmatpush1.bf16.msra.mxu0 %v4744
        %4778 = vmatprep.subr.bf16.mxu0 %v4747
        %4779 = vmatpush1.bf16.msra.mxu0 %v4746
        %4780 = vmatprep.subr.bf16.mxu0 %v4749
        %4781 = vmatpush1.bf16.msra.mxu0 %v4748
        %4782 = vmatprep.subr.bf16.mxu0 %v4751
        %4783 = vmatpush1.bf16.msra.mxu0 %v4750
        %4784 = vmatprep.subr.bf16.mxu0 %v4753
        %4785 = vmatpush1.bf16.msra.mxu0 %v4752
        %4786 = vmatprep.subr.bf16.mxu0 0
        %4787 = vmatpush1.bf16.msra.mxu0 0
        %4788 = vmatprep.subr.bf16.mxu0 0
        %4789 = vmatpush1.bf16.msra.mxu0 0
        %4790 = vmatprep.subr.bf16.mxu0 0
        %4791 = vmatpush1.bf16.msra.mxu0 0
        %4792 = vmatprep.subr.bf16.mxu0 0
        %4793 = vmatpush1.bf16.msra.mxu0 0
        %4794 = vmatprep.subr.bf16.mxu0 0
        %4795 = vmatpush1.bf16.msra.mxu0 0
        %4796 = vmatprep.subr.bf16.mxu0 0
        %4797 = vmatpush1.bf16.msra.mxu0 0
        %4798 = vmatprep.subr.bf16.mxu0 0
        %4799 = vmatpush1.bf16.msra.mxu0 0
        %4800 = vmatprep.subr.bf16.mxu0 0
        %4801 = vmatpush1.bf16.msra.mxu0 0
        %4802 = vmatprep.mubr.bf16.mxu0 0
        %4803 = vmatmul.mubr.bf16.gmra.mrb[0].mxu0 %v4661
        %v4804 = vpop.f32.mrb[0].mxu0
        %v4805 = vadd.f32 %v4683, %v4804
        %v4806 = vpop.f32.mrb[0].mxu0
        %v4807 = vadd.f32 %v4687, %v4806
        %v4808 = vpop.f32.mrb[0].mxu0
        %v4809 = vadd.f32 %v4683, %v4808
        %v4810 = vpop.f32.mrb[0].mxu0
        %v4811 = vadd.f32 %v4687, %v4810
        %4812 = vdwg.mxu0
        %v4813 = vadd.f32 %v4371, %v4805
        %v4814 = vadd.f32 %v4372, %v4807
        %v4815 = vadd.f32 %v4373, %v4809
        %v4816 = vadd.f32 %v4374, %v4811
        %4817 = vst [vmem:[#allocation2] sm:$0xff] %v4813
        %4818 = vst [vmem:[#allocation2 + $0x8] sm:$0xff] %v4814
        %4819 = vst [vmem:[#allocation2 + $0x10] sm:$0xff] %v4815
        %4820 = vst [vmem:[#allocation2 + $0x18] sm:$0xff] %v4816
        %p4821 = scmp.eq.s32.totalorder %s45, 1
        // Predicated region
        $region141: #{tpu_custom_call.1} parent=95 // pred_check
          %p4822 = pneg %p4821
        $region142: #{tpu_custom_call.1} parent=95 // pred_check_branch
          %4824 = sbr.rel (%p4822) target = $region144
        $region143: #{tpu_custom_call.1} parent=95 // pred_region
          %4825 = vst [vmem:[#allocation20] sm:$0xff] %v4813
          %4826 = vst [vmem:[#allocation20 + $0x8] sm:$0xff] %v4814
          %4827 = vst [vmem:[#allocation20 + $0x10] sm:$0xff] %v4815
          %4828 = vst [vmem:[#allocation20 + $0x18] sm:$0xff] %v4816
        $region144: #{tpu_custom_call.1} parent=95 // pred_fallthru
          _
        // Predicated region
        $region145: #{tpu_custom_call.1} parent=95 // pred_check
          %p4829 = pneg %p532
        $region146: #{tpu_custom_call.1} parent=95 // pred_check_branch
          %4831 = sbr.rel (%p4829) target = $region148
        $region147: #{tpu_custom_call.1} parent=95 // pred_region
          %s4833 = ssub.s32 512, 512
          %4834 = vsyncadd [#allocation5], %s4833
          %s4835 = sshll.u32 [#allocation20], 4
          %s4836 = int_to_ptr.vmem [resolvable:$true] %s4835
          %4841 = dma.vmem_to_hbm [thread:$0]  %s4836, 512, %s19, [#allocation5], 256, 256, 16
        $region148: #{tpu_custom_call.1} parent=95 // pred_fallthru
          _
        // Predicated region
        $region149: #{tpu_custom_call.1} parent=95 // pred_check
          %p4842 = pneg %p532
        $region150: #{tpu_custom_call.1} parent=95 // pred_check_branch
          %4844 = sbr.rel (%p4842) target = $region152
        $region151: #{tpu_custom_call.1} parent=95 // pred_region
          %4845 = dma.done [#allocation5], 512
        $region152: #{tpu_custom_call.1} parent=95 // pred_fallthru
          _
      $region96: #{tpu_custom_call.1} parent=5 // pred_fallthru
        _
      %p4846 = scmp.le.s32.totalorder 2, %s40
      // Predicated region
      $region153: #{tpu_custom_call.1} parent=5 // pred_check
        %p4847 = pneg %p4846
      $region154: #{tpu_custom_call.1} parent=5 // pred_check_branch
        %4849 = sbr.rel (%p4847) target = $region156
      $region155: #{tpu_custom_call.1} parent=5 // pred_region
        %s4850 = ssub.s32 %s40, 2
      $region156: #{tpu_custom_call.1} parent=5 // pred_fallthru
        _
    $region6: #{tpu_custom_call.1} parent=1 // loop_footer
      %s44 = sadd.s32 1, %s40
    $region7: #{tpu_custom_call.1} parent=1 // loop_footer_branch
      %39 = sbr.rel target = $region3
    $region8: #{tpu_custom_call.1} parent=1 // loop_exit
      _
    %4851 = vsyncpa [#allocation4], 1
    %s4852 = scalar_lea.sflag [#allocation4], 1
    %4853 = vsyncpa %s4852, 1
    %4854 = vsyncpa [#allocation7], 1
    %4855 = vsyncpa [#allocation10], 1
    %s4856 = scalar_lea.sflag [#allocation10], 1
    %4857 = vsyncpa %s4856, 1
    %4858 = vsyncpa [#allocation13], 1
    %s4859 = scalar_lea.sflag [#allocation13], 1
    %4860 = vsyncpa %s4859, 1
    %4861 = vsyncpa [#allocation16], 1
    %s4862 = scalar_lea.sflag [#allocation16], 1
    %4863 = vsyncpa %s4862, 1
    %4864 = vsyncpa [#allocation19], 1
    %s4865 = scalar_lea.sflag [#allocation19], 1
    %4866 = vsyncpa %s4865, 1
    %4867 = vsyncpa [#allocation5], 1
    %s4868 = scalar_lea.sflag [#allocation5], 1
    %4869 = vsyncpa %s4868, 1

</llo_original>
